<compile_context>
chip_gen: v7x
topology: tpu7x:2x2x1
jax: 0.10.0
libtpu: 0.0.40
codegen_flags: <defaults>
</compile_context>

<pallas_src>
import functools

import jax
import jax.numpy as jnp
from jax.experimental import pallas as pl
from jax.experimental.pallas import tpu as pltpu


def _round_up(x, m):
    return (x + m - 1) // m * m


# ----------------------------- Fused Pallas kernel -----------------------------

def fused_decoder_kernel(
    dl_ref,                                   # (Bp, 1)  i32 decode lengths (padded rows = 0)
    att1_ref,                                 # (Bp, Pp, A)  precomputed enc @ W_enc_att + b
    enc_ref,                                  # (Bp, Pp, E)
    emb_ref,                                  # (1, Bp, Emb) this step's embeddings (pipelined)
    h0_ref, c0_ref,                           # (Bp, D)
    w_dec_att_ref, b_dec_att_ref,             # (D, A), (1, A)
    w_att_v_ref, b_att_v_ref,                 # (1, A), (1, 1)
    w_fbeta_ref, b_fbeta_ref,                 # (D, E), (1, E)
    w_ih_emb_ref, w_ih_awe_ref, b_ih_ref,     # (Emb, 4D), (E, 4D), (1, 4D)
    w_hh_ref, b_hh_ref,                       # (D, 4D), (1, 4D)
    w_fc_ref, b_fc_ref,                       # (D, Vp), (1, Vp)
    pred_ref,                                 # (1, Bp, Vp)  out
    alpha_ref,                                # (1, Bp, Pp)  out
    h_sc, c_sc,                               # (Bp, D) VMEM scratch: recurrent-state carry
    *, num_pixels,
):
    t = pl.program_id(0)

    @pl.when(t == 0)
    def _init():
        h_sc[...] = h0_ref[...]
        c_sc[...] = c0_ref[...]

    h = h_sc[...]
    c = c_sc[...]
    att1 = att1_ref[...]
    enc = enc_ref[...]
    emb = emb_ref[0]

    # ---- Attention (att1 is time-invariant, hoisted out of the loop) ----
    att2 = jnp.dot(h, w_dec_att_ref[...],
                   preferred_element_type=jnp.float32) + b_dec_att_ref[...]        # (Bp, A)
    att = jnp.maximum(att1 + att2[:, None, :], 0.0)                                 # relu
    # attention_value (A -> 1): VPU multiply + lane reduce (no N=1 MXU matmul, no squeeze)
    scores = jnp.sum(att * w_att_v_ref[...], axis=-1) + b_att_v_ref[...]            # (Bp, Pp)

    bp, pp = scores.shape
    if num_pixels < pp:  # static: keep padded pixel columns out of the softmax
        pix = jax.lax.broadcasted_iota(jnp.int32, (bp, pp), 1)
        scores = jnp.where(pix < num_pixels, scores, -1e30)

    m = jnp.max(scores, axis=-1, keepdims=True)
    e = jnp.exp(scores - m)
    inv = pl.reciprocal(jnp.sum(e, axis=-1, keepdims=True), approx=True)            # EUP
    alpha = e * inv                                                                 # softmax(dim=1)

    awe = jnp.sum(enc * alpha[:, :, None], axis=1)                                  # (Bp, E)

    # ---- f_beta gate ----
    gate = jax.nn.sigmoid(jnp.dot(h, w_fbeta_ref[...],
                                  preferred_element_type=jnp.float32) + b_fbeta_ref[...])
    awe = gate * awe

    # ---- LSTMCell (PyTorch gate order i, f, g, o); concat-free split matmuls ----
    gates = (jnp.dot(emb, w_ih_emb_ref[...], preferred_element_type=jnp.float32)
             + jnp.dot(awe, w_ih_awe_ref[...], preferred_element_type=jnp.float32)
             + b_ih_ref[...]
             + jnp.dot(h, w_hh_ref[...], preferred_element_type=jnp.float32)
             + b_hh_ref[...])
    d = h.shape[1]
    i_g = jax.nn.sigmoid(gates[:, 0 * d:1 * d])
    f_g = jax.nn.sigmoid(gates[:, 1 * d:2 * d])
    g_g = jnp.tanh(gates[:, 2 * d:3 * d])
    o_g = jax.nn.sigmoid(gates[:, 3 * d:4 * d])
    c_new = f_g * c + i_g * g_g
    h_new = o_g * jnp.tanh(c_new)

    h_sc[...] = h_new
    c_sc[...] = c_new

    # ---- fc projection to vocab ----
    # TODO(synk): dropout is eval-mode identity; training parity would need a PRNG mask on h_new.
    pred = jnp.dot(h_new, w_fc_ref[...],
                   preferred_element_type=jnp.float32) + b_fc_ref[...]              # (Bp, Vp)

    # ---- decode-length mask applied in-kernel; lane-dense (1, Bp, 128k) stores ----
    active = dl_ref[...] > t                                                        # (Bp, 1)
    pred_ref[0] = jnp.where(active, pred, 0.0)
    alpha_ref[0] = jnp.where(active, alpha, 0.0)


def _resident(arr):
    """BlockSpec for a tensor that is DMA'd once and stays VMEM-resident across the time grid."""
    zero = (0,) * arr.ndim
    return pl.BlockSpec(arr.shape, lambda t: zero)


# ----------------------------- Module wrapper -----------------------------

def make_params(key, attention_dim, embed_dim, decoder_dim, vocab_size, encoder_dim):
    """Deterministic parameter init; Linear weights stored as (in, out). f32 everywhere
    (bf16 weight storage is the v6e/v7x option at realistic sizes)."""
    ks = jax.random.split(key, 16)
    u = lambda k, shape, s=0.1: jax.random.uniform(k, shape, jnp.float32, -s, s)
    A, Emb, D, V, E = attention_dim, embed_dim, decoder_dim, vocab_size, encoder_dim
    return {
        # Attention
        'w_enc_att': u(ks[0], (E, A)), 'b_enc_att': u(ks[1], (1, A)),
        'w_dec_att': u(ks[2], (D, A)), 'b_dec_att': u(ks[3], (1, A)),
        'w_att_v':   u(ks[4], (A, 1)), 'b_att_v':   u(ks[5], (1, 1)),
        # Embedding
        'embedding': u(ks[6], (V, Emb)),
        # LSTMCell
        'w_ih': u(ks[7], (Emb + E, 4 * D)), 'b_ih': u(ks[8], (1, 4 * D)),
        'w_hh': u(ks[9], (D, 4 * D)),       'b_hh': u(ks[10], (1, 4 * D)),
        # init_h / init_c
        'w_init_h': u(ks[11], (E, D)), 'b_init_h': u(ks[12], (1, D)),
        'w_init_c': u(ks[13], (E, D)), 'b_init_c': u(ks[14], (1, D)),
        # f_beta
        'w_fbeta': u(ks[15], (D, E)), 'b_fbeta': jnp.zeros((1, E), jnp.float32),
        # fc
        'w_fc': u(jax.random.fold_in(key, 99), (D, V)),
        'b_fc': jnp.zeros((1, V), jnp.float32),
    }


def decoder_with_attention_forward(params, encoder_out, captions, caption_lengths):
    """Mirrors Decoder_with_attention.forward (eval-mode dropout).

    PyTorch's dynamic `[:batch_size_t]` slicing is replaced by in-kernel masking with
    (t < decode_length), equivalent when caption_lengths are sorted descending."""
    B = encoder_out.shape[0]
    E = encoder_out.shape[3]
    enc = encoder_out.reshape(B, -1, E).astype(jnp.float32)   # (B, P, E)
    P = enc.shape[1]
    Emb = params['embedding'].shape[1]
    D = params['w_init_h'].shape[1]
    V = params['w_fc'].shape[1]

    decode_lengths = [int(l) - 1 for l in caption_lengths]
    T = int(max(decode_lengths))

    # --- glue (plain JAX): embedding lookup + init hidden state ---
    emb = jnp.take(params['embedding'], captions, axis=0)      # (B, Tcap, Emb)
    mean_enc = jnp.mean(enc, axis=1)
    h0 = mean_enc @ params['w_init_h'] + params['b_init_h']
    c0 = mean_enc @ params['w_init_c'] + params['b_init_c']

    # --- TPU-friendly padding: batch -> x8 sublanes, output lane dims -> x128 lanes ---
    Bp = _round_up(B, 8)
    Pp = _round_up(P, 128)
    Vp = _round_up(V, 128)

    enc_p = jnp.zeros((Bp, Pp, E), jnp.float32).at[:B, :P, :].set(enc)
    # time-invariant encoder attention projection, hoisted out of the recurrent loop
    att1 = enc_p @ params['w_enc_att'] + params['b_enc_att']   # (Bp, Pp, A)

    emb_seq = jnp.zeros((T, Bp, Emb), jnp.float32).at[:, :B, :].set(
        jnp.transpose(emb[:, :T, :], (1, 0, 2)))
    h0_p = jnp.zeros((Bp, D), jnp.float32).at[:B].set(h0)
    c0_p = jnp.zeros((Bp, D), jnp.float32).at[:B].set(c0)
    # decode lengths as a small i32 VMEM vector (vector compare in-kernel; no data-dependent
    # index_map is needed, so scalar prefetch is not required)
    dl = jnp.zeros((Bp, 1), jnp.int32).at[:B, 0].set(jnp.asarray(decode_lengths, jnp.int32))

    # concat-free LSTM input weights
    w_ih_emb = params['w_ih'][:Emb]
    w_ih_awe = params['w_ih'][Emb:]
    # lane-dense (padded) fc weights + attention-value row vector
    w_fc_p = jnp.zeros((D, Vp), jnp.float32).at[:, :V].set(params['w_fc'])
    b_fc_p = jnp.zeros((1, Vp), jnp.float32).at[:, :V].set(params['b_fc'])
    w_att_v_row = params['w_att_v'].T                          # (1, A)

    inputs = (
        dl, att1, enc_p, emb_seq, h0_p, c0_p,
        params['w_dec_att'], params['b_dec_att'],
        w_att_v_row, params['b_att_v'],
        params['w_fbeta'], params['b_fbeta'],
        w_ih_emb, w_ih_awe, params['b_ih'], params['w_hh'], params['b_hh'],
        w_fc_p, b_fc_p,
    )
    in_specs = [
        _resident(dl), _resident(att1), _resident(enc_p),
        pl.BlockSpec((1, Bp, Emb), lambda t: (t, 0, 0)),       # pipelined per-step embedding
        _resident(h0_p), _resident(c0_p),
        _resident(params['w_dec_att']), _resident(params['b_dec_att']),
        _resident(w_att_v_row), _resident(params['b_att_v']),
        _resident(params['w_fbeta']), _resident(params['b_fbeta']),
        _resident(w_ih_emb), _resident(w_ih_awe), _resident(params['b_ih']),
        _resident(params['w_hh']), _resident(params['b_hh']),
        _resident(w_fc_p), _resident(b_fc_p),
    ]
    out_specs = [
        pl.BlockSpec((1, Bp, Vp), lambda t: (t, 0, 0)),        # (T, Bp, Vp) slab, lane-dense
        pl.BlockSpec((1, Bp, Pp), lambda t: (t, 0, 0)),        # (T, Bp, Pp) slab, lane-dense
    ]
    out_shape = (
        jax.ShapeDtypeStruct((T, Bp, Vp), jnp.float32),
        jax.ShapeDtypeStruct((T, Bp, Pp), jnp.float32),
    )

    preds_tbv, alphas_tbp = pl.pallas_call(
        functools.partial(fused_decoder_kernel, num_pixels=P),
        out_shape=out_shape,
        grid_spec=pltpu.PrefetchScalarGridSpec(
            num_scalar_prefetch=0,
            grid=(T,),
            in_specs=in_specs,
            out_specs=out_specs,
            scratch_shapes=[pltpu.VMEM((Bp, D), jnp.float32),   # h carry
                            pltpu.VMEM((Bp, D), jnp.float32)],  # c carry
        ),
        compiler_params=pltpu.CompilerParams(
            dimension_semantics=("arbitrary",),                 # recurrent time axis
            vmem_limit_bytes=32 * 1024 * 1024,
        ),
    )(*inputs)

    predictions = jnp.transpose(preds_tbv, (1, 0, 2))[:B, :, :V]   # (B, T, V)
    alphas = jnp.transpose(alphas_tbp, (1, 0, 2))[:B, :, :P]       # (B, T, P)
    return predictions, captions, decode_lengths, alphas


# ----------------------------- Pure-JAX reference -----------------------------

def reference_forward(params, encoder_out, captions, caption_lengths):
    B = encoder_out.shape[0]
    E = encoder_out.shape[3]
    enc = encoder_out.reshape(B, -1, E)
    emb = jnp.take(params['embedding'], captions, axis=0)
    mean_enc = jnp.mean(enc, axis=1)
    h = mean_enc @ params['w_init_h'] + params['b_init_h']
    c = mean_enc @ params['w_init_c'] + params['b_init_c']
    decode_lengths = [int(l) - 1 for l in caption_lengths]
    T = int(max(decode_lengths))
    dl = jnp.asarray(decode_lengths, jnp.int32)
    D = h.shape[1]
    preds, alphas = [], []
    for t in range(T):
        att1 = jnp.einsum('bpe,ea->bpa', enc, params['w_enc_att']) + params['b_enc_att']
        att2 = h @ params['w_dec_att'] + params['b_dec_att']
        att = jnp.maximum(att1 + att2[:, None, :], 0.0)
        scores = (jnp.einsum('bpa,ao->bpo', att, params['w_att_v']) + params['b_att_v'])[..., 0]
        alpha = jax.nn.softmax(scores, axis=1)
        awe = jnp.sum(enc * alpha[:, :, None], axis=1)
        gate = jax.nn.sigmoid(h @ params['w_fbeta'] + params['b_fbeta'])
        awe = gate * awe
        x = jnp.concatenate([emb[:, t, :], awe], axis=1)
        gates = x @ params['w_ih'] + params['b_ih'] + h @ params['w_hh'] + params['b_hh']
        i_g = jax.nn.sigmoid(gates[:, :D]); f_g = jax.nn.sigmoid(gates[:, D:2*D])
        g_g = jnp.tanh(gates[:, 2*D:3*D]); o_g = jax.nn.sigmoid(gates[:, 3*D:4*D])
        c = f_g * c + i_g * g_g
        h = o_g * jnp.tanh(c)
        pred = h @ params['w_fc'] + params['b_fc']
        active = (dl > t)[:, None]
        preds.append(jnp.where(active, pred, 0.0))
        alphas.append(jnp.where(active, alpha, 0.0))
    return jnp.stack(preds, axis=1), jnp.stack(alphas, axis=1)


# ----------------------------- Main -----------------------------

if __name__ == "__main__":
    # Small, module-consistent shapes.
    B, H, W = 2, 4, 4
    encoder_dim = 128
    attention_dim = 32
    embed_dim = 32
    decoder_dim = 32
    vocab_size = 64
    T = 8
    caption_lengths = [8, 6]   # sorted descending (as the PyTorch module assumes)

    key = jax.random.PRNGKey(0)
    k_enc, k_cap, k_par = jax.random.split(key, 3)

    encoder_out = jax.random.normal(k_enc, (B, H, W, encoder_dim), jnp.float32)
    captions = jax.random.randint(k_cap, (B, T), 0, vocab_size, jnp.int32)
    params = make_params(k_par, attention_dim, embed_dim, decoder_dim, vocab_size, encoder_dim)

    predictions, caps_out, decode_lengths, alphas = decoder_with_attention_forward(
        params, encoder_out, captions, caption_lengths)
    jax.block_until_ready(predictions)
    jax.block_until_ready(alphas)

    ref_pred, ref_alpha = reference_forward(params, encoder_out, captions, caption_lengths)
    assert predictions.shape == (B, max(caption_lengths) - 1, vocab_size)
    assert alphas.shape == (B, max(caption_lengths) - 1, H * W)
    assert jnp.allclose(predictions, ref_pred, rtol=2e-3, atol=2e-3)
    assert jnp.allclose(alphas, ref_alpha, rtol=2e-3, atol=2e-3)

    print("KERNEL_OK")
</pallas_src>

<mosaic_0001>
module attributes {stable_mosaic.version = 11 : i64} {
  func.func @fused_decoder_kernel(%arg0: i32, %arg1: memref<8x1xi32, #tpu.memory_space<vmem>>, %arg2: memref<8x128x32xf32, #tpu.memory_space<vmem>>, %arg3: memref<8x128x128xf32, #tpu.memory_space<vmem>>, %arg4: memref<1x8x32xf32, #tpu.memory_space<vmem>>, %arg5: memref<8x32xf32, #tpu.memory_space<vmem>>, %arg6: memref<8x32xf32, #tpu.memory_space<vmem>>, %arg7: memref<32x32xf32, #tpu.memory_space<vmem>>, %arg8: memref<1x32xf32, #tpu.memory_space<vmem>>, %arg9: memref<1x32xf32, #tpu.memory_space<vmem>>, %arg10: memref<1x1xf32, #tpu.memory_space<vmem>>, %arg11: memref<32x128xf32, #tpu.memory_space<vmem>>, %arg12: memref<1x128xf32, #tpu.memory_space<vmem>>, %arg13: memref<32x128xf32, #tpu.memory_space<vmem>>, %arg14: memref<128x128xf32, #tpu.memory_space<vmem>>, %arg15: memref<1x128xf32, #tpu.memory_space<vmem>>, %arg16: memref<32x128xf32, #tpu.memory_space<vmem>>, %arg17: memref<1x128xf32, #tpu.memory_space<vmem>>, %arg18: memref<32x128xf32, #tpu.memory_space<vmem>>, %arg19: memref<1x128xf32, #tpu.memory_space<vmem>>, %arg20: memref<1x8x128xf32, #tpu.memory_space<vmem>>, %arg21: memref<1x8x128xf32, #tpu.memory_space<vmem>>, %arg22: memref<8x32xf32, #tpu.memory_space<vmem>>, %arg23: memref<8x32xf32, #tpu.memory_space<vmem>>) attributes {dimension_semantics = [#tpu.dimension_semantics<arbitrary>], iteration_bounds = array<i64: 7>, scalar_prefetch = 0 : i64, scratch_operands = 2 : i64, tpu.core_type = #tpu.core_type<tc>, window_params = [{pipeline_mode = #tpu.pipeline_mode<synchronous>, transform_indices = @transform_0, window_bounds = array<i64: 8, 1>}, {pipeline_mode = #tpu.pipeline_mode<synchronous>, transform_indices = @transform_1, window_bounds = array<i64: 8, 128, 32>}, {pipeline_mode = #tpu.pipeline_mode<synchronous>, transform_indices = @transform_2, window_bounds = array<i64: 8, 128, 128>}, {transform_indices = @transform_3, window_bounds = array<i64: 1, 8, 32>}, {pipeline_mode = #tpu.pipeline_mode<synchronous>, transform_indices = @transform_4, window_bounds = array<i64: 8, 32>}, {pipeline_mode = #tpu.pipeline_mode<synchronous>, transform_indices = @transform_5, window_bounds = array<i64: 8, 32>}, {pipeline_mode = #tpu.pipeline_mode<synchronous>, transform_indices = @transform_6, window_bounds = array<i64: 32, 32>}, {pipeline_mode = #tpu.pipeline_mode<synchronous>, transform_indices = @transform_7, window_bounds = array<i64: 1, 32>}, {pipeline_mode = #tpu.pipeline_mode<synchronous>, transform_indices = @transform_8, window_bounds = array<i64: 1, 32>}, {pipeline_mode = #tpu.pipeline_mode<synchronous>, transform_indices = @transform_9, window_bounds = array<i64: 1, 1>}, {pipeline_mode = #tpu.pipeline_mode<synchronous>, transform_indices = @transform_10, window_bounds = array<i64: 32, 128>}, {pipeline_mode = #tpu.pipeline_mode<synchronous>, transform_indices = @transform_11, window_bounds = array<i64: 1, 128>}, {pipeline_mode = #tpu.pipeline_mode<synchronous>, transform_indices = @transform_12, window_bounds = array<i64: 32, 128>}, {pipeline_mode = #tpu.pipeline_mode<synchronous>, transform_indices = @transform_13, window_bounds = array<i64: 128, 128>}, {pipeline_mode = #tpu.pipeline_mode<synchronous>, transform_indices = @transform_14, window_bounds = array<i64: 1, 128>}, {pipeline_mode = #tpu.pipeline_mode<synchronous>, transform_indices = @transform_15, window_bounds = array<i64: 32, 128>}, {pipeline_mode = #tpu.pipeline_mode<synchronous>, transform_indices = @transform_16, window_bounds = array<i64: 1, 128>}, {pipeline_mode = #tpu.pipeline_mode<synchronous>, transform_indices = @transform_17, window_bounds = array<i64: 32, 128>}, {pipeline_mode = #tpu.pipeline_mode<synchronous>, transform_indices = @transform_18, window_bounds = array<i64: 1, 128>}, {transform_indices = @transform_19, window_bounds = array<i64: 1, 8, 128>}, {transform_indices = @transform_20, window_bounds = array<i64: 1, 8, 128>}]} {
    %c0_i32 = arith.constant 0 : i32
    %0 = arith.cmpi eq, %arg0, %c0_i32 : i32
    %1 = arith.extui %0 : i1 to i32
    %c0_i32_0 = arith.constant 0 : i32
    %2 = arith.cmpi ne, %1, %c0_i32_0 : i32
    scf.if %2 {
      %c0_68 = arith.constant 0 : index
      %c0_69 = arith.constant 0 : index
      %120 = vector.load %arg5[%c0_68, %c0_69] : memref<8x32xf32, #tpu.memory_space<vmem>>, vector<8x32xf32>
      %c0_70 = arith.constant 0 : index
      %c0_71 = arith.constant 0 : index
      %121 = vector.load %arg22[%c0_70, %c0_71] : memref<8x32xf32, #tpu.memory_space<vmem>>, vector<8x32xf32>
      tpu.vector_store %arg22[%c0_70, %c0_71], %120 {strides = array<i32>} : memref<8x32xf32, #tpu.memory_space<vmem>>, vector<8x32xf32>,
      %c0_72 = arith.constant 0 : index
      %c0_73 = arith.constant 0 : index
      %122 = vector.load %arg6[%c0_72, %c0_73] : memref<8x32xf32, #tpu.memory_space<vmem>>, vector<8x32xf32>
      %c0_74 = arith.constant 0 : index
      %c0_75 = arith.constant 0 : index
      %123 = vector.load %arg23[%c0_74, %c0_75] : memref<8x32xf32, #tpu.memory_space<vmem>>, vector<8x32xf32>
      tpu.vector_store %arg23[%c0_74, %c0_75], %122 {strides = array<i32>} : memref<8x32xf32, #tpu.memory_space<vmem>>, vector<8x32xf32>,
    } else {
    }
    %c0 = arith.constant 0 : index
    %c0_1 = arith.constant 0 : index
    %3 = vector.load %arg22[%c0, %c0_1] : memref<8x32xf32, #tpu.memory_space<vmem>>, vector<8x32xf32>
    %c0_2 = arith.constant 0 : index
    %c0_3 = arith.constant 0 : index
    %4 = vector.load %arg23[%c0_2, %c0_3] : memref<8x32xf32, #tpu.memory_space<vmem>>, vector<8x32xf32>
    %c0_4 = arith.constant 0 : index
    %c0_5 = arith.constant 0 : index
    %c0_6 = arith.constant 0 : index
    %5 = vector.load %arg2[%c0_4, %c0_5, %c0_6] : memref<8x128x32xf32, #tpu.memory_space<vmem>>, vector<8x128x32xf32>
    %c0_7 = arith.constant 0 : index
    %c0_8 = arith.constant 0 : index
    %c0_9 = arith.constant 0 : index
    %6 = vector.load %arg3[%c0_7, %c0_8, %c0_9] : memref<8x128x128xf32, #tpu.memory_space<vmem>>, vector<8x128x128xf32>
    %c0_10 = arith.constant 0 : index
    %c0_11 = arith.constant 0 : index
    %c0_12 = arith.constant 0 : index
    %7 = vector.load %arg4[%c0_10, %c0_11, %c0_12] : memref<1x8x32xf32, #tpu.memory_space<vmem>>, vector<1x8x32xf32>
    %8 = vector.shape_cast %7 : vector<1x8x32xf32> to vector<8x32xf32>
    %c0_13 = arith.constant 0 : index
    %c0_14 = arith.constant 0 : index
    %9 = vector.load %arg7[%c0_13, %c0_14] : memref<32x32xf32, #tpu.memory_space<vmem>>, vector<32x32xf32>
    %cst = arith.constant dense<0.000000e+00> : vector<8x32xf32>
    %10 = tpu.matmul %3, %9, %cst {dimension_numbers = #tpu.dot_dimension_numbers<[1], [0], [0], [1], [0, 0, 1, 1], [], []>} : vector<8x32xf32>, vector<32x32xf32>, vector<8x32xf32> -> vector<8x32xf32>
    %c0_15 = arith.constant 0 : index
    %c0_16 = arith.constant 0 : index
    %11 = vector.load %arg8[%c0_15, %c0_16] : memref<1x32xf32, #tpu.memory_space<vmem>>, vector<1x32xf32>
    %12 = vector.broadcast %11 : vector<1x32xf32> to vector<8x32xf32>
    %13 = arith.addf %10, %12 : vector<8x32xf32>
    %14 = vector.shape_cast %13 : vector<8x32xf32> to vector<8x1x32xf32>
    %15 = vector.broadcast %14 : vector<8x1x32xf32> to vector<8x128x32xf32>
    %16 = arith.addf %5, %15 : vector<8x128x32xf32>
    %cst_17 = arith.constant 0.000000e+00 : f32
    %17 = vector.broadcast %cst_17 : f32 to vector<8x128x32xf32>
    %18 = arith.maximumf %16, %17 : vector<8x128x32xf32>
    %c0_18 = arith.constant 0 : index
    %c0_19 = arith.constant 0 : index
    %19 = vector.load %arg9[%c0_18, %c0_19] : memref<1x32xf32, #tpu.memory_space<vmem>>, vector<1x32xf32>
    %20 = vector.shape_cast %19 : vector<1x32xf32> to vector<1x1x32xf32>
    %21 = vector.broadcast %20 : vector<1x1x32xf32> to vector<8x128x32xf32>
    %22 = arith.mulf %18, %21 : vector<8x128x32xf32>
    %cst_20 = arith.constant dense<0.000000e+00> : vector<8x128xf32>
    %23 = vector.multi_reduction <add>, %22, %cst_20 [2] : vector<8x128x32xf32> to vector<8x128xf32>
    %c0_21 = arith.constant 0 : index
    %c0_22 = arith.constant 0 : index
    %24 = vector.load %arg10[%c0_21, %c0_22] : memref<1x1xf32, #tpu.memory_space<vmem>>, vector<1x1xf32>
    %25 = vector.broadcast %24 : vector<1x1xf32> to vector<8x128xf32>
    %26 = arith.addf %23, %25 : vector<8x128xf32>
    %27 = tpu.iota {dimensions = array<i32: 1>} : vector<8x128xi32>
    %c16_i32 = arith.constant 16 : i32
    %28 = vector.broadcast %c16_i32 : i32 to vector<8x128xi32>
    %29 = arith.cmpi slt, %27, %28 : vector<8x128xi32>
    %cst_23 = arith.constant -1.000000e+30 : f32
    %30 = vector.broadcast %cst_23 : f32 to vector<8x128xf32>
    %31 = arith.select %29, %26, %30 : vector<8x128xi1>, vector<8x128xf32>
    %cst_24 = arith.constant dense<0xFF800000> : vector<8xf32>
    %32 = vector.multi_reduction <maximumf>, %31, %cst_24 [1] : vector<8x128xf32> to vector<8xf32>
    %33 = vector.shape_cast %32 : vector<8xf32> to vector<8x1xf32>
    %34 = vector.broadcast %33 : vector<8x1xf32> to vector<8x128xf32>
    %35 = arith.subf %31, %34 : vector<8x128xf32>
    %36 = math.exp %35 : vector<8x128xf32>
    %cst_25 = arith.constant dense<0.000000e+00> : vector<8xf32>
    %37 = vector.multi_reduction <add>, %36, %cst_25 [1] : vector<8x128xf32> to vector<8xf32>
    %38 = vector.shape_cast %37 : vector<8xf32> to vector<8x1xf32>
    %39 = tpu.reciprocal %38 {approx = true} : vector<8x1xf32> -> vector<8x1xf32>
    %40 = vector.broadcast %39 : vector<8x1xf32> to vector<8x128xf32>
    %41 = arith.mulf %36, %40 : vector<8x128xf32>
    %42 = vector.shape_cast %41 : vector<8x128xf32> to vector<8x128x1xf32>
    %43 = vector.broadcast %42 : vector<8x128x1xf32> to vector<8x128x128xf32>
    %44 = arith.mulf %6, %43 : vector<8x128x128xf32>
    %cst_26 = arith.constant dense<0.000000e+00> : vector<8x128xf32>
    %45 = vector.multi_reduction <add>, %44, %cst_26 [1] : vector<8x128x128xf32> to vector<8x128xf32>
    %c0_27 = arith.constant 0 : index
    %c0_28 = arith.constant 0 : index
    %46 = vector.load %arg11[%c0_27, %c0_28] : memref<32x128xf32, #tpu.memory_space<vmem>>, vector<32x128xf32>
    %cst_29 = arith.constant dense<0.000000e+00> : vector<8x128xf32>
    %47 = tpu.matmul %3, %46, %cst_29 {dimension_numbers = #tpu.dot_dimension_numbers<[1], [0], [0], [1], [0, 0, 1, 1], [], []>} : vector<8x32xf32>, vector<32x128xf32>, vector<8x128xf32> -> vector<8x128xf32>
    %c0_30 = arith.constant 0 : index
    %c0_31 = arith.constant 0 : index
    %48 = vector.load %arg12[%c0_30, %c0_31] : memref<1x128xf32, #tpu.memory_space<vmem>>, vector<1x128xf32>
    %49 = vector.broadcast %48 : vector<1x128xf32> to vector<8x128xf32>
    %50 = arith.addf %47, %49 : vector<8x128xf32>
    %51 = arith.negf %50 : vector<8x128xf32>
    %52 = math.exp %51 : vector<8x128xf32>
    %cst_32 = arith.constant 1.000000e+00 : f32
    %53 = vector.broadcast %cst_32 : f32 to vector<8x128xf32>
    %54 = arith.addf %53, %52 : vector<8x128xf32>
    %55 = arith.divf %53, %54 : vector<8x128xf32>
    %56 = arith.mulf %55, %45 : vector<8x128xf32>
    %c0_33 = arith.constant 0 : index
    %c0_34 = arith.constant 0 : index
    %57 = vector.load %arg13[%c0_33, %c0_34] : memref<32x128xf32, #tpu.memory_space<vmem>>, vector<32x128xf32>
    %cst_35 = arith.constant dense<0.000000e+00> : vector<8x128xf32>
    %58 = tpu.matmul %8, %57, %cst_35 {dimension_numbers = #tpu.dot_dimension_numbers<[1], [0], [0], [1], [0, 0, 1, 1], [], []>} : vector<8x32xf32>, vector<32x128xf32>, vector<8x128xf32> -> vector<8x128xf32>
    %c0_36 = arith.constant 0 : index
    %c0_37 = arith.constant 0 : index
    %59 = vector.load %arg14[%c0_36, %c0_37] : memref<128x128xf32, #tpu.memory_space<vmem>>, vector<128x128xf32>
    %cst_38 = arith.constant dense<0.000000e+00> : vector<8x128xf32>
    %60 = tpu.matmul %56, %59, %cst_38 {dimension_numbers = #tpu.dot_dimension_numbers<[1], [0], [0], [1], [0, 0, 1, 1], [], []>} : vector<8x128xf32>, vector<128x128xf32>, vector<8x128xf32> -> vector<8x128xf32>
    %61 = arith.addf %58, %60 : vector<8x128xf32>
    %c0_39 = arith.constant 0 : index
    %c0_40 = arith.constant 0 : index
    %62 = vector.load %arg15[%c0_39, %c0_40] : memref<1x128xf32, #tpu.memory_space<vmem>>, vector<1x128xf32>
    %63 = vector.broadcast %62 : vector<1x128xf32> to vector<8x128xf32>
    %64 = arith.addf %61, %63 : vector<8x128xf32>
    %c0_41 = arith.constant 0 : index
    %c0_42 = arith.constant 0 : index
    %65 = vector.load %arg16[%c0_41, %c0_42] : memref<32x128xf32, #tpu.memory_space<vmem>>, vector<32x128xf32>
    %cst_43 = arith.constant dense<0.000000e+00> : vector<8x128xf32>
    %66 = tpu.matmul %3, %65, %cst_43 {dimension_numbers = #tpu.dot_dimension_numbers<[1], [0], [0], [1], [0, 0, 1, 1], [], []>} : vector<8x32xf32>, vector<32x128xf32>, vector<8x128xf32> -> vector<8x128xf32>
    %67 = arith.addf %64, %66 : vector<8x128xf32>
    %c0_44 = arith.constant 0 : index
    %c0_45 = arith.constant 0 : index
    %68 = vector.load %arg17[%c0_44, %c0_45] : memref<1x128xf32, #tpu.memory_space<vmem>>, vector<1x128xf32>
    %69 = vector.broadcast %68 : vector<1x128xf32> to vector<8x128xf32>
    %70 = arith.addf %67, %69 : vector<8x128xf32>
    %71 = vector.extract_strided_slice %70 {offsets = [0, 0], sizes = [8, 32], strides = [1, 1]} : vector<8x128xf32> to vector<8x32xf32>
    %72 = arith.negf %71 : vector<8x32xf32>
    %73 = math.exp %72 : vector<8x32xf32>
    %cst_46 = arith.constant 1.000000e+00 : f32
    %74 = vector.broadcast %cst_46 : f32 to vector<8x32xf32>
    %75 = arith.addf %74, %73 : vector<8x32xf32>
    %76 = arith.divf %74, %75 : vector<8x32xf32>
    %77 = vector.extract_strided_slice %70 {offsets = [0, 32], sizes = [8, 32], strides = [1, 1]} : vector<8x128xf32> to vector<8x32xf32>
    %78 = arith.negf %77 : vector<8x32xf32>
    %79 = math.exp %78 : vector<8x32xf32>
    %cst_47 = arith.constant 1.000000e+00 : f32
    %80 = vector.broadcast %cst_47 : f32 to vector<8x32xf32>
    %81 = arith.addf %80, %79 : vector<8x32xf32>
    %82 = arith.divf %80, %81 : vector<8x32xf32>
    %83 = vector.extract_strided_slice %70 {offsets = [0, 64], sizes = [8, 32], strides = [1, 1]} : vector<8x128xf32> to vector<8x32xf32>
    %84 = math.tanh %83 : vector<8x32xf32>
    %85 = vector.extract_strided_slice %70 {offsets = [0, 96], sizes = [8, 32], strides = [1, 1]} : vector<8x128xf32> to vector<8x32xf32>
    %86 = arith.negf %85 : vector<8x32xf32>
    %87 = math.exp %86 : vector<8x32xf32>
    %cst_48 = arith.constant 1.000000e+00 : f32
    %88 = vector.broadcast %cst_48 : f32 to vector<8x32xf32>
    %89 = arith.addf %88, %87 : vector<8x32xf32>
    %90 = arith.divf %88, %89 : vector<8x32xf32>
    %91 = arith.mulf %82, %4 : vector<8x32xf32>
    %92 = arith.mulf %76, %84 : vector<8x32xf32>
    %93 = arith.addf %91, %92 : vector<8x32xf32>
    %94 = math.tanh %93 : vector<8x32xf32>
    %95 = arith.mulf %90, %94 : vector<8x32xf32>
    %c0_49 = arith.constant 0 : index
    %c0_50 = arith.constant 0 : index
    %96 = vector.load %arg22[%c0_49, %c0_50] : memref<8x32xf32, #tpu.memory_space<vmem>>, vector<8x32xf32>
    tpu.vector_store %arg22[%c0_49, %c0_50], %95 {strides = array<i32>} : memref<8x32xf32, #tpu.memory_space<vmem>>, vector<8x32xf32>,
    %c0_51 = arith.constant 0 : index
    %c0_52 = arith.constant 0 : index
    %97 = vector.load %arg23[%c0_51, %c0_52] : memref<8x32xf32, #tpu.memory_space<vmem>>, vector<8x32xf32>
    tpu.vector_store %arg23[%c0_51, %c0_52], %93 {strides = array<i32>} : memref<8x32xf32, #tpu.memory_space<vmem>>, vector<8x32xf32>,
    %c0_53 = arith.constant 0 : index
    %c0_54 = arith.constant 0 : index
    %98 = vector.load %arg18[%c0_53, %c0_54] : memref<32x128xf32, #tpu.memory_space<vmem>>, vector<32x128xf32>
    %cst_55 = arith.constant dense<0.000000e+00> : vector<8x128xf32>
    %99 = tpu.matmul %95, %98, %cst_55 {dimension_numbers = #tpu.dot_dimension_numbers<[1], [0], [0], [1], [0, 0, 1, 1], [], []>} : vector<8x32xf32>, vector<32x128xf32>, vector<8x128xf32> -> vector<8x128xf32>
    %c0_56 = arith.constant 0 : index
    %c0_57 = arith.constant 0 : index
    %100 = vector.load %arg19[%c0_56, %c0_57] : memref<1x128xf32, #tpu.memory_space<vmem>>, vector<1x128xf32>
    %101 = vector.broadcast %100 : vector<1x128xf32> to vector<8x128xf32>
    %102 = arith.addf %99, %101 : vector<8x128xf32>
    %c0_58 = arith.constant 0 : index
    %c0_59 = arith.constant 0 : index
    %103 = vector.load %arg1[%c0_58, %c0_59] : memref<8x1xi32, #tpu.memory_space<vmem>>, vector<8x1xi32>
    %104 = vector.broadcast %arg0 : i32 to vector<8x1xi32>
    %105 = arith.cmpi sgt, %103, %104 : vector<8x1xi32>
    %cst_60 = arith.constant 0.000000e+00 : f32
    %106 = vector.shape_cast %105 : vector<8x1xi1> to vector<8x1xi1>
    %107 = vector.broadcast %106 : vector<8x1xi1> to vector<8x128xi1>
    %108 = vector.broadcast %cst_60 : f32 to vector<8x128xf32>
    %109 = arith.select %107, %102, %108 : vector<8x128xi1>, vector<8x128xf32>
    %c0_61 = arith.constant 0 : index
    %c0_62 = arith.constant 0 : index
    %c0_63 = arith.constant 0 : index
    %110 = vector.load %arg20[%c0_61, %c0_62, %c0_63] : memref<1x8x128xf32, #tpu.memory_space<vmem>>, vector<1x8x128xf32>
    %111 = vector.shape_cast %110 : vector<1x8x128xf32> to vector<8x128xf32>
    %112 = vector.shape_cast %109 : vector<8x128xf32> to vector<1x8x128xf32>
    tpu.vector_store %arg20[%c0_61, %c0_62, %c0_63], %112 {strides = array<i32>} : memref<1x8x128xf32, #tpu.memory_space<vmem>>, vector<1x8x128xf32>,
    %cst_64 = arith.constant 0.000000e+00 : f32
    %113 = vector.shape_cast %105 : vector<8x1xi1> to vector<8x1xi1>
    %114 = vector.broadcast %113 : vector<8x1xi1> to vector<8x128xi1>
    %115 = vector.broadcast %cst_64 : f32 to vector<8x128xf32>
    %116 = arith.select %114, %41, %115 : vector<8x128xi1>, vector<8x128xf32>
    %c0_65 = arith.constant 0 : index
    %c0_66 = arith.constant 0 : index
    %c0_67 = arith.constant 0 : index
    %117 = vector.load %arg21[%c0_65, %c0_66, %c0_67] : memref<1x8x128xf32, #tpu.memory_space<vmem>>, vector<1x8x128xf32>
    %118 = vector.shape_cast %117 : vector<1x8x128xf32> to vector<8x128xf32>
    %119 = vector.shape_cast %116 : vector<8x128xf32> to vector<1x8x128xf32>
    tpu.vector_store %arg21[%c0_65, %c0_66, %c0_67], %119 {strides = array<i32>} : memref<1x8x128xf32, #tpu.memory_space<vmem>>, vector<1x8x128xf32>,
    return
  }
  func.func @transform_0(%arg0: i32) -> (i32, i32) {
    %c0_i32 = arith.constant 0 : i32
    %c0_i32_0 = arith.constant 0 : i32
    %c0_i32_1 = arith.constant 0 : i32
    return %c0_i32, %c0_i32_0 : i32, i32
  }
  func.func @transform_1(%arg0: i32) -> (i32, i32, i32) {
    %c0_i32 = arith.constant 0 : i32
    %c0_i32_0 = arith.constant 0 : i32
    %c0_i32_1 = arith.constant 0 : i32
    %c0_i32_2 = arith.constant 0 : i32
    return %c0_i32, %c0_i32_0, %c0_i32_1 : i32, i32, i32
  }
  func.func @transform_2(%arg0: i32) -> (i32, i32, i32) {
    %c0_i32 = arith.constant 0 : i32
    %c0_i32_0 = arith.constant 0 : i32
    %c0_i32_1 = arith.constant 0 : i32
    %c0_i32_2 = arith.constant 0 : i32
    return %c0_i32, %c0_i32_0, %c0_i32_1 : i32, i32, i32
  }
  func.func @transform_3(%arg0: i32) -> (i32, i32, i32) {
    %c0_i32 = arith.constant 0 : i32
    %c0_i32_0 = arith.constant 0 : i32
    %c0_i32_1 = arith.constant 0 : i32
    return %arg0, %c0_i32, %c0_i32_0 : i32, i32, i32
  }
  func.func @transform_4(%arg0: i32) -> (i32, i32) {
    %c0_i32 = arith.constant 0 : i32
    %c0_i32_0 = arith.constant 0 : i32
    %c0_i32_1 = arith.constant 0 : i32
    return %c0_i32, %c0_i32_0 : i32, i32
  }
  func.func @transform_5(%arg0: i32) -> (i32, i32) {
    %c0_i32 = arith.constant 0 : i32
    %c0_i32_0 = arith.constant 0 : i32
    %c0_i32_1 = arith.constant 0 : i32
    return %c0_i32, %c0_i32_0 : i32, i32
  }
  func.func @transform_6(%arg0: i32) -> (i32, i32) {
    %c0_i32 = arith.constant 0 : i32
    %c0_i32_0 = arith.constant 0 : i32
    %c0_i32_1 = arith.constant 0 : i32
    return %c0_i32, %c0_i32_0 : i32, i32
  }
  func.func @transform_7(%arg0: i32) -> (i32, i32) {
    %c0_i32 = arith.constant 0 : i32
    %c0_i32_0 = arith.constant 0 : i32
    %c0_i32_1 = arith.constant 0 : i32
    return %c0_i32, %c0_i32_0 : i32, i32
  }
  func.func @transform_8(%arg0: i32) -> (i32, i32) {
    %c0_i32 = arith.constant 0 : i32
    %c0_i32_0 = arith.constant 0 : i32
    %c0_i32_1 = arith.constant 0 : i32
    return %c0_i32, %c0_i32_0 : i32, i32
  }
  func.func @transform_9(%arg0: i32) -> (i32, i32) {
    %c0_i32 = arith.constant 0 : i32
    %c0_i32_0 = arith.constant 0 : i32
    %c0_i32_1 = arith.constant 0 : i32
    return %c0_i32, %c0_i32_0 : i32, i32
  }
  func.func @transform_10(%arg0: i32) -> (i32, i32) {
    %c0_i32 = arith.constant 0 : i32
    %c0_i32_0 = arith.constant 0 : i32
    %c0_i32_1 = arith.constant 0 : i32
    return %c0_i32, %c0_i32_0 : i32, i32
  }
  func.func @transform_11(%arg0: i32) -> (i32, i32) {
    %c0_i32 = arith.constant 0 : i32
    %c0_i32_0 = arith.constant 0 : i32
    %c0_i32_1 = arith.constant 0 : i32
    return %c0_i32, %c0_i32_0 : i32, i32
  }
  func.func @transform_12(%arg0: i32) -> (i32, i32) {
    %c0_i32 = arith.constant 0 : i32
    %c0_i32_0 = arith.constant 0 : i32
    %c0_i32_1 = arith.constant 0 : i32
    return %c0_i32, %c0_i32_0 : i32, i32
  }
  func.func @transform_13(%arg0: i32) -> (i32, i32) {
    %c0_i32 = arith.constant 0 : i32
    %c0_i32_0 = arith.constant 0 : i32
    %c0_i32_1 = arith.constant 0 : i32
    return %c0_i32, %c0_i32_0 : i32, i32
  }
  func.func @transform_14(%arg0: i32) -> (i32, i32) {
    %c0_i32 = arith.constant 0 : i32
    %c0_i32_0 = arith.constant 0 : i32
    %c0_i32_1 = arith.constant 0 : i32
    return %c0_i32, %c0_i32_0 : i32, i32
  }
  func.func @transform_15(%arg0: i32) -> (i32, i32) {
    %c0_i32 = arith.constant 0 : i32
    %c0_i32_0 = arith.constant 0 : i32
    %c0_i32_1 = arith.constant 0 : i32
    return %c0_i32, %c0_i32_0 : i32, i32
  }
  func.func @transform_16(%arg0: i32) -> (i32, i32) {
    %c0_i32 = arith.constant 0 : i32
    %c0_i32_0 = arith.constant 0 : i32
    %c0_i32_1 = arith.constant 0 : i32
    return %c0_i32, %c0_i32_0 : i32, i32
  }
  func.func @transform_17(%arg0: i32) -> (i32, i32) {
    %c0_i32 = arith.constant 0 : i32
    %c0_i32_0 = arith.constant 0 : i32
    %c0_i32_1 = arith.constant 0 : i32
    return %c0_i32, %c0_i32_0 : i32, i32
  }
  func.func @transform_18(%arg0: i32) -> (i32, i32) {
    %c0_i32 = arith.constant 0 : i32
    %c0_i32_0 = arith.constant 0 : i32
    %c0_i32_1 = arith.constant 0 : i32
    return %c0_i32, %c0_i32_0 : i32, i32
  }
  func.func @transform_19(%arg0: i32) -> (i32, i32, i32) {
    %c0_i32 = arith.constant 0 : i32
    %c0_i32_0 = arith.constant 0 : i32
    %c0_i32_1 = arith.constant 0 : i32
    return %arg0, %c0_i32, %c0_i32_0 : i32, i32, i32
  }
  func.func @transform_20(%arg0: i32) -> (i32, i32, i32) {
    %c0_i32 = arith.constant 0 : i32
    %c0_i32_0 = arith.constant 0 : i32
    %c0_i32_1 = arith.constant 0 : i32
    return %arg0, %c0_i32, %c0_i32_0 : i32, i32, i32
  }
}

</mosaic_0001>

<llo_original>
// kernel: tpu_custom_call.1
$region0: #{tpu_custom_call.1}
  #allocation0 [shape = 'u32[]', space=smem, size = 0x4, offset = 0x4, fixed_abs, tag = 'smem constant byte address 0x4 - core index']
  #allocation1 [shape = 'u32[144,128]{1,0:T(1,128)}', space=vmem, size = 0x12000, scoped, tag = 'internal scratch']
  #allocation2 [shape = 'f32[8,32]{1,0:T(8,128)}', space=vmem, size = 0x1000, scoped, tag = 'scratch operand']
  #allocation3 [shape = 'f32[8,32]{1,0:T(8,128)}', space=vmem, size = 0x1000, scoped, tag = 'scratch operand']
  #allocation4 [shape = 'f32[1,1]{1,0:T(1,128)S(1)}', space=vmem, size = 0x200, scoped, tag = 'scoped memory for tpu_custom_call.1']
  %s0 = inlined_call_operand.vmem [shape: s32[8,1], index: 0, kind: input, shape index: {}]
  %s1 = inlined_call_operand.vmem [shape: f32[8,128,32], index: 1, kind: input, shape index: {}]
  %s2 = inlined_call_operand.vmem [shape: f32[8,128,128], index: 2, kind: input, shape index: {}]
  %s3 = inlined_call_operand.vmem [shape: f32[7,8,32], index: 3, kind: input, shape index: {}]
  %s4 = inlined_call_operand.hbm [shape: f32[8,32], index: 4, kind: input, shape index: {}]
  %s5 = inlined_call_operand.hbm [shape: f32[8,32], index: 5, kind: input, shape index: {}]
  %s6 = inlined_call_operand.vmem [shape: f32[32,32], index: 6, kind: input, shape index: {}]
  %s7 = inlined_call_operand.vmem [shape: f32[1,32], index: 7, kind: input, shape index: {}]
  %s8 = inlined_call_operand.vmem [shape: f32[1,32], index: 8, kind: input, shape index: {}]
  %s9 = inlined_call_operand.<no memory space> [shape: f32[1,1], index: 9, kind: input, shape index: {}]
  %s10 = inlined_call_operand.vmem [shape: f32[32,128], index: 10, kind: input, shape index: {}]
  %s11 = inlined_call_operand.vmem [shape: f32[1,128], index: 11, kind: input, shape index: {}]
  %s12 = inlined_call_operand.vmem [shape: f32[32,128], index: 12, kind: input, shape index: {}]
  %s13 = inlined_call_operand.vmem [shape: f32[128,128], index: 13, kind: input, shape index: {}]
  %s14 = inlined_call_operand.vmem [shape: f32[1,128], index: 14, kind: input, shape index: {}]
  %s15 = inlined_call_operand.vmem [shape: f32[32,128], index: 15, kind: input, shape index: {}]
  %s16 = inlined_call_operand.vmem [shape: f32[1,128], index: 16, kind: input, shape index: {}]
  %s17 = inlined_call_operand.hbm [shape: f32[32,128], index: 17, kind: input, shape index: {}]
  %s18 = inlined_call_operand.vmem [shape: f32[1,128], index: 18, kind: input, shape index: {}]
  %s19 = inlined_call_operand.hbm [shape: f32[7,8,128], index: 19, kind: output, shape index: {0}]
  %s20 = inlined_call_operand.hbm [shape: f32[7,8,128], index: 20, kind: output, shape index: {1}]
  %21 = xla_tuple %s19, %s20
  %s22 = sld [smem:[#allocation0]]
  $region133: #{tpu_custom_call.1} parent=0
    _
  %s24 = ssub.s32 1, %s22
  %s25 = scalar_select 0, %s24, %s22
  %v26 = vstv %s9
  %27 = vst [vmem:[#allocation4] sm:$0x1] %v26
  $region1: #{tpu_custom_call.1} parent=0
    #allocation5 [shape = 'u8[4096]{0}', space=vmem, size = 0x1000, scoped, tag = 'input window, operand 4, single buffered']
    #allocation6 [shape = 's32[2]{0}', space=sflag, size = 0x8, scoped, tag = 'scoped memory for tpu_custom_call.1']
    #allocation7 [shape = 's32[2]{0}', space=sflag, size = 0x8, scoped, tag = 'scoped memory for tpu_custom_call.1']
    #allocation8 [shape = 'u8[4096]{0}', space=vmem, size = 0x1000, scoped, tag = 'input window, operand 5, single buffered']
    #allocation9 [shape = 's32[1]{0}', space=sflag, size = 0x4, scoped, tag = 'scoped memory for tpu_custom_call.1']
    #allocation10 [shape = 'u8[16384]{0}', space=vmem, size = 0x4000, scoped, tag = 'input window, operand 17, single buffered']
    #allocation11 [shape = 'u8[8192]{0}', space=vmem, size = 0x2000, scoped, tag = 'output window, operand 0']
    #allocation12 [shape = 'u8[8192]{0}', space=vmem, size = 0x2000, scoped, tag = 'output window, operand 1']
    #allocation13 [shape = 's32[2]{0}', space=sflag, size = 0x8, scoped, tag = 'scoped memory for tpu_custom_call.1']
    %28 = vsyncpa [#allocation6], 0
    %29 = vsyncpa [#allocation9], 0
    %30 = vsyncpa [#allocation7], 0
    %s31 = scalar_lea.sflag [#allocation7], 1
    %32 = vsyncpa %s31, 0
    %33 = vsyncpa [#allocation13], 0
    %s34 = scalar_lea.sflag [#allocation13], 1
    %35 = vsyncpa %s34, 0
    loop: start=0, step=1, limit=9
    $region2: #{tpu_custom_call.1} parent=1 // loop_pre_header
      _
    $region3: #{tpu_custom_call.1} parent=1 // loop_header
      %s37 = sphi 0, %s41
      %p38 = scmp.ge.s32.totalorder %s37, 9
      %s45 = sphi 0, %s45
      %s47 = sphi 0, %s45
      %s48 = sphi 0, %s47
      %s62 = sphi 0, %s48
      %s66 = sphi 0, %s66
      %s68 = sphi 0, %s66
      %s69 = sphi 0, %s68
      %s83 = sphi 0, %s69
      %s87 = sphi 0, %s87
      %s89 = sphi 0, %s87
      %s90 = sphi 0, %s89
      %s104 = sphi 0, %s90
      %s110 = sphi 0, %s112
      %s113 = sphi 0, %s110
      %s114 = sphi 0, %s113
      %s130 = sphi 0, %s114
      %s134 = sphi 0, %s134
      %s136 = sphi 0, %s134
      %s137 = sphi 0, %s136
      %s151 = sphi 0, %s137
      %s155 = sphi 0, %s155
      %s157 = sphi 0, %s155
      %s158 = sphi 0, %s157
      %s172 = sphi 0, %s158
      %s176 = sphi 0, %s176
      %s178 = sphi 0, %s176
      %s179 = sphi 0, %s178
      %s193 = sphi 0, %s179
      %s197 = sphi 0, %s197
      %s199 = sphi 0, %s197
      %s200 = sphi 0, %s199
      %s214 = sphi 0, %s200
      %s218 = sphi 0, %s218
      %s220 = sphi 0, %s218
      %s221 = sphi 0, %s220
      %s235 = sphi 0, %s221
      %s239 = sphi 0, %s239
      %s241 = sphi 0, %s239
      %s242 = sphi 0, %s241
      %s256 = sphi 0, %s242
      %s260 = sphi 0, %s260
      %s262 = sphi 0, %s260
      %s263 = sphi 0, %s262
      %s277 = sphi 0, %s263
      %s281 = sphi 0, %s281
      %s283 = sphi 0, %s281
      %s284 = sphi 0, %s283
      %s298 = sphi 0, %s284
      %s302 = sphi 0, %s302
      %s304 = sphi 0, %s302
      %s305 = sphi 0, %s304
      %s319 = sphi 0, %s305
      %s323 = sphi 0, %s323
      %s325 = sphi 0, %s323
      %s326 = sphi 0, %s325
      %s340 = sphi 0, %s326
      %s344 = sphi 0, %s344
      %s346 = sphi 0, %s344
      %s347 = sphi 0, %s346
      %s361 = sphi 0, %s347
      %s365 = sphi 0, %s365
      %s367 = sphi 0, %s365
      %s368 = sphi 0, %s367
      %s382 = sphi 0, %s368
      %s386 = sphi 0, %s386
      %s388 = sphi 0, %s386
      %s389 = sphi 0, %s388
      %s403 = sphi 0, %s389
      %s407 = sphi 0, %s407
      %s409 = sphi 0, %s407
      %s410 = sphi 0, %s409
      %s424 = sphi 0, %s410
      %s428 = sphi 0, %s428
      %s430 = sphi 0, %s428
      %s431 = sphi 0, %s430
      %s445 = sphi 0, %s431
      %s451 = sphi 0, %s453
      %s454 = sphi 0, %s451
      %s455 = sphi 0, %s454
      %s471 = sphi 0, %s455
      %s477 = sphi 0, %s479
      %s480 = sphi 0, %s477
      %s481 = sphi 0, %s480
      %s497 = sphi 0, %s481
    $region4: #{tpu_custom_call.1} parent=1 // loop_header_branch
      %40 = sbr.rel (%p38) target = $region8
    $region5: #{tpu_custom_call.1} parent=1 // loop_body
      %s42 = ssub.s32 %s37, 1
      %s43 = ssub.s32 %s37, 2
      %s44 = sadd.s32 %s37, 1
      %s46 = sadd.s32 %s45, 1
      %p49 = scmp.eq.s32.totalorder %s37, 6
      %p50 = scmp.ne.s32.totalorder %s45, %s47
      %p51 = scmp.eq.s32.totalorder %s37, 0
      %p52 = por %p50, %p51
      %p53 = scmp.ne.s32.totalorder %s45, %s47
      %p54 = scmp.eq.s32.totalorder %s42, 6
      %p55 = por %p53, %p54
      %p56 = scmp.ne.s32.totalorder %s47, %s48
      %p57 = scmp.eq.s32.totalorder %s42, 0
      %p58 = por %p56, %p57
      %p59 = scmp.ne.s32.totalorder %s47, %s48
      %p60 = scmp.eq.s32.totalorder %s43, 6
      %p61 = por %p59, %p60
      %p63 = scmp.ne.s32.totalorder %s48, %s62
      %p64 = scmp.eq.s32.totalorder %s43, 0
      %p65 = por %p63, %p64
      %s67 = sadd.s32 %s66, 1
      %p70 = scmp.eq.s32.totalorder %s37, 6
      %p71 = scmp.ne.s32.totalorder %s66, %s68
      %p72 = scmp.eq.s32.totalorder %s37, 0
      %p73 = por %p71, %p72
      %p74 = scmp.ne.s32.totalorder %s66, %s68
      %p75 = scmp.eq.s32.totalorder %s42, 6
      %p76 = por %p74, %p75
      %p77 = scmp.ne.s32.totalorder %s68, %s69
      %p78 = scmp.eq.s32.totalorder %s42, 0
      %p79 = por %p77, %p78
      %p80 = scmp.ne.s32.totalorder %s68, %s69
      %p81 = scmp.eq.s32.totalorder %s43, 6
      %p82 = por %p80, %p81
      %p84 = scmp.ne.s32.totalorder %s69, %s83
      %p85 = scmp.eq.s32.totalorder %s43, 0
      %p86 = por %p84, %p85
      %s88 = sadd.s32 %s87, 1
      %p91 = scmp.eq.s32.totalorder %s37, 6
      %p92 = scmp.ne.s32.totalorder %s87, %s89
      %p93 = scmp.eq.s32.totalorder %s37, 0
      %p94 = por %p92, %p93
      %p95 = scmp.ne.s32.totalorder %s87, %s89
      %p96 = scmp.eq.s32.totalorder %s42, 6
      %p97 = por %p95, %p96
      %p98 = scmp.ne.s32.totalorder %s89, %s90
      %p99 = scmp.eq.s32.totalorder %s42, 0
      %p100 = por %p98, %p99
      %p101 = scmp.ne.s32.totalorder %s89, %s90
      %p102 = scmp.eq.s32.totalorder %s43, 6
      %p103 = por %p101, %p102
      %p105 = scmp.ne.s32.totalorder %s90, %s104
      %p106 = scmp.eq.s32.totalorder %s43, 0
      %p107 = por %p105, %p106
      %s108 = ssub.s32 %s37, %s44
      %p109 = scmp.eq.s32.totalorder %s108, 0
      %s111 = sadd.s32 %s110, 1
      %s112 = scalar_select %p109, %s110, %s111
      %p115 = pneg %p109
      %p116 = scmp.eq.s32.totalorder %s37, 6
      %p117 = por %p115, %p116
      %p118 = scmp.ne.s32.totalorder %s110, %s113
      %p119 = scmp.eq.s32.totalorder %s37, 0
      %p120 = por %p118, %p119
      %p121 = scmp.ne.s32.totalorder %s110, %s113
      %p122 = scmp.eq.s32.totalorder %s42, 6
      %p123 = por %p121, %p122
      %p124 = scmp.ne.s32.totalorder %s113, %s114
      %p125 = scmp.eq.s32.totalorder %s42, 0
      %p126 = por %p124, %p125
      %p127 = scmp.ne.s32.totalorder %s113, %s114
      %p128 = scmp.eq.s32.totalorder %s43, 6
      %p129 = por %p127, %p128
      %p131 = scmp.ne.s32.totalorder %s114, %s130
      %p132 = scmp.eq.s32.totalorder %s43, 0
      %p133 = por %p131, %p132
      %s135 = sadd.s32 %s134, 1
      %p138 = scmp.eq.s32.totalorder %s37, 6
      %p139 = scmp.ne.s32.totalorder %s134, %s136
      %p140 = scmp.eq.s32.totalorder %s37, 0
      %p141 = por %p139, %p140
      %p142 = scmp.ne.s32.totalorder %s134, %s136
      %p143 = scmp.eq.s32.totalorder %s42, 6
      %p144 = por %p142, %p143
      %p145 = scmp.ne.s32.totalorder %s136, %s137
      %p146 = scmp.eq.s32.totalorder %s42, 0
      %p147 = por %p145, %p146
      %p148 = scmp.ne.s32.totalorder %s136, %s137
      %p149 = scmp.eq.s32.totalorder %s43, 6
      %p150 = por %p148, %p149
      %p152 = scmp.ne.s32.totalorder %s137, %s151
      %p153 = scmp.eq.s32.totalorder %s43, 0
      %p154 = por %p152, %p153
      %s156 = sadd.s32 %s155, 1
      %p159 = scmp.eq.s32.totalorder %s37, 6
      %p160 = scmp.ne.s32.totalorder %s155, %s157
      %p161 = scmp.eq.s32.totalorder %s37, 0
      %p162 = por %p160, %p161
      %p163 = scmp.ne.s32.totalorder %s155, %s157
      %p164 = scmp.eq.s32.totalorder %s42, 6
      %p165 = por %p163, %p164
      %p166 = scmp.ne.s32.totalorder %s157, %s158
      %p167 = scmp.eq.s32.totalorder %s42, 0
      %p168 = por %p166, %p167
      %p169 = scmp.ne.s32.totalorder %s157, %s158
      %p170 = scmp.eq.s32.totalorder %s43, 6
      %p171 = por %p169, %p170
      %p173 = scmp.ne.s32.totalorder %s158, %s172
      %p174 = scmp.eq.s32.totalorder %s43, 0
      %p175 = por %p173, %p174
      %s177 = sadd.s32 %s176, 1
      %p180 = scmp.eq.s32.totalorder %s37, 6
      %p181 = scmp.ne.s32.totalorder %s176, %s178
      %p182 = scmp.eq.s32.totalorder %s37, 0
      %p183 = por %p181, %p182
      %p184 = scmp.ne.s32.totalorder %s176, %s178
      %p185 = scmp.eq.s32.totalorder %s42, 6
      %p186 = por %p184, %p185
      %p187 = scmp.ne.s32.totalorder %s178, %s179
      %p188 = scmp.eq.s32.totalorder %s42, 0
      %p189 = por %p187, %p188
      %p190 = scmp.ne.s32.totalorder %s178, %s179
      %p191 = scmp.eq.s32.totalorder %s43, 6
      %p192 = por %p190, %p191
      %p194 = scmp.ne.s32.totalorder %s179, %s193
      %p195 = scmp.eq.s32.totalorder %s43, 0
      %p196 = por %p194, %p195
      %s198 = sadd.s32 %s197, 1
      %p201 = scmp.eq.s32.totalorder %s37, 6
      %p202 = scmp.ne.s32.totalorder %s197, %s199
      %p203 = scmp.eq.s32.totalorder %s37, 0
      %p204 = por %p202, %p203
      %p205 = scmp.ne.s32.totalorder %s197, %s199
      %p206 = scmp.eq.s32.totalorder %s42, 6
      %p207 = por %p205, %p206
      %p208 = scmp.ne.s32.totalorder %s199, %s200
      %p209 = scmp.eq.s32.totalorder %s42, 0
      %p210 = por %p208, %p209
      %p211 = scmp.ne.s32.totalorder %s199, %s200
      %p212 = scmp.eq.s32.totalorder %s43, 6
      %p213 = por %p211, %p212
      %p215 = scmp.ne.s32.totalorder %s200, %s214
      %p216 = scmp.eq.s32.totalorder %s43, 0
      %p217 = por %p215, %p216
      %s219 = sadd.s32 %s218, 1
      %p222 = scmp.eq.s32.totalorder %s37, 6
      %p223 = scmp.ne.s32.totalorder %s218, %s220
      %p224 = scmp.eq.s32.totalorder %s37, 0
      %p225 = por %p223, %p224
      %p226 = scmp.ne.s32.totalorder %s218, %s220
      %p227 = scmp.eq.s32.totalorder %s42, 6
      %p228 = por %p226, %p227
      %p229 = scmp.ne.s32.totalorder %s220, %s221
      %p230 = scmp.eq.s32.totalorder %s42, 0
      %p231 = por %p229, %p230
      %p232 = scmp.ne.s32.totalorder %s220, %s221
      %p233 = scmp.eq.s32.totalorder %s43, 6
      %p234 = por %p232, %p233
      %p236 = scmp.ne.s32.totalorder %s221, %s235
      %p237 = scmp.eq.s32.totalorder %s43, 0
      %p238 = por %p236, %p237
      %s240 = sadd.s32 %s239, 1
      %p243 = scmp.eq.s32.totalorder %s37, 6
      %p244 = scmp.ne.s32.totalorder %s239, %s241
      %p245 = scmp.eq.s32.totalorder %s37, 0
      %p246 = por %p244, %p245
      %p247 = scmp.ne.s32.totalorder %s239, %s241
      %p248 = scmp.eq.s32.totalorder %s42, 6
      %p249 = por %p247, %p248
      %p250 = scmp.ne.s32.totalorder %s241, %s242
      %p251 = scmp.eq.s32.totalorder %s42, 0
      %p252 = por %p250, %p251
      %p253 = scmp.ne.s32.totalorder %s241, %s242
      %p254 = scmp.eq.s32.totalorder %s43, 6
      %p255 = por %p253, %p254
      %p257 = scmp.ne.s32.totalorder %s242, %s256
      %p258 = scmp.eq.s32.totalorder %s43, 0
      %p259 = por %p257, %p258
      %s261 = sadd.s32 %s260, 1
      %p264 = scmp.eq.s32.totalorder %s37, 6
      %p265 = scmp.ne.s32.totalorder %s260, %s262
      %p266 = scmp.eq.s32.totalorder %s37, 0
      %p267 = por %p265, %p266
      %p268 = scmp.ne.s32.totalorder %s260, %s262
      %p269 = scmp.eq.s32.totalorder %s42, 6
      %p270 = por %p268, %p269
      %p271 = scmp.ne.s32.totalorder %s262, %s263
      %p272 = scmp.eq.s32.totalorder %s42, 0
      %p273 = por %p271, %p272
      %p274 = scmp.ne.s32.totalorder %s262, %s263
      %p275 = scmp.eq.s32.totalorder %s43, 6
      %p276 = por %p274, %p275
      %p278 = scmp.ne.s32.totalorder %s263, %s277
      %p279 = scmp.eq.s32.totalorder %s43, 0
      %p280 = por %p278, %p279
      %s282 = sadd.s32 %s281, 1
      %p285 = scmp.eq.s32.totalorder %s37, 6
      %p286 = scmp.ne.s32.totalorder %s281, %s283
      %p287 = scmp.eq.s32.totalorder %s37, 0
      %p288 = por %p286, %p287
      %p289 = scmp.ne.s32.totalorder %s281, %s283
      %p290 = scmp.eq.s32.totalorder %s42, 6
      %p291 = por %p289, %p290
      %p292 = scmp.ne.s32.totalorder %s283, %s284
      %p293 = scmp.eq.s32.totalorder %s42, 0
      %p294 = por %p292, %p293
      %p295 = scmp.ne.s32.totalorder %s283, %s284
      %p296 = scmp.eq.s32.totalorder %s43, 6
      %p297 = por %p295, %p296
      %p299 = scmp.ne.s32.totalorder %s284, %s298
      %p300 = scmp.eq.s32.totalorder %s43, 0
      %p301 = por %p299, %p300
      %s303 = sadd.s32 %s302, 1
      %p306 = scmp.eq.s32.totalorder %s37, 6
      %p307 = scmp.ne.s32.totalorder %s302, %s304
      %p308 = scmp.eq.s32.totalorder %s37, 0
      %p309 = por %p307, %p308
      %p310 = scmp.ne.s32.totalorder %s302, %s304
      %p311 = scmp.eq.s32.totalorder %s42, 6
      %p312 = por %p310, %p311
      %p313 = scmp.ne.s32.totalorder %s304, %s305
      %p314 = scmp.eq.s32.totalorder %s42, 0
      %p315 = por %p313, %p314
      %p316 = scmp.ne.s32.totalorder %s304, %s305
      %p317 = scmp.eq.s32.totalorder %s43, 6
      %p318 = por %p316, %p317
      %p320 = scmp.ne.s32.totalorder %s305, %s319
      %p321 = scmp.eq.s32.totalorder %s43, 0
      %p322 = por %p320, %p321
      %s324 = sadd.s32 %s323, 1
      %p327 = scmp.eq.s32.totalorder %s37, 6
      %p328 = scmp.ne.s32.totalorder %s323, %s325
      %p329 = scmp.eq.s32.totalorder %s37, 0
      %p330 = por %p328, %p329
      %p331 = scmp.ne.s32.totalorder %s323, %s325
      %p332 = scmp.eq.s32.totalorder %s42, 6
      %p333 = por %p331, %p332
      %p334 = scmp.ne.s32.totalorder %s325, %s326
      %p335 = scmp.eq.s32.totalorder %s42, 0
      %p336 = por %p334, %p335
      %p337 = scmp.ne.s32.totalorder %s325, %s326
      %p338 = scmp.eq.s32.totalorder %s43, 6
      %p339 = por %p337, %p338
      %p341 = scmp.ne.s32.totalorder %s326, %s340
      %p342 = scmp.eq.s32.totalorder %s43, 0
      %p343 = por %p341, %p342
      %s345 = sadd.s32 %s344, 1
      %p348 = scmp.eq.s32.totalorder %s37, 6
      %p349 = scmp.ne.s32.totalorder %s344, %s346
      %p350 = scmp.eq.s32.totalorder %s37, 0
      %p351 = por %p349, %p350
      %p352 = scmp.ne.s32.totalorder %s344, %s346
      %p353 = scmp.eq.s32.totalorder %s42, 6
      %p354 = por %p352, %p353
      %p355 = scmp.ne.s32.totalorder %s346, %s347
      %p356 = scmp.eq.s32.totalorder %s42, 0
      %p357 = por %p355, %p356
      %p358 = scmp.ne.s32.totalorder %s346, %s347
      %p359 = scmp.eq.s32.totalorder %s43, 6
      %p360 = por %p358, %p359
      %p362 = scmp.ne.s32.totalorder %s347, %s361
      %p363 = scmp.eq.s32.totalorder %s43, 0
      %p364 = por %p362, %p363
      %s366 = sadd.s32 %s365, 1
      %p369 = scmp.eq.s32.totalorder %s37, 6
      %p370 = scmp.ne.s32.totalorder %s365, %s367
      %p371 = scmp.eq.s32.totalorder %s37, 0
      %p372 = por %p370, %p371
      %p373 = scmp.ne.s32.totalorder %s365, %s367
      %p374 = scmp.eq.s32.totalorder %s42, 6
      %p375 = por %p373, %p374
      %p376 = scmp.ne.s32.totalorder %s367, %s368
      %p377 = scmp.eq.s32.totalorder %s42, 0
      %p378 = por %p376, %p377
      %p379 = scmp.ne.s32.totalorder %s367, %s368
      %p380 = scmp.eq.s32.totalorder %s43, 6
      %p381 = por %p379, %p380
      %p383 = scmp.ne.s32.totalorder %s368, %s382
      %p384 = scmp.eq.s32.totalorder %s43, 0
      %p385 = por %p383, %p384
      %s387 = sadd.s32 %s386, 1
      %p390 = scmp.eq.s32.totalorder %s37, 6
      %p391 = scmp.ne.s32.totalorder %s386, %s388
      %p392 = scmp.eq.s32.totalorder %s37, 0
      %p393 = por %p391, %p392
      %p394 = scmp.ne.s32.totalorder %s386, %s388
      %p395 = scmp.eq.s32.totalorder %s42, 6
      %p396 = por %p394, %p395
      %p397 = scmp.ne.s32.totalorder %s388, %s389
      %p398 = scmp.eq.s32.totalorder %s42, 0
      %p399 = por %p397, %p398
      %p400 = scmp.ne.s32.totalorder %s388, %s389
      %p401 = scmp.eq.s32.totalorder %s43, 6
      %p402 = por %p400, %p401
      %p404 = scmp.ne.s32.totalorder %s389, %s403
      %p405 = scmp.eq.s32.totalorder %s43, 0
      %p406 = por %p404, %p405
      %s408 = sadd.s32 %s407, 1
      %p411 = scmp.eq.s32.totalorder %s37, 6
      %p412 = scmp.ne.s32.totalorder %s407, %s409
      %p413 = scmp.eq.s32.totalorder %s37, 0
      %p414 = por %p412, %p413
      %p415 = scmp.ne.s32.totalorder %s407, %s409
      %p416 = scmp.eq.s32.totalorder %s42, 6
      %p417 = por %p415, %p416
      %p418 = scmp.ne.s32.totalorder %s409, %s410
      %p419 = scmp.eq.s32.totalorder %s42, 0
      %p420 = por %p418, %p419
      %p421 = scmp.ne.s32.totalorder %s409, %s410
      %p422 = scmp.eq.s32.totalorder %s43, 6
      %p423 = por %p421, %p422
      %p425 = scmp.ne.s32.totalorder %s410, %s424
      %p426 = scmp.eq.s32.totalorder %s43, 0
      %p427 = por %p425, %p426
      %s429 = sadd.s32 %s428, 1
      %p432 = scmp.eq.s32.totalorder %s37, 6
      %p433 = scmp.ne.s32.totalorder %s428, %s430
      %p434 = scmp.eq.s32.totalorder %s37, 0
      %p435 = por %p433, %p434
      %p436 = scmp.ne.s32.totalorder %s428, %s430
      %p437 = scmp.eq.s32.totalorder %s42, 6
      %p438 = por %p436, %p437
      %p439 = scmp.ne.s32.totalorder %s430, %s431
      %p440 = scmp.eq.s32.totalorder %s42, 0
      %p441 = por %p439, %p440
      %p442 = scmp.ne.s32.totalorder %s430, %s431
      %p443 = scmp.eq.s32.totalorder %s43, 6
      %p444 = por %p442, %p443
      %p446 = scmp.ne.s32.totalorder %s431, %s445
      %p447 = scmp.eq.s32.totalorder %s43, 0
      %p448 = por %p446, %p447
      %s449 = ssub.s32 %s37, %s44
      %p450 = scmp.eq.s32.totalorder %s449, 0
      %s452 = sadd.s32 %s451, 1
      %s453 = scalar_select %p450, %s451, %s452
      %p456 = pneg %p450
      %p457 = scmp.eq.s32.totalorder %s37, 6
      %p458 = por %p456, %p457
      %p459 = scmp.ne.s32.totalorder %s451, %s454
      %p460 = scmp.eq.s32.totalorder %s37, 0
      %p461 = por %p459, %p460
      %p462 = scmp.ne.s32.totalorder %s451, %s454
      %p463 = scmp.eq.s32.totalorder %s42, 6
      %p464 = por %p462, %p463
      %p465 = scmp.ne.s32.totalorder %s454, %s455
      %p466 = scmp.eq.s32.totalorder %s42, 0
      %p467 = por %p465, %p466
      %p468 = scmp.ne.s32.totalorder %s454, %s455
      %p469 = scmp.eq.s32.totalorder %s43, 6
      %p470 = por %p468, %p469
      %p472 = scmp.ne.s32.totalorder %s455, %s471
      %p473 = scmp.eq.s32.totalorder %s43, 0
      %p474 = por %p472, %p473
      %s475 = ssub.s32 %s37, %s44
      %p476 = scmp.eq.s32.totalorder %s475, 0
      %s478 = sadd.s32 %s477, 1
      %s479 = scalar_select %p476, %s477, %s478
      %p482 = pneg %p476
      %p483 = scmp.eq.s32.totalorder %s37, 6
      %p484 = por %p482, %p483
      %p485 = scmp.ne.s32.totalorder %s477, %s480
      %p486 = scmp.eq.s32.totalorder %s37, 0
      %p487 = por %p485, %p486
      %p488 = scmp.ne.s32.totalorder %s477, %s480
      %p489 = scmp.eq.s32.totalorder %s42, 6
      %p490 = por %p488, %p489
      %p491 = scmp.ne.s32.totalorder %s480, %s481
      %p492 = scmp.eq.s32.totalorder %s42, 0
      %p493 = por %p491, %p492
      %p494 = scmp.ne.s32.totalorder %s480, %s481
      %p495 = scmp.eq.s32.totalorder %s43, 6
      %p496 = por %p494, %p495
      %p498 = scmp.ne.s32.totalorder %s481, %s497
      %p499 = scmp.eq.s32.totalorder %s43, 0
      %p500 = por %p498, %p499
      %p501 = scmp.le.s32.totalorder 1, %s37
      %p502 = scmp.lt.s32.totalorder %s37, 8
      %p503 = pnand %p501, %p502
      %p504 = pneg %p503
      // Predicated region
      $region9: #{tpu_custom_call.1} parent=5 // pred_check
        _
      $region10: #{tpu_custom_call.1} parent=5 // pred_check_branch
        %506 = sbr.rel (%p503) target = $region12
      $region11: #{tpu_custom_call.1} parent=5 // pred_region
        %s507 = ssub.s32 %s37, 1
        // Predicated region
        $region13: #{tpu_custom_call.1} parent=11 // pred_check
          %p508 = pneg %p58
        $region14: #{tpu_custom_call.1} parent=11 // pred_check_branch
          %510 = sbr.rel (%p508) target = $region16
        $region15: #{tpu_custom_call.1} parent=11 // pred_region
          _
        $region16: #{tpu_custom_call.1} parent=11 // pred_fallthru
          _
        // Predicated region
        $region17: #{tpu_custom_call.1} parent=11 // pred_check
          %p511 = pneg %p79
        $region18: #{tpu_custom_call.1} parent=11 // pred_check_branch
          %513 = sbr.rel (%p511) target = $region20
        $region19: #{tpu_custom_call.1} parent=11 // pred_region
          _
        $region20: #{tpu_custom_call.1} parent=11 // pred_fallthru
          _
        // Predicated region
        $region21: #{tpu_custom_call.1} parent=11 // pred_check
          %p514 = pneg %p100
        $region22: #{tpu_custom_call.1} parent=11 // pred_check_branch
          %516 = sbr.rel (%p514) target = $region24
        $region23: #{tpu_custom_call.1} parent=11 // pred_region
          _
        $region24: #{tpu_custom_call.1} parent=11 // pred_fallthru
          _
        // Predicated region
        $region25: #{tpu_custom_call.1} parent=11 // pred_check
          %p517 = pneg %p147
        $region26: #{tpu_custom_call.1} parent=11 // pred_check_branch
          %519 = sbr.rel (%p517) target = $region28
        $region27: #{tpu_custom_call.1} parent=11 // pred_region
          %s521 = ssub.s32 128, 128
          %522 = vsyncadd [#allocation6], %s521
          %s524 = sshll.u32 [#allocation5], 4
          %s525 = int_to_ptr.vmem [resolvable:$true] %s524
          %527 = dma.hbm_to_vmem [thread:$0]  %s4, 128, %s525, [#allocation6]
        $region28: #{tpu_custom_call.1} parent=11 // pred_fallthru
          _
        // Predicated region
        $region29: #{tpu_custom_call.1} parent=11 // pred_check
          %p528 = pneg %p168
        $region30: #{tpu_custom_call.1} parent=11 // pred_check_branch
          %530 = sbr.rel (%p528) target = $region32
        $region31: #{tpu_custom_call.1} parent=11 // pred_region
          %s532 = ssub.s32 128, 128
          %533 = vsyncadd [#allocation9], %s532
          %s535 = sshll.u32 [#allocation8], 4
          %s536 = int_to_ptr.vmem [resolvable:$true] %s535
          %538 = dma.hbm_to_vmem [thread:$0]  %s5, 128, %s536, [#allocation9]
        $region32: #{tpu_custom_call.1} parent=11 // pred_fallthru
          _
        // Predicated region
        $region33: #{tpu_custom_call.1} parent=11 // pred_check
          %p539 = pneg %p189
        $region34: #{tpu_custom_call.1} parent=11 // pred_check_branch
          %541 = sbr.rel (%p539) target = $region36
        $region35: #{tpu_custom_call.1} parent=11 // pred_region
          _
        $region36: #{tpu_custom_call.1} parent=11 // pred_fallthru
          _
        // Predicated region
        $region37: #{tpu_custom_call.1} parent=11 // pred_check
          %p542 = pneg %p210
        $region38: #{tpu_custom_call.1} parent=11 // pred_check_branch
          %544 = sbr.rel (%p542) target = $region40
        $region39: #{tpu_custom_call.1} parent=11 // pred_region
          _
        $region40: #{tpu_custom_call.1} parent=11 // pred_fallthru
          _
        // Predicated region
        $region41: #{tpu_custom_call.1} parent=11 // pred_check
          %p545 = pneg %p231
        $region42: #{tpu_custom_call.1} parent=11 // pred_check_branch
          %547 = sbr.rel (%p545) target = $region44
        $region43: #{tpu_custom_call.1} parent=11 // pred_region
          _
        $region44: #{tpu_custom_call.1} parent=11 // pred_fallthru
          _
        // Predicated region
        $region45: #{tpu_custom_call.1} parent=11 // pred_check
          %p548 = pneg %p252
        $region46: #{tpu_custom_call.1} parent=11 // pred_check_branch
          %550 = sbr.rel (%p548) target = $region48
        $region47: #{tpu_custom_call.1} parent=11 // pred_region
          _
        $region48: #{tpu_custom_call.1} parent=11 // pred_fallthru
          _
        // Predicated region
        $region49: #{tpu_custom_call.1} parent=11 // pred_check
          %p551 = pneg %p273
        $region50: #{tpu_custom_call.1} parent=11 // pred_check_branch
          %553 = sbr.rel (%p551) target = $region52
        $region51: #{tpu_custom_call.1} parent=11 // pred_region
          _
        $region52: #{tpu_custom_call.1} parent=11 // pred_fallthru
          _
        // Predicated region
        $region53: #{tpu_custom_call.1} parent=11 // pred_check
          %p554 = pneg %p294
        $region54: #{tpu_custom_call.1} parent=11 // pred_check_branch
          %556 = sbr.rel (%p554) target = $region56
        $region55: #{tpu_custom_call.1} parent=11 // pred_region
          _
        $region56: #{tpu_custom_call.1} parent=11 // pred_fallthru
          _
        // Predicated region
        $region57: #{tpu_custom_call.1} parent=11 // pred_check
          %p557 = pneg %p315
        $region58: #{tpu_custom_call.1} parent=11 // pred_check_branch
          %559 = sbr.rel (%p557) target = $region60
        $region59: #{tpu_custom_call.1} parent=11 // pred_region
          _
        $region60: #{tpu_custom_call.1} parent=11 // pred_fallthru
          _
        // Predicated region
        $region61: #{tpu_custom_call.1} parent=11 // pred_check
          %p560 = pneg %p336
        $region62: #{tpu_custom_call.1} parent=11 // pred_check_branch
          %562 = sbr.rel (%p560) target = $region64
        $region63: #{tpu_custom_call.1} parent=11 // pred_region
          _
        $region64: #{tpu_custom_call.1} parent=11 // pred_fallthru
          _
        // Predicated region
        $region65: #{tpu_custom_call.1} parent=11 // pred_check
          %p563 = pneg %p357
        $region66: #{tpu_custom_call.1} parent=11 // pred_check_branch
          %565 = sbr.rel (%p563) target = $region68
        $region67: #{tpu_custom_call.1} parent=11 // pred_region
          _
        $region68: #{tpu_custom_call.1} parent=11 // pred_fallthru
          _
        // Predicated region
        $region69: #{tpu_custom_call.1} parent=11 // pred_check
          %p566 = pneg %p378
        $region70: #{tpu_custom_call.1} parent=11 // pred_check_branch
          %568 = sbr.rel (%p566) target = $region72
        $region71: #{tpu_custom_call.1} parent=11 // pred_region
          _
        $region72: #{tpu_custom_call.1} parent=11 // pred_fallthru
          _
        // Predicated region
        $region73: #{tpu_custom_call.1} parent=11 // pred_check
          %p569 = pneg %p399
        $region74: #{tpu_custom_call.1} parent=11 // pred_check_branch
          %571 = sbr.rel (%p569) target = $region76
        $region75: #{tpu_custom_call.1} parent=11 // pred_region
          _
        $region76: #{tpu_custom_call.1} parent=11 // pred_fallthru
          _
        // Predicated region
        $region77: #{tpu_custom_call.1} parent=11 // pred_check
          %p572 = pneg %p420
        $region78: #{tpu_custom_call.1} parent=11 // pred_check_branch
          %574 = sbr.rel (%p572) target = $region80
        $region79: #{tpu_custom_call.1} parent=11 // pred_region
          %s576 = ssub.s32 512, 512
          %577 = vsyncadd [#allocation9], %s576
          %s578 = sshll.u32 [#allocation10], 4
          %s579 = int_to_ptr.vmem [resolvable:$true] %s578
          %584 = dma.hbm_to_vmem [thread:$0]  %s17, 512, %s579, [#allocation9], 128, 128, 8
        $region80: #{tpu_custom_call.1} parent=11 // pred_fallthru
          _
        // Predicated region
        $region81: #{tpu_custom_call.1} parent=11 // pred_check
          %p585 = pneg %p441
        $region82: #{tpu_custom_call.1} parent=11 // pred_check_branch
          %587 = sbr.rel (%p585) target = $region84
        $region83: #{tpu_custom_call.1} parent=11 // pred_region
          _
        $region84: #{tpu_custom_call.1} parent=11 // pred_fallthru
          _
      $region12: #{tpu_custom_call.1} parent=5 // pred_fallthru
        _
      %p588 = scmp.lt.s32.totalorder %s37, 7
      // Predicated region
      $region85: #{tpu_custom_call.1} parent=5 // pred_check
        %p589 = pneg %p588
      $region86: #{tpu_custom_call.1} parent=5 // pred_check_branch
        %591 = sbr.rel (%p589) target = $region88
      $region87: #{tpu_custom_call.1} parent=5 // pred_region
        // Predicated region
        $region89: #{tpu_custom_call.1} parent=87 // pred_check
          %p592 = pneg %p120
        $region90: #{tpu_custom_call.1} parent=87 // pred_check_branch
          %594 = sbr.rel (%p592) target = $region92
        $region91: #{tpu_custom_call.1} parent=87 // pred_region
          %p595 = scmp.lt.s32.totalorder %s37, 6
          %s596 = scalar_select %p595, %s37, 6
          %s597 = smul.addr %s596, 8
          %s598 = scalar_lea.vmem %s3, %s597
        $region92: #{tpu_custom_call.1} parent=87 // pred_fallthru
          _
      $region88: #{tpu_custom_call.1} parent=5 // pred_fallthru
        _
      %p599 = scmp.le.s32.totalorder 1, %s37
      %p600 = scmp.lt.s32.totalorder %s37, 8
      %p601 = pnand %p599, %p600
      %p602 = pneg %p601
      // Predicated region
      $region93: #{tpu_custom_call.1} parent=5 // pred_check
        _
      $region94: #{tpu_custom_call.1} parent=5 // pred_check_branch
        %604 = sbr.rel (%p601) target = $region96
      $region95: #{tpu_custom_call.1} parent=5 // pred_region
        %s605 = ssub.s32 %s37, 1
        // Predicated region
        $region97: #{tpu_custom_call.1} parent=95 // pred_check
          %p606 = pneg %p147
        $region98: #{tpu_custom_call.1} parent=95 // pred_check_branch
          %608 = sbr.rel (%p606) target = $region100
        $region99: #{tpu_custom_call.1} parent=95 // pred_region
          %609 = dma.done [#allocation6], 128
        $region100: #{tpu_custom_call.1} parent=95 // pred_fallthru
          _
        // Predicated region
        $region101: #{tpu_custom_call.1} parent=95 // pred_check
          %p610 = pneg %p168
        $region102: #{tpu_custom_call.1} parent=95 // pred_check_branch
          %612 = sbr.rel (%p610) target = $region104
        $region103: #{tpu_custom_call.1} parent=95 // pred_region
          %613 = dma.done [#allocation9], 128
        $region104: #{tpu_custom_call.1} parent=95 // pred_fallthru
          _
        // Predicated region
        $region105: #{tpu_custom_call.1} parent=95 // pred_check
          %p614 = pneg %p420
        $region106: #{tpu_custom_call.1} parent=95 // pred_check_branch
          %616 = sbr.rel (%p614) target = $region108
        $region107: #{tpu_custom_call.1} parent=95 // pred_region
          %617 = dma.done [#allocation9], 512
        $region108: #{tpu_custom_call.1} parent=95 // pred_fallthru
          _
        %p618 = pneg %p58
        %p619 = pneg %p55
        %p620 = pneg %p79
        %p621 = pneg %p76
        %p622 = pneg %p100
        %p623 = pneg %p97
        %p624 = scmp.lt.s32.totalorder %s42, 6
        %s625 = scalar_select %p624, %s42, 6
        %s626 = smul.addr %s625, 8
        %s627 = scalar_lea.vmem %s3, %s626
        %p628 = pneg %p126
        %p629 = pneg %p123
        %p630 = pneg %p147
        %p631 = pneg %p144
        %p632 = pneg %p168
        %p633 = pneg %p165
        %p634 = pneg %p189
        %p635 = pneg %p186
        %p636 = pneg %p210
        %p637 = pneg %p207
        %p638 = pneg %p231
        %p639 = pneg %p228
        %p640 = pneg %p252
        %p641 = pneg %p249
        %p642 = pneg %p273
        %p643 = pneg %p270
        %p644 = pneg %p294
        %p645 = pneg %p291
        %p646 = pneg %p315
        %p647 = pneg %p312
        %p648 = pneg %p336
        %p649 = pneg %p333
        %p650 = pneg %p357
        %p651 = pneg %p354
        %p652 = pneg %p378
        %p653 = pneg %p375
        %p654 = pneg %p399
        %p655 = pneg %p396
        %p656 = pneg %p420
        %p657 = pneg %p417
        %p658 = pneg %p441
        %p659 = pneg %p438
        %p660 = pneg %p467
        %p661 = pneg %p464
        %s662 = sand.u32 %s454, 1
        %s663 = scalar_lea.sflag [#allocation7], %s662
        %s664 = sand.u32 %s454, 1
        %s665 = smul.addr %s664, 8
        %s666 = scalar_lea.vmem [#allocation11], %s665
        %p667 = pneg %p493
        %p668 = pneg %p490
        %s669 = sand.u32 %s480, 1
        %s670 = scalar_lea.sflag [#allocation13], %s669
        %s671 = sand.u32 %s480, 1
        %s672 = smul.addr %s671, 8
        %s673 = scalar_lea.vmem [#allocation12], %s672
        %p674 = scmp.lt.s32.totalorder %s42, 6
        %s675 = scalar_select %p674, %s42, 6
        %s676 = smul.addr %s675, 8
        %s677 = scalar_lea.vmem %s3, %s676
        %p678 = scmp.eq.s32.totalorder %s42, 0
        // Predicated region
        $region109: #{tpu_custom_call.1} parent=95 // pred_check
          %p679 = pneg %p678
        $region110: #{tpu_custom_call.1} parent=95 // pred_check_branch
          %681 = sbr.rel (%p679) target = $region112
        $region111: #{tpu_custom_call.1} parent=95 // pred_region
          %v682 = vld [vmem:[#allocation5] sm:$0xff]
          %vm683 = vcmask 261120
          %684 = vst.msk [vmem:[#allocation2] sm:$0xff] %vm683, %v682
          %v685 = vld [vmem:[#allocation8] sm:$0xff]
          %686 = vst.msk [vmem:[#allocation3] sm:$0xff] %vm683, %v685
        $region112: #{tpu_custom_call.1} parent=95 // pred_fallthru
          _
        %v687 = vld [vmem:[#allocation2] sm:$0xff]
        %v688 = vld [vmem:[#allocation3] sm:$0xff]
        %v689 = vld [vmem:[%s1] sm:$0xff]
        %v690 = vld [vmem:[%s1 + $0x8] sm:$0xff]
        %v691 = vld [vmem:[%s1 + $0x10] sm:$0xff]
        %v692 = vld [vmem:[%s1 + $0x18] sm:$0xff]
        %v693 = vld [vmem:[%s1 + $0x20] sm:$0xff]
        %v694 = vld [vmem:[%s1 + $0x28] sm:$0xff]
        %v695 = vld [vmem:[%s1 + $0x30] sm:$0xff]
        %v696 = vld [vmem:[%s1 + $0x38] sm:$0xff]
        %v697 = vld [vmem:[%s1 + $0x40] sm:$0xff]
        %v698 = vld [vmem:[%s1 + $0x48] sm:$0xff]
        %v699 = vld [vmem:[%s1 + $0x50] sm:$0xff]
        %v700 = vld [vmem:[%s1 + $0x58] sm:$0xff]
        %v701 = vld [vmem:[%s1 + $0x60] sm:$0xff]
        %v702 = vld [vmem:[%s1 + $0x68] sm:$0xff]
        %v703 = vld [vmem:[%s1 + $0x70] sm:$0xff]
        %v704 = vld [vmem:[%s1 + $0x78] sm:$0xff]
        %v705 = vld [vmem:[%s1 + $0x80] sm:$0xff]
        %v706 = vld [vmem:[%s1 + $0x88] sm:$0xff]
        %v707 = vld [vmem:[%s1 + $0x90] sm:$0xff]
        %v708 = vld [vmem:[%s1 + $0x98] sm:$0xff]
        %v709 = vld [vmem:[%s1 + $0xa0] sm:$0xff]
        %v710 = vld [vmem:[%s1 + $0xa8] sm:$0xff]
        %v711 = vld [vmem:[%s1 + $0xb0] sm:$0xff]
        %v712 = vld [vmem:[%s1 + $0xb8] sm:$0xff]
        %v713 = vld [vmem:[%s1 + $0xc0] sm:$0xff]
        %v714 = vld [vmem:[%s1 + $0xc8] sm:$0xff]
        %v715 = vld [vmem:[%s1 + $0xd0] sm:$0xff]
        %v716 = vld [vmem:[%s1 + $0xd8] sm:$0xff]
        %v717 = vld [vmem:[%s1 + $0xe0] sm:$0xff]
        %v718 = vld [vmem:[%s1 + $0xe8] sm:$0xff]
        %v719 = vld [vmem:[%s1 + $0xf0] sm:$0xff]
        %v720 = vld [vmem:[%s1 + $0xf8] sm:$0xff]
        %v721 = vld [vmem:[%s1 + $0x100] sm:$0xff]
        %v722 = vld [vmem:[%s1 + $0x108] sm:$0xff]
        %v723 = vld [vmem:[%s1 + $0x110] sm:$0xff]
        %v724 = vld [vmem:[%s1 + $0x118] sm:$0xff]
        %v725 = vld [vmem:[%s1 + $0x120] sm:$0xff]
        %v726 = vld [vmem:[%s1 + $0x128] sm:$0xff]
        %v727 = vld [vmem:[%s1 + $0x130] sm:$0xff]
        %v728 = vld [vmem:[%s1 + $0x138] sm:$0xff]
        %v729 = vld [vmem:[%s1 + $0x140] sm:$0xff]
        %v730 = vld [vmem:[%s1 + $0x148] sm:$0xff]
        %v731 = vld [vmem:[%s1 + $0x150] sm:$0xff]
        %v732 = vld [vmem:[%s1 + $0x158] sm:$0xff]
        %v733 = vld [vmem:[%s1 + $0x160] sm:$0xff]
        %v734 = vld [vmem:[%s1 + $0x168] sm:$0xff]
        %v735 = vld [vmem:[%s1 + $0x170] sm:$0xff]
        %v736 = vld [vmem:[%s1 + $0x178] sm:$0xff]
        %v737 = vld [vmem:[%s1 + $0x180] sm:$0xff]
        %v738 = vld [vmem:[%s1 + $0x188] sm:$0xff]
        %v739 = vld [vmem:[%s1 + $0x190] sm:$0xff]
        %v740 = vld [vmem:[%s1 + $0x198] sm:$0xff]
        %v741 = vld [vmem:[%s1 + $0x1a0] sm:$0xff]
        %v742 = vld [vmem:[%s1 + $0x1a8] sm:$0xff]
        %v743 = vld [vmem:[%s1 + $0x1b0] sm:$0xff]
        %v744 = vld [vmem:[%s1 + $0x1b8] sm:$0xff]
        %v745 = vld [vmem:[%s1 + $0x1c0] sm:$0xff]
        %v746 = vld [vmem:[%s1 + $0x1c8] sm:$0xff]
        %v747 = vld [vmem:[%s1 + $0x1d0] sm:$0xff]
        %v748 = vld [vmem:[%s1 + $0x1d8] sm:$0xff]
        %v749 = vld [vmem:[%s1 + $0x1e0] sm:$0xff]
        %v750 = vld [vmem:[%s1 + $0x1e8] sm:$0xff]
        %v751 = vld [vmem:[%s1 + $0x1f0] sm:$0xff]
        %v752 = vld [vmem:[%s1 + $0x1f8] sm:$0xff]
        %v753 = vld [vmem:[%s1 + $0x200] sm:$0xff]
        %v754 = vld [vmem:[%s1 + $0x208] sm:$0xff]
        %v755 = vld [vmem:[%s1 + $0x210] sm:$0xff]
        %v756 = vld [vmem:[%s1 + $0x218] sm:$0xff]
        %v757 = vld [vmem:[%s1 + $0x220] sm:$0xff]
        %v758 = vld [vmem:[%s1 + $0x228] sm:$0xff]
        %v759 = vld [vmem:[%s1 + $0x230] sm:$0xff]
        %v760 = vld [vmem:[%s1 + $0x238] sm:$0xff]
        %v761 = vld [vmem:[%s1 + $0x240] sm:$0xff]
        %v762 = vld [vmem:[%s1 + $0x248] sm:$0xff]
        %v763 = vld [vmem:[%s1 + $0x250] sm:$0xff]
        %v764 = vld [vmem:[%s1 + $0x258] sm:$0xff]
        %v765 = vld [vmem:[%s1 + $0x260] sm:$0xff]
        %v766 = vld [vmem:[%s1 + $0x268] sm:$0xff]
        %v767 = vld [vmem:[%s1 + $0x270] sm:$0xff]
        %v768 = vld [vmem:[%s1 + $0x278] sm:$0xff]
        %v769 = vld [vmem:[%s1 + $0x280] sm:$0xff]
        %v770 = vld [vmem:[%s1 + $0x288] sm:$0xff]
        %v771 = vld [vmem:[%s1 + $0x290] sm:$0xff]
        %v772 = vld [vmem:[%s1 + $0x298] sm:$0xff]
        %v773 = vld [vmem:[%s1 + $0x2a0] sm:$0xff]
        %v774 = vld [vmem:[%s1 + $0x2a8] sm:$0xff]
        %v775 = vld [vmem:[%s1 + $0x2b0] sm:$0xff]
        %v776 = vld [vmem:[%s1 + $0x2b8] sm:$0xff]
        %v777 = vld [vmem:[%s1 + $0x2c0] sm:$0xff]
        %v778 = vld [vmem:[%s1 + $0x2c8] sm:$0xff]
        %v779 = vld [vmem:[%s1 + $0x2d0] sm:$0xff]
        %v780 = vld [vmem:[%s1 + $0x2d8] sm:$0xff]
        %v781 = vld [vmem:[%s1 + $0x2e0] sm:$0xff]
        %v782 = vld [vmem:[%s1 + $0x2e8] sm:$0xff]
        %v783 = vld [vmem:[%s1 + $0x2f0] sm:$0xff]
        %v784 = vld [vmem:[%s1 + $0x2f8] sm:$0xff]
        %v785 = vld [vmem:[%s1 + $0x300] sm:$0xff]
        %v786 = vld [vmem:[%s1 + $0x308] sm:$0xff]
        %v787 = vld [vmem:[%s1 + $0x310] sm:$0xff]
        %v788 = vld [vmem:[%s1 + $0x318] sm:$0xff]
        %v789 = vld [vmem:[%s1 + $0x320] sm:$0xff]
        %v790 = vld [vmem:[%s1 + $0x328] sm:$0xff]
        %v791 = vld [vmem:[%s1 + $0x330] sm:$0xff]
        %v792 = vld [vmem:[%s1 + $0x338] sm:$0xff]
        %v793 = vld [vmem:[%s1 + $0x340] sm:$0xff]
        %v794 = vld [vmem:[%s1 + $0x348] sm:$0xff]
        %v795 = vld [vmem:[%s1 + $0x350] sm:$0xff]
        %v796 = vld [vmem:[%s1 + $0x358] sm:$0xff]
        %v797 = vld [vmem:[%s1 + $0x360] sm:$0xff]
        %v798 = vld [vmem:[%s1 + $0x368] sm:$0xff]
        %v799 = vld [vmem:[%s1 + $0x370] sm:$0xff]
        %v800 = vld [vmem:[%s1 + $0x378] sm:$0xff]
        %v801 = vld [vmem:[%s1 + $0x380] sm:$0xff]
        %v802 = vld [vmem:[%s1 + $0x388] sm:$0xff]
        %v803 = vld [vmem:[%s1 + $0x390] sm:$0xff]
        %v804 = vld [vmem:[%s1 + $0x398] sm:$0xff]
        %v805 = vld [vmem:[%s1 + $0x3a0] sm:$0xff]
        %v806 = vld [vmem:[%s1 + $0x3a8] sm:$0xff]
        %v807 = vld [vmem:[%s1 + $0x3b0] sm:$0xff]
        %v808 = vld [vmem:[%s1 + $0x3b8] sm:$0xff]
        %v809 = vld [vmem:[%s1 + $0x3c0] sm:$0xff]
        %v810 = vld [vmem:[%s1 + $0x3c8] sm:$0xff]
        %v811 = vld [vmem:[%s1 + $0x3d0] sm:$0xff]
        %v812 = vld [vmem:[%s1 + $0x3d8] sm:$0xff]
        %v813 = vld [vmem:[%s1 + $0x3e0] sm:$0xff]
        %v814 = vld [vmem:[%s1 + $0x3e8] sm:$0xff]
        %v815 = vld [vmem:[%s1 + $0x3f0] sm:$0xff]
        %v816 = vld [vmem:[%s1 + $0x3f8] sm:$0xff]
        %v817 = vld [vmem:[%s2] sm:$0xff]
        %v818 = vld [vmem:[%s2 + $0x8] sm:$0xff]
        %v819 = vld [vmem:[%s2 + $0x10] sm:$0xff]
        %v820 = vld [vmem:[%s2 + $0x18] sm:$0xff]
        %v821 = vld [vmem:[%s2 + $0x20] sm:$0xff]
        %v822 = vld [vmem:[%s2 + $0x28] sm:$0xff]
        %v823 = vld [vmem:[%s2 + $0x30] sm:$0xff]
        %v824 = vld [vmem:[%s2 + $0x38] sm:$0xff]
        %v825 = vld [vmem:[%s2 + $0x40] sm:$0xff]
        %v826 = vld [vmem:[%s2 + $0x48] sm:$0xff]
        %v827 = vld [vmem:[%s2 + $0x50] sm:$0xff]
        %v828 = vld [vmem:[%s2 + $0x58] sm:$0xff]
        %v829 = vld [vmem:[%s2 + $0x60] sm:$0xff]
        %v830 = vld [vmem:[%s2 + $0x68] sm:$0xff]
        %v831 = vld [vmem:[%s2 + $0x70] sm:$0xff]
        %v832 = vld [vmem:[%s2 + $0x78] sm:$0xff]
        %v833 = vld [vmem:[%s2 + $0x80] sm:$0xff]
        %v834 = vld [vmem:[%s2 + $0x88] sm:$0xff]
        %v835 = vld [vmem:[%s2 + $0x90] sm:$0xff]
        %v836 = vld [vmem:[%s2 + $0x98] sm:$0xff]
        %v837 = vld [vmem:[%s2 + $0xa0] sm:$0xff]
        %v838 = vld [vmem:[%s2 + $0xa8] sm:$0xff]
        %v839 = vld [vmem:[%s2 + $0xb0] sm:$0xff]
        %v840 = vld [vmem:[%s2 + $0xb8] sm:$0xff]
        %v841 = vld [vmem:[%s2 + $0xc0] sm:$0xff]
        %v842 = vld [vmem:[%s2 + $0xc8] sm:$0xff]
        %v843 = vld [vmem:[%s2 + $0xd0] sm:$0xff]
        %v844 = vld [vmem:[%s2 + $0xd8] sm:$0xff]
        %v845 = vld [vmem:[%s2 + $0xe0] sm:$0xff]
        %v846 = vld [vmem:[%s2 + $0xe8] sm:$0xff]
        %v847 = vld [vmem:[%s2 + $0xf0] sm:$0xff]
        %v848 = vld [vmem:[%s2 + $0xf8] sm:$0xff]
        %v849 = vld [vmem:[%s2 + $0x100] sm:$0xff]
        %v850 = vld [vmem:[%s2 + $0x108] sm:$0xff]
        %v851 = vld [vmem:[%s2 + $0x110] sm:$0xff]
        %v852 = vld [vmem:[%s2 + $0x118] sm:$0xff]
        %v853 = vld [vmem:[%s2 + $0x120] sm:$0xff]
        %v854 = vld [vmem:[%s2 + $0x128] sm:$0xff]
        %v855 = vld [vmem:[%s2 + $0x130] sm:$0xff]
        %v856 = vld [vmem:[%s2 + $0x138] sm:$0xff]
        %v857 = vld [vmem:[%s2 + $0x140] sm:$0xff]
        %v858 = vld [vmem:[%s2 + $0x148] sm:$0xff]
        %v859 = vld [vmem:[%s2 + $0x150] sm:$0xff]
        %v860 = vld [vmem:[%s2 + $0x158] sm:$0xff]
        %v861 = vld [vmem:[%s2 + $0x160] sm:$0xff]
        %v862 = vld [vmem:[%s2 + $0x168] sm:$0xff]
        %v863 = vld [vmem:[%s2 + $0x170] sm:$0xff]
        %v864 = vld [vmem:[%s2 + $0x178] sm:$0xff]
        %v865 = vld [vmem:[%s2 + $0x180] sm:$0xff]
        %v866 = vld [vmem:[%s2 + $0x188] sm:$0xff]
        %v867 = vld [vmem:[%s2 + $0x190] sm:$0xff]
        %v868 = vld [vmem:[%s2 + $0x198] sm:$0xff]
        %v869 = vld [vmem:[%s2 + $0x1a0] sm:$0xff]
        %v870 = vld [vmem:[%s2 + $0x1a8] sm:$0xff]
        %v871 = vld [vmem:[%s2 + $0x1b0] sm:$0xff]
        %v872 = vld [vmem:[%s2 + $0x1b8] sm:$0xff]
        %v873 = vld [vmem:[%s2 + $0x1c0] sm:$0xff]
        %v874 = vld [vmem:[%s2 + $0x1c8] sm:$0xff]
        %v875 = vld [vmem:[%s2 + $0x1d0] sm:$0xff]
        %v876 = vld [vmem:[%s2 + $0x1d8] sm:$0xff]
        %v877 = vld [vmem:[%s2 + $0x1e0] sm:$0xff]
        %v878 = vld [vmem:[%s2 + $0x1e8] sm:$0xff]
        %v879 = vld [vmem:[%s2 + $0x1f0] sm:$0xff]
        %v880 = vld [vmem:[%s2 + $0x1f8] sm:$0xff]
        %v881 = vld [vmem:[%s2 + $0x200] sm:$0xff]
        %v882 = vld [vmem:[%s2 + $0x208] sm:$0xff]
        %v883 = vld [vmem:[%s2 + $0x210] sm:$0xff]
        %v884 = vld [vmem:[%s2 + $0x218] sm:$0xff]
        %v885 = vld [vmem:[%s2 + $0x220] sm:$0xff]
        %v886 = vld [vmem:[%s2 + $0x228] sm:$0xff]
        %v887 = vld [vmem:[%s2 + $0x230] sm:$0xff]
        %v888 = vld [vmem:[%s2 + $0x238] sm:$0xff]
        %v889 = vld [vmem:[%s2 + $0x240] sm:$0xff]
        %v890 = vld [vmem:[%s2 + $0x248] sm:$0xff]
        %v891 = vld [vmem:[%s2 + $0x250] sm:$0xff]
        %v892 = vld [vmem:[%s2 + $0x258] sm:$0xff]
        %v893 = vld [vmem:[%s2 + $0x260] sm:$0xff]
        %v894 = vld [vmem:[%s2 + $0x268] sm:$0xff]
        %v895 = vld [vmem:[%s2 + $0x270] sm:$0xff]
        %v896 = vld [vmem:[%s2 + $0x278] sm:$0xff]
        %v897 = vld [vmem:[%s2 + $0x280] sm:$0xff]
        %v898 = vld [vmem:[%s2 + $0x288] sm:$0xff]
        %v899 = vld [vmem:[%s2 + $0x290] sm:$0xff]
        %v900 = vld [vmem:[%s2 + $0x298] sm:$0xff]
        %v901 = vld [vmem:[%s2 + $0x2a0] sm:$0xff]
        %v902 = vld [vmem:[%s2 + $0x2a8] sm:$0xff]
        %v903 = vld [vmem:[%s2 + $0x2b0] sm:$0xff]
        %v904 = vld [vmem:[%s2 + $0x2b8] sm:$0xff]
        %v905 = vld [vmem:[%s2 + $0x2c0] sm:$0xff]
        %v906 = vld [vmem:[%s2 + $0x2c8] sm:$0xff]
        %v907 = vld [vmem:[%s2 + $0x2d0] sm:$0xff]
        %v908 = vld [vmem:[%s2 + $0x2d8] sm:$0xff]
        %v909 = vld [vmem:[%s2 + $0x2e0] sm:$0xff]
        %v910 = vld [vmem:[%s2 + $0x2e8] sm:$0xff]
        %v911 = vld [vmem:[%s2 + $0x2f0] sm:$0xff]
        %v912 = vld [vmem:[%s2 + $0x2f8] sm:$0xff]
        %v913 = vld [vmem:[%s2 + $0x300] sm:$0xff]
        %v914 = vld [vmem:[%s2 + $0x308] sm:$0xff]
        %v915 = vld [vmem:[%s2 + $0x310] sm:$0xff]
        %v916 = vld [vmem:[%s2 + $0x318] sm:$0xff]
        %v917 = vld [vmem:[%s2 + $0x320] sm:$0xff]
        %v918 = vld [vmem:[%s2 + $0x328] sm:$0xff]
        %v919 = vld [vmem:[%s2 + $0x330] sm:$0xff]
        %v920 = vld [vmem:[%s2 + $0x338] sm:$0xff]
        %v921 = vld [vmem:[%s2 + $0x340] sm:$0xff]
        %v922 = vld [vmem:[%s2 + $0x348] sm:$0xff]
        %v923 = vld [vmem:[%s2 + $0x350] sm:$0xff]
        %v924 = vld [vmem:[%s2 + $0x358] sm:$0xff]
        %v925 = vld [vmem:[%s2 + $0x360] sm:$0xff]
        %v926 = vld [vmem:[%s2 + $0x368] sm:$0xff]
        %v927 = vld [vmem:[%s2 + $0x370] sm:$0xff]
        %v928 = vld [vmem:[%s2 + $0x378] sm:$0xff]
        %v929 = vld [vmem:[%s2 + $0x380] sm:$0xff]
        %v930 = vld [vmem:[%s2 + $0x388] sm:$0xff]
        %v931 = vld [vmem:[%s2 + $0x390] sm:$0xff]
        %v932 = vld [vmem:[%s2 + $0x398] sm:$0xff]
        %v933 = vld [vmem:[%s2 + $0x3a0] sm:$0xff]
        %v934 = vld [vmem:[%s2 + $0x3a8] sm:$0xff]
        %v935 = vld [vmem:[%s2 + $0x3b0] sm:$0xff]
        %v936 = vld [vmem:[%s2 + $0x3b8] sm:$0xff]
        %v937 = vld [vmem:[%s2 + $0x3c0] sm:$0xff]
        %v938 = vld [vmem:[%s2 + $0x3c8] sm:$0xff]
        %v939 = vld [vmem:[%s2 + $0x3d0] sm:$0xff]
        %v940 = vld [vmem:[%s2 + $0x3d8] sm:$0xff]
        %v941 = vld [vmem:[%s2 + $0x3e0] sm:$0xff]
        %v942 = vld [vmem:[%s2 + $0x3e8] sm:$0xff]
        %v943 = vld [vmem:[%s2 + $0x3f0] sm:$0xff]
        %v944 = vld [vmem:[%s2 + $0x3f8] sm:$0xff]
        %v945 = vld [vmem:[%s677] sm:$0xff]
        %v946 = vld [vmem:[%s6] sm:$0xff]
        %v947 = vld [vmem:[%s6 + $0x8] sm:$0xff]
        %v948 = vld [vmem:[%s6 + $0x10] sm:$0xff]
        %v949 = vld [vmem:[%s6 + $0x18] sm:$0xff]
        %v950 = vld [vmem:[%s7] sm:$0x1]
        %v952 = vlaneseq
        %v953 = vshrl.u32 %v952, 7
        %v954 = vsub.s32 0, %v953
        %v955 = vrot.slane %v950, %v954
        %vm957 = vcmask 261120
        %v959 = vsel %vm957, %v687, 0
        %961 = vmatprep.subr.mxu0 0.0
        %962 = vmatpush1.msra.mxu0 %v946
        %963 = vmatprep.subr.mxu0 0.0
        %964 = vmatpush1.msra.mxu0 %v947
        %965 = vmatprep.subr.mxu0 0.0
        %966 = vmatpush1.msra.mxu0 %v948
        %967 = vmatprep.subr.mxu0 0.0
        %968 = vmatpush1.msra.mxu0 %v949
        %969 = vmatprep.subr.mxu0 0.0
        %970 = vmatpush1.msra.mxu0 0.0
        %971 = vmatprep.subr.mxu0 0.0
        %972 = vmatpush1.msra.mxu0 0.0
        %973 = vmatprep.subr.mxu0 0.0
        %974 = vmatpush1.msra.mxu0 0.0
        %975 = vmatprep.subr.mxu0 0.0
        %976 = vmatpush1.msra.mxu0 0.0
        %977 = vmatprep.subr.mxu0 0.0
        %978 = vmatpush1.msra.mxu0 0.0
        %979 = vmatprep.subr.mxu0 0.0
        %980 = vmatpush1.msra.mxu0 0.0
        %981 = vmatprep.subr.mxu0 0.0
        %982 = vmatpush1.msra.mxu0 0.0
        %983 = vmatprep.subr.mxu0 0.0
        %984 = vmatpush1.msra.mxu0 0.0
        %985 = vmatprep.subr.mxu0 0.0
        %986 = vmatpush1.msra.mxu0 0.0
        %987 = vmatprep.subr.mxu0 0.0
        %988 = vmatpush1.msra.mxu0 0.0
        %989 = vmatprep.subr.mxu0 0.0
        %990 = vmatpush1.msra.mxu0 0.0
        %991 = vmatprep.subr.mxu0 0.0
        %992 = vmatpush1.msra.mxu0 0.0
        %993 = vmatprep.subr.mxu0 0.0
        %994 = vmatpush1.msra.mxu0 0.0
        %995 = vmatprep.subr.mxu0 0.0
        %996 = vmatpush1.msra.mxu0 0.0
        %997 = vmatprep.subr.mxu0 0.0
        %998 = vmatpush1.msra.mxu0 0.0
        %999 = vmatprep.subr.mxu0 0.0
        %1000 = vmatpush1.msra.mxu0 0.0
        %1001 = vmatprep.subr.mxu0 0.0
        %1002 = vmatpush1.msra.mxu0 0.0
        %1003 = vmatprep.subr.mxu0 0.0
        %1004 = vmatpush1.msra.mxu0 0.0
        %1005 = vmatprep.subr.mxu0 0.0
        %1006 = vmatpush1.msra.mxu0 0.0
        %1007 = vmatprep.subr.mxu0 0.0
        %1008 = vmatpush1.msra.mxu0 0.0
        %1009 = vmatprep.subr.mxu0 0.0
        %1010 = vmatpush1.msra.mxu0 0.0
        %1011 = vmatprep.subr.mxu0 0.0
        %1012 = vmatpush1.msra.mxu0 0.0
        %1013 = vmatprep.subr.mxu0 0.0
        %1014 = vmatpush1.msra.mxu0 0.0
        %1015 = vmatprep.subr.mxu0 0.0
        %1016 = vmatpush1.msra.mxu0 0.0
        %1017 = vmatprep.subr.mxu0 0.0
        %1018 = vmatpush1.msra.mxu0 0.0
        %1019 = vmatprep.subr.mxu0 0.0
        %1020 = vmatpush1.msra.mxu0 0.0
        %1021 = vmatprep.subr.mxu0 0.0
        %1022 = vmatpush1.msra.mxu0 0.0
        %1023 = vmatprep.subr.mxu0 0.0
        %1024 = vmatpush1.msra.mxu0 0.0
        %1025 = vmatprep.mubr.f32.mxu0 0.0
        %1026 = vmatmul.mubr.f32.gmra.mrb[0].mxu0 %v959
        %v1027 = vpop.f32.mrb[0].mxu0
        %v1028 = vadd.f32 %v955, %v1027
        %v1029 = vpop.f32.mrb[0].mxu0
        %1030 = vdwg.mxu0
        %v1032 = vcombine.high %v1028, %v1028
        %v1034 = vunpack.c.l.s4 1966171168
        %v1035 = vunpack.c.0.s8 %v1034
        %v1036 = vlaneseq
        %v1037 = vshrl.u32 %v1036, 7
        %v1038 = vsub.s32 %v1035, %v1037
        %v1039 = vrot.slane %v1028, %v1038
        %v1041 = vunpack.c.l.s4 1966171168
        %v1042 = vunpack.c.0.s8 %v1041
        %v1043 = vlaneseq
        %v1044 = vshrl.u32 %v1043, 7
        %v1045 = vsub.s32 %v1042, %v1044
        %v1046 = vrot.slane %v1032, %v1045
        %v1047 = vcombine.high %v1039, %v1039
        %v1048 = vcombine.high %v1046, %v1046
        %v1050 = vunpack.c.l.s4 1966171168
        %v1051 = vunpack.c.0.s8 %v1050
        %v1052 = vlaneseq
        %v1053 = vshrl.u32 %v1052, 7
        %v1054 = vsub.s32 %v1051, %v1053
        %v1055 = vrot.slane %v1039, %v1054
        %v1057 = vunpack.c.l.s4 1966171168
        %v1058 = vunpack.c.0.s8 %v1057
        %v1059 = vlaneseq
        %v1060 = vshrl.u32 %v1059, 7
        %v1061 = vsub.s32 %v1058, %v1060
        %v1062 = vrot.slane %v1046, %v1061
        %v1064 = vunpack.c.l.s4 1966171168
        %v1065 = vunpack.c.0.s8 %v1064
        %v1066 = vlaneseq
        %v1067 = vshrl.u32 %v1066, 7
        %v1068 = vsub.s32 %v1065, %v1067
        %v1069 = vrot.slane %v1047, %v1068
        %v1071 = vunpack.c.l.s4 1966171168
        %v1072 = vunpack.c.0.s8 %v1071
        %v1073 = vlaneseq
        %v1074 = vshrl.u32 %v1073, 7
        %v1075 = vsub.s32 %v1072, %v1074
        %v1076 = vrot.slane %v1048, %v1075
        %v1077 = vcombine.high %v1055, %v1055
        %v1078 = vcombine.high %v1062, %v1062
        %v1079 = vcombine.high %v1069, %v1069
        %v1080 = vcombine.high %v1076, %v1076
        %v1081 = vlaneseq
        %v1082 = vshrl.u32 %v1081, 7
        %v1083 = vsub.s32 0, %v1082
        %v1084 = vrot.slane %v1055, %v1083
        %v1085 = vlaneseq
        %v1086 = vshrl.u32 %v1085, 7
        %v1087 = vsub.s32 0, %v1086
        %v1088 = vrot.slane %v1069, %v1087
        %v1089 = vlaneseq
        %v1090 = vshrl.u32 %v1089, 7
        %v1091 = vsub.s32 0, %v1090
        %v1092 = vrot.slane %v1077, %v1091
        %v1093 = vlaneseq
        %v1094 = vshrl.u32 %v1093, 7
        %v1095 = vsub.s32 0, %v1094
        %v1096 = vrot.slane %v1079, %v1095
        %v1097 = vlaneseq
        %v1098 = vshrl.u32 %v1097, 7
        %v1099 = vsub.s32 0, %v1098
        %v1100 = vrot.slane %v1062, %v1099
        %v1101 = vlaneseq
        %v1102 = vshrl.u32 %v1101, 7
        %v1103 = vsub.s32 0, %v1102
        %v1104 = vrot.slane %v1076, %v1103
        %v1105 = vlaneseq
        %v1106 = vshrl.u32 %v1105, 7
        %v1107 = vsub.s32 0, %v1106
        %v1108 = vrot.slane %v1078, %v1107
        %v1109 = vlaneseq
        %v1110 = vshrl.u32 %v1109, 7
        %v1111 = vsub.s32 0, %v1110
        %v1112 = vrot.slane %v1080, %v1111
        %v1121 = vadd.f32 %v689, %v1084
        %v1122 = vadd.f32 %v690, %v1084
        %v1123 = vadd.f32 %v691, %v1084
        %v1124 = vadd.f32 %v692, %v1084
        %v1125 = vadd.f32 %v693, %v1084
        %v1126 = vadd.f32 %v694, %v1084
        %v1127 = vadd.f32 %v695, %v1084
        %v1128 = vadd.f32 %v696, %v1084
        %v1129 = vadd.f32 %v697, %v1084
        %v1130 = vadd.f32 %v698, %v1084
        %v1131 = vadd.f32 %v699, %v1084
        %v1132 = vadd.f32 %v700, %v1084
        %v1133 = vadd.f32 %v701, %v1084
        %v1134 = vadd.f32 %v702, %v1084
        %v1135 = vadd.f32 %v703, %v1084
        %v1136 = vadd.f32 %v704, %v1084
        %v1137 = vadd.f32 %v705, %v1088
        %v1138 = vadd.f32 %v706, %v1088
        %v1139 = vadd.f32 %v707, %v1088
        %v1140 = vadd.f32 %v708, %v1088
        %v1141 = vadd.f32 %v709, %v1088
        %v1142 = vadd.f32 %v710, %v1088
        %v1143 = vadd.f32 %v711, %v1088
        %v1144 = vadd.f32 %v712, %v1088
        %v1145 = vadd.f32 %v713, %v1088
        %v1146 = vadd.f32 %v714, %v1088
        %v1147 = vadd.f32 %v715, %v1088
        %v1148 = vadd.f32 %v716, %v1088
        %v1149 = vadd.f32 %v717, %v1088
        %v1150 = vadd.f32 %v718, %v1088
        %v1151 = vadd.f32 %v719, %v1088
        %v1152 = vadd.f32 %v720, %v1088
        %v1153 = vadd.f32 %v721, %v1092
        %v1154 = vadd.f32 %v722, %v1092
        %v1155 = vadd.f32 %v723, %v1092
        %v1156 = vadd.f32 %v724, %v1092
        %v1157 = vadd.f32 %v725, %v1092
        %v1158 = vadd.f32 %v726, %v1092
        %v1159 = vadd.f32 %v727, %v1092
        %v1160 = vadd.f32 %v728, %v1092
        %v1161 = vadd.f32 %v729, %v1092
        %v1162 = vadd.f32 %v730, %v1092
        %v1163 = vadd.f32 %v731, %v1092
        %v1164 = vadd.f32 %v732, %v1092
        %v1165 = vadd.f32 %v733, %v1092
        %v1166 = vadd.f32 %v734, %v1092
        %v1167 = vadd.f32 %v735, %v1092
        %v1168 = vadd.f32 %v736, %v1092
        %v1169 = vadd.f32 %v737, %v1096
        %v1170 = vadd.f32 %v738, %v1096
        %v1171 = vadd.f32 %v739, %v1096
        %v1172 = vadd.f32 %v740, %v1096
        %v1173 = vadd.f32 %v741, %v1096
        %v1174 = vadd.f32 %v742, %v1096
        %v1175 = vadd.f32 %v743, %v1096
        %v1176 = vadd.f32 %v744, %v1096
        %v1177 = vadd.f32 %v745, %v1096
        %v1178 = vadd.f32 %v746, %v1096
        %v1179 = vadd.f32 %v747, %v1096
        %v1180 = vadd.f32 %v748, %v1096
        %v1181 = vadd.f32 %v749, %v1096
        %v1182 = vadd.f32 %v750, %v1096
        %v1183 = vadd.f32 %v751, %v1096
        %v1184 = vadd.f32 %v752, %v1096
        %v1185 = vadd.f32 %v753, %v1100
        %v1186 = vadd.f32 %v754, %v1100
        %v1187 = vadd.f32 %v755, %v1100
        %v1188 = vadd.f32 %v756, %v1100
        %v1189 = vadd.f32 %v757, %v1100
        %v1190 = vadd.f32 %v758, %v1100
        %v1191 = vadd.f32 %v759, %v1100
        %v1192 = vadd.f32 %v760, %v1100
        %v1193 = vadd.f32 %v761, %v1100
        %v1194 = vadd.f32 %v762, %v1100
        %v1195 = vadd.f32 %v763, %v1100
        %v1196 = vadd.f32 %v764, %v1100
        %v1197 = vadd.f32 %v765, %v1100
        %v1198 = vadd.f32 %v766, %v1100
        %v1199 = vadd.f32 %v767, %v1100
        %v1200 = vadd.f32 %v768, %v1100
        %v1201 = vadd.f32 %v769, %v1104
        %v1202 = vadd.f32 %v770, %v1104
        %v1203 = vadd.f32 %v771, %v1104
        %v1204 = vadd.f32 %v772, %v1104
        %v1205 = vadd.f32 %v773, %v1104
        %v1206 = vadd.f32 %v774, %v1104
        %v1207 = vadd.f32 %v775, %v1104
        %v1208 = vadd.f32 %v776, %v1104
        %v1209 = vadd.f32 %v777, %v1104
        %v1210 = vadd.f32 %v778, %v1104
        %v1211 = vadd.f32 %v779, %v1104
        %v1212 = vadd.f32 %v780, %v1104
        %v1213 = vadd.f32 %v781, %v1104
        %v1214 = vadd.f32 %v782, %v1104
        %v1215 = vadd.f32 %v783, %v1104
        %v1216 = vadd.f32 %v784, %v1104
        %v1217 = vadd.f32 %v785, %v1108
        %v1218 = vadd.f32 %v786, %v1108
        %v1219 = vadd.f32 %v787, %v1108
        %v1220 = vadd.f32 %v788, %v1108
        %v1221 = vadd.f32 %v789, %v1108
        %v1222 = vadd.f32 %v790, %v1108
        %v1223 = vadd.f32 %v791, %v1108
        %v1224 = vadd.f32 %v792, %v1108
        %v1225 = vadd.f32 %v793, %v1108
        %v1226 = vadd.f32 %v794, %v1108
        %v1227 = vadd.f32 %v795, %v1108
        %v1228 = vadd.f32 %v796, %v1108
        %v1229 = vadd.f32 %v797, %v1108
        %v1230 = vadd.f32 %v798, %v1108
        %v1231 = vadd.f32 %v799, %v1108
        %v1232 = vadd.f32 %v800, %v1108
        %v1233 = vadd.f32 %v801, %v1112
        %v1234 = vadd.f32 %v802, %v1112
        %v1235 = vadd.f32 %v803, %v1112
        %v1236 = vadd.f32 %v804, %v1112
        %v1237 = vadd.f32 %v805, %v1112
        %v1238 = vadd.f32 %v806, %v1112
        %v1239 = vadd.f32 %v807, %v1112
        %v1240 = vadd.f32 %v808, %v1112
        %v1241 = vadd.f32 %v809, %v1112
        %v1242 = vadd.f32 %v810, %v1112
        %v1243 = vadd.f32 %v811, %v1112
        %v1244 = vadd.f32 %v812, %v1112
        %v1245 = vadd.f32 %v813, %v1112
        %v1246 = vadd.f32 %v814, %v1112
        %v1247 = vadd.f32 %v815, %v1112
        %v1248 = vadd.f32 %v816, %v1112
        %v1249 = vmax.f32 %v1121, 0.0
        %v1250 = vmax.f32 %v1122, 0.0
        %v1251 = vmax.f32 %v1123, 0.0
        %v1252 = vmax.f32 %v1124, 0.0
        %v1253 = vmax.f32 %v1125, 0.0
        %v1254 = vmax.f32 %v1126, 0.0
        %v1255 = vmax.f32 %v1127, 0.0
        %v1256 = vmax.f32 %v1128, 0.0
        %v1257 = vmax.f32 %v1129, 0.0
        %v1258 = vmax.f32 %v1130, 0.0
        %v1259 = vmax.f32 %v1131, 0.0
        %v1260 = vmax.f32 %v1132, 0.0
        %v1261 = vmax.f32 %v1133, 0.0
        %v1262 = vmax.f32 %v1134, 0.0
        %v1263 = vmax.f32 %v1135, 0.0
        %v1264 = vmax.f32 %v1136, 0.0
        %v1265 = vmax.f32 %v1137, 0.0
        %v1266 = vmax.f32 %v1138, 0.0
        %v1267 = vmax.f32 %v1139, 0.0
        %v1268 = vmax.f32 %v1140, 0.0
        %v1269 = vmax.f32 %v1141, 0.0
        %v1270 = vmax.f32 %v1142, 0.0
        %v1271 = vmax.f32 %v1143, 0.0
        %v1272 = vmax.f32 %v1144, 0.0
        %v1273 = vmax.f32 %v1145, 0.0
        %v1274 = vmax.f32 %v1146, 0.0
        %v1275 = vmax.f32 %v1147, 0.0
        %v1276 = vmax.f32 %v1148, 0.0
        %v1277 = vmax.f32 %v1149, 0.0
        %v1278 = vmax.f32 %v1150, 0.0
        %v1279 = vmax.f32 %v1151, 0.0
        %v1280 = vmax.f32 %v1152, 0.0
        %v1281 = vmax.f32 %v1153, 0.0
        %v1282 = vmax.f32 %v1154, 0.0
        %v1283 = vmax.f32 %v1155, 0.0
        %v1284 = vmax.f32 %v1156, 0.0
        %v1285 = vmax.f32 %v1157, 0.0
        %v1286 = vmax.f32 %v1158, 0.0
        %v1287 = vmax.f32 %v1159, 0.0
        %v1288 = vmax.f32 %v1160, 0.0
        %v1289 = vmax.f32 %v1161, 0.0
        %v1290 = vmax.f32 %v1162, 0.0
        %v1291 = vmax.f32 %v1163, 0.0
        %v1292 = vmax.f32 %v1164, 0.0
        %v1293 = vmax.f32 %v1165, 0.0
        %v1294 = vmax.f32 %v1166, 0.0
        %v1295 = vmax.f32 %v1167, 0.0
        %v1296 = vmax.f32 %v1168, 0.0
        %v1297 = vmax.f32 %v1169, 0.0
        %v1298 = vmax.f32 %v1170, 0.0
        %v1299 = vmax.f32 %v1171, 0.0
        %v1300 = vmax.f32 %v1172, 0.0
        %v1301 = vmax.f32 %v1173, 0.0
        %v1302 = vmax.f32 %v1174, 0.0
        %v1303 = vmax.f32 %v1175, 0.0
        %v1304 = vmax.f32 %v1176, 0.0
        %v1305 = vmax.f32 %v1177, 0.0
        %v1306 = vmax.f32 %v1178, 0.0
        %v1307 = vmax.f32 %v1179, 0.0
        %v1308 = vmax.f32 %v1180, 0.0
        %v1309 = vmax.f32 %v1181, 0.0
        %v1310 = vmax.f32 %v1182, 0.0
        %v1311 = vmax.f32 %v1183, 0.0
        %v1312 = vmax.f32 %v1184, 0.0
        %v1313 = vmax.f32 %v1185, 0.0
        %v1314 = vmax.f32 %v1186, 0.0
        %v1315 = vmax.f32 %v1187, 0.0
        %v1316 = vmax.f32 %v1188, 0.0
        %v1317 = vmax.f32 %v1189, 0.0
        %v1318 = vmax.f32 %v1190, 0.0
        %v1319 = vmax.f32 %v1191, 0.0
        %v1320 = vmax.f32 %v1192, 0.0
        %v1321 = vmax.f32 %v1193, 0.0
        %v1322 = vmax.f32 %v1194, 0.0
        %v1323 = vmax.f32 %v1195, 0.0
        %v1324 = vmax.f32 %v1196, 0.0
        %v1325 = vmax.f32 %v1197, 0.0
        %v1326 = vmax.f32 %v1198, 0.0
        %v1327 = vmax.f32 %v1199, 0.0
        %v1328 = vmax.f32 %v1200, 0.0
        %v1329 = vmax.f32 %v1201, 0.0
        %v1330 = vmax.f32 %v1202, 0.0
        %v1331 = vmax.f32 %v1203, 0.0
        %v1332 = vmax.f32 %v1204, 0.0
        %v1333 = vmax.f32 %v1205, 0.0
        %v1334 = vmax.f32 %v1206, 0.0
        %v1335 = vmax.f32 %v1207, 0.0
        %v1336 = vmax.f32 %v1208, 0.0
        %v1337 = vmax.f32 %v1209, 0.0
        %v1338 = vmax.f32 %v1210, 0.0
        %v1339 = vmax.f32 %v1211, 0.0
        %v1340 = vmax.f32 %v1212, 0.0
        %v1341 = vmax.f32 %v1213, 0.0
        %v1342 = vmax.f32 %v1214, 0.0
        %v1343 = vmax.f32 %v1215, 0.0
        %v1344 = vmax.f32 %v1216, 0.0
        %v1345 = vmax.f32 %v1217, 0.0
        %v1346 = vmax.f32 %v1218, 0.0
        %v1347 = vmax.f32 %v1219, 0.0
        %v1348 = vmax.f32 %v1220, 0.0
        %v1349 = vmax.f32 %v1221, 0.0
        %v1350 = vmax.f32 %v1222, 0.0
        %v1351 = vmax.f32 %v1223, 0.0
        %v1352 = vmax.f32 %v1224, 0.0
        %v1353 = vmax.f32 %v1225, 0.0
        %v1354 = vmax.f32 %v1226, 0.0
        %v1355 = vmax.f32 %v1227, 0.0
        %v1356 = vmax.f32 %v1228, 0.0
        %v1357 = vmax.f32 %v1229, 0.0
        %v1358 = vmax.f32 %v1230, 0.0
        %v1359 = vmax.f32 %v1231, 0.0
        %v1360 = vmax.f32 %v1232, 0.0
        %v1361 = vmax.f32 %v1233, 0.0
        %v1362 = vmax.f32 %v1234, 0.0
        %v1363 = vmax.f32 %v1235, 0.0
        %v1364 = vmax.f32 %v1236, 0.0
        %v1365 = vmax.f32 %v1237, 0.0
        %v1366 = vmax.f32 %v1238, 0.0
        %v1367 = vmax.f32 %v1239, 0.0
        %v1368 = vmax.f32 %v1240, 0.0
        %v1369 = vmax.f32 %v1241, 0.0
        %v1370 = vmax.f32 %v1242, 0.0
        %v1371 = vmax.f32 %v1243, 0.0
        %v1372 = vmax.f32 %v1244, 0.0
        %v1373 = vmax.f32 %v1245, 0.0
        %v1374 = vmax.f32 %v1246, 0.0
        %v1375 = vmax.f32 %v1247, 0.0
        %v1376 = vmax.f32 %v1248, 0.0
        %v1377 = vld [vmem:[%s8] sm:$0x1]
        %v1379 = vlaneseq
        %v1380 = vshrl.u32 %v1379, 7
        %v1381 = vsub.s32 0, %v1380
        %v1382 = vrot.slane %v1377, %v1381
        %v1384 = vmul.f32 %v1249, %v1382
        %v1385 = vmul.f32 %v1250, %v1382
        %v1386 = vmul.f32 %v1251, %v1382
        %v1387 = vmul.f32 %v1252, %v1382
        %v1388 = vmul.f32 %v1253, %v1382
        %v1389 = vmul.f32 %v1254, %v1382
        %v1390 = vmul.f32 %v1255, %v1382
        %v1391 = vmul.f32 %v1256, %v1382
        %v1392 = vmul.f32 %v1257, %v1382
        %v1393 = vmul.f32 %v1258, %v1382
        %v1394 = vmul.f32 %v1259, %v1382
        %v1395 = vmul.f32 %v1260, %v1382
        %v1396 = vmul.f32 %v1261, %v1382
        %v1397 = vmul.f32 %v1262, %v1382
        %v1398 = vmul.f32 %v1263, %v1382
        %v1399 = vmul.f32 %v1264, %v1382
        %v1400 = vmul.f32 %v1265, %v1382
        %v1401 = vmul.f32 %v1266, %v1382
        %v1402 = vmul.f32 %v1267, %v1382
        %v1403 = vmul.f32 %v1268, %v1382
        %v1404 = vmul.f32 %v1269, %v1382
        %v1405 = vmul.f32 %v1270, %v1382
        %v1406 = vmul.f32 %v1271, %v1382
        %v1407 = vmul.f32 %v1272, %v1382
        %v1408 = vmul.f32 %v1273, %v1382
        %v1409 = vmul.f32 %v1274, %v1382
        %v1410 = vmul.f32 %v1275, %v1382
        %v1411 = vmul.f32 %v1276, %v1382
        %v1412 = vmul.f32 %v1277, %v1382
        %v1413 = vmul.f32 %v1278, %v1382
        %v1414 = vmul.f32 %v1279, %v1382
        %v1415 = vmul.f32 %v1280, %v1382
        %v1416 = vmul.f32 %v1281, %v1382
        %v1417 = vmul.f32 %v1282, %v1382
        %v1418 = vmul.f32 %v1283, %v1382
        %v1419 = vmul.f32 %v1284, %v1382
        %v1420 = vmul.f32 %v1285, %v1382
        %v1421 = vmul.f32 %v1286, %v1382
        %v1422 = vmul.f32 %v1287, %v1382
        %v1423 = vmul.f32 %v1288, %v1382
        %v1424 = vmul.f32 %v1289, %v1382
        %v1425 = vmul.f32 %v1290, %v1382
        %v1426 = vmul.f32 %v1291, %v1382
        %v1427 = vmul.f32 %v1292, %v1382
        %v1428 = vmul.f32 %v1293, %v1382
        %v1429 = vmul.f32 %v1294, %v1382
        %v1430 = vmul.f32 %v1295, %v1382
        %v1431 = vmul.f32 %v1296, %v1382
        %v1432 = vmul.f32 %v1297, %v1382
        %v1433 = vmul.f32 %v1298, %v1382
        %v1434 = vmul.f32 %v1299, %v1382
        %v1435 = vmul.f32 %v1300, %v1382
        %v1436 = vmul.f32 %v1301, %v1382
        %v1437 = vmul.f32 %v1302, %v1382
        %v1438 = vmul.f32 %v1303, %v1382
        %v1439 = vmul.f32 %v1304, %v1382
        %v1440 = vmul.f32 %v1305, %v1382
        %v1441 = vmul.f32 %v1306, %v1382
        %v1442 = vmul.f32 %v1307, %v1382
        %v1443 = vmul.f32 %v1308, %v1382
        %v1444 = vmul.f32 %v1309, %v1382
        %v1445 = vmul.f32 %v1310, %v1382
        %v1446 = vmul.f32 %v1311, %v1382
        %v1447 = vmul.f32 %v1312, %v1382
        %v1448 = vmul.f32 %v1313, %v1382
        %v1449 = vmul.f32 %v1314, %v1382
        %v1450 = vmul.f32 %v1315, %v1382
        %v1451 = vmul.f32 %v1316, %v1382
        %v1452 = vmul.f32 %v1317, %v1382
        %v1453 = vmul.f32 %v1318, %v1382
        %v1454 = vmul.f32 %v1319, %v1382
        %v1455 = vmul.f32 %v1320, %v1382
        %v1456 = vmul.f32 %v1321, %v1382
        %v1457 = vmul.f32 %v1322, %v1382
        %v1458 = vmul.f32 %v1323, %v1382
        %v1459 = vmul.f32 %v1324, %v1382
        %v1460 = vmul.f32 %v1325, %v1382
        %v1461 = vmul.f32 %v1326, %v1382
        %v1462 = vmul.f32 %v1327, %v1382
        %v1463 = vmul.f32 %v1328, %v1382
        %v1464 = vmul.f32 %v1329, %v1382
        %v1465 = vmul.f32 %v1330, %v1382
        %v1466 = vmul.f32 %v1331, %v1382
        %v1467 = vmul.f32 %v1332, %v1382
        %v1468 = vmul.f32 %v1333, %v1382
        %v1469 = vmul.f32 %v1334, %v1382
        %v1470 = vmul.f32 %v1335, %v1382
        %v1471 = vmul.f32 %v1336, %v1382
        %v1472 = vmul.f32 %v1337, %v1382
        %v1473 = vmul.f32 %v1338, %v1382
        %v1474 = vmul.f32 %v1339, %v1382
        %v1475 = vmul.f32 %v1340, %v1382
        %v1476 = vmul.f32 %v1341, %v1382
        %v1477 = vmul.f32 %v1342, %v1382
        %v1478 = vmul.f32 %v1343, %v1382
        %v1479 = vmul.f32 %v1344, %v1382
        %v1480 = vmul.f32 %v1345, %v1382
        %v1481 = vmul.f32 %v1346, %v1382
        %v1482 = vmul.f32 %v1347, %v1382
        %v1483 = vmul.f32 %v1348, %v1382
        %v1484 = vmul.f32 %v1349, %v1382
        %v1485 = vmul.f32 %v1350, %v1382
        %v1486 = vmul.f32 %v1351, %v1382
        %v1487 = vmul.f32 %v1352, %v1382
        %v1488 = vmul.f32 %v1353, %v1382
        %v1489 = vmul.f32 %v1354, %v1382
        %v1490 = vmul.f32 %v1355, %v1382
        %v1491 = vmul.f32 %v1356, %v1382
        %v1492 = vmul.f32 %v1357, %v1382
        %v1493 = vmul.f32 %v1358, %v1382
        %v1494 = vmul.f32 %v1359, %v1382
        %v1495 = vmul.f32 %v1360, %v1382
        %v1496 = vmul.f32 %v1361, %v1382
        %v1497 = vmul.f32 %v1362, %v1382
        %v1498 = vmul.f32 %v1363, %v1382
        %v1499 = vmul.f32 %v1364, %v1382
        %v1500 = vmul.f32 %v1365, %v1382
        %v1501 = vmul.f32 %v1366, %v1382
        %v1502 = vmul.f32 %v1367, %v1382
        %v1503 = vmul.f32 %v1368, %v1382
        %v1504 = vmul.f32 %v1369, %v1382
        %v1505 = vmul.f32 %v1370, %v1382
        %v1506 = vmul.f32 %v1371, %v1382
        %v1507 = vmul.f32 %v1372, %v1382
        %v1508 = vmul.f32 %v1373, %v1382
        %v1509 = vmul.f32 %v1374, %v1382
        %v1510 = vmul.f32 %v1375, %v1382
        %v1511 = vmul.f32 %v1376, %v1382
        %v1512 = vsel %vm957, %v1384, 0.0
        %1513 = vadd.xlane.f32.xlu0 %v1512
        %v1514 = vpop.xlane.xlu0 %1513
        %v1515 = vsel %vm957, %v1385, 0.0
        %1516 = vadd.xlane.f32.xlu0 %v1515
        %v1517 = vpop.xlane.xlu0 %1516
        %v1518 = vsel %vm957, %v1386, 0.0
        %1519 = vadd.xlane.f32.xlu0 %v1518
        %v1520 = vpop.xlane.xlu0 %1519
        %v1521 = vsel %vm957, %v1387, 0.0
        %1522 = vadd.xlane.f32.xlu0 %v1521
        %v1523 = vpop.xlane.xlu0 %1522
        %v1524 = vsel %vm957, %v1388, 0.0
        %1525 = vadd.xlane.f32.xlu0 %v1524
        %v1526 = vpop.xlane.xlu0 %1525
        %v1527 = vsel %vm957, %v1389, 0.0
        %1528 = vadd.xlane.f32.xlu0 %v1527
        %v1529 = vpop.xlane.xlu0 %1528
        %v1530 = vsel %vm957, %v1390, 0.0
        %1531 = vadd.xlane.f32.xlu0 %v1530
        %v1532 = vpop.xlane.xlu0 %1531
        %v1533 = vsel %vm957, %v1391, 0.0
        %1534 = vadd.xlane.f32.xlu0 %v1533
        %v1535 = vpop.xlane.xlu0 %1534
        %v1536 = vsel %vm957, %v1392, 0.0
        %1537 = vadd.xlane.f32.xlu0 %v1536
        %v1538 = vpop.xlane.xlu0 %1537
        %v1539 = vsel %vm957, %v1393, 0.0
        %1540 = vadd.xlane.f32.xlu0 %v1539
        %v1541 = vpop.xlane.xlu0 %1540
        %v1542 = vsel %vm957, %v1394, 0.0
        %1543 = vadd.xlane.f32.xlu0 %v1542
        %v1544 = vpop.xlane.xlu0 %1543
        %v1545 = vsel %vm957, %v1395, 0.0
        %1546 = vadd.xlane.f32.xlu0 %v1545
        %v1547 = vpop.xlane.xlu0 %1546
        %v1548 = vsel %vm957, %v1396, 0.0
        %1549 = vadd.xlane.f32.xlu0 %v1548
        %v1550 = vpop.xlane.xlu0 %1549
        %v1551 = vsel %vm957, %v1397, 0.0
        %1552 = vadd.xlane.f32.xlu0 %v1551
        %v1553 = vpop.xlane.xlu0 %1552
        %v1554 = vsel %vm957, %v1398, 0.0
        %1555 = vadd.xlane.f32.xlu0 %v1554
        %v1556 = vpop.xlane.xlu0 %1555
        %v1557 = vsel %vm957, %v1399, 0.0
        %1558 = vadd.xlane.f32.xlu0 %v1557
        %v1559 = vpop.xlane.xlu0 %1558
        %v1560 = vsel %vm957, %v1400, 0.0
        %1561 = vadd.xlane.f32.xlu0 %v1560
        %v1562 = vpop.xlane.xlu0 %1561
        %v1563 = vsel %vm957, %v1401, 0.0
        %1564 = vadd.xlane.f32.xlu0 %v1563
        %v1565 = vpop.xlane.xlu0 %1564
        %v1566 = vsel %vm957, %v1402, 0.0
        %1567 = vadd.xlane.f32.xlu0 %v1566
        %v1568 = vpop.xlane.xlu0 %1567
        %v1569 = vsel %vm957, %v1403, 0.0
        %1570 = vadd.xlane.f32.xlu0 %v1569
        %v1571 = vpop.xlane.xlu0 %1570
        %v1572 = vsel %vm957, %v1404, 0.0
        %1573 = vadd.xlane.f32.xlu0 %v1572
        %v1574 = vpop.xlane.xlu0 %1573
        %v1575 = vsel %vm957, %v1405, 0.0
        %1576 = vadd.xlane.f32.xlu0 %v1575
        %v1577 = vpop.xlane.xlu0 %1576
        %v1578 = vsel %vm957, %v1406, 0.0
        %1579 = vadd.xlane.f32.xlu0 %v1578
        %v1580 = vpop.xlane.xlu0 %1579
        %v1581 = vsel %vm957, %v1407, 0.0
        %1582 = vadd.xlane.f32.xlu0 %v1581
        %v1583 = vpop.xlane.xlu0 %1582
        %v1584 = vsel %vm957, %v1408, 0.0
        %1585 = vadd.xlane.f32.xlu0 %v1584
        %v1586 = vpop.xlane.xlu0 %1585
        %v1587 = vsel %vm957, %v1409, 0.0
        %1588 = vadd.xlane.f32.xlu0 %v1587
        %v1589 = vpop.xlane.xlu0 %1588
        %v1590 = vsel %vm957, %v1410, 0.0
        %1591 = vadd.xlane.f32.xlu0 %v1590
        %v1592 = vpop.xlane.xlu0 %1591
        %v1593 = vsel %vm957, %v1411, 0.0
        %1594 = vadd.xlane.f32.xlu0 %v1593
        %v1595 = vpop.xlane.xlu0 %1594
        %v1596 = vsel %vm957, %v1412, 0.0
        %1597 = vadd.xlane.f32.xlu0 %v1596
        %v1598 = vpop.xlane.xlu0 %1597
        %v1599 = vsel %vm957, %v1413, 0.0
        %1600 = vadd.xlane.f32.xlu0 %v1599
        %v1601 = vpop.xlane.xlu0 %1600
        %v1602 = vsel %vm957, %v1414, 0.0
        %1603 = vadd.xlane.f32.xlu0 %v1602
        %v1604 = vpop.xlane.xlu0 %1603
        %v1605 = vsel %vm957, %v1415, 0.0
        %1606 = vadd.xlane.f32.xlu0 %v1605
        %v1607 = vpop.xlane.xlu0 %1606
        %v1608 = vsel %vm957, %v1416, 0.0
        %1609 = vadd.xlane.f32.xlu0 %v1608
        %v1610 = vpop.xlane.xlu0 %1609
        %v1611 = vsel %vm957, %v1417, 0.0
        %1612 = vadd.xlane.f32.xlu0 %v1611
        %v1613 = vpop.xlane.xlu0 %1612
        %v1614 = vsel %vm957, %v1418, 0.0
        %1615 = vadd.xlane.f32.xlu0 %v1614
        %v1616 = vpop.xlane.xlu0 %1615
        %v1617 = vsel %vm957, %v1419, 0.0
        %1618 = vadd.xlane.f32.xlu0 %v1617
        %v1619 = vpop.xlane.xlu0 %1618
        %v1620 = vsel %vm957, %v1420, 0.0
        %1621 = vadd.xlane.f32.xlu0 %v1620
        %v1622 = vpop.xlane.xlu0 %1621
        %v1623 = vsel %vm957, %v1421, 0.0
        %1624 = vadd.xlane.f32.xlu0 %v1623
        %v1625 = vpop.xlane.xlu0 %1624
        %v1626 = vsel %vm957, %v1422, 0.0
        %1627 = vadd.xlane.f32.xlu0 %v1626
        %v1628 = vpop.xlane.xlu0 %1627
        %v1629 = vsel %vm957, %v1423, 0.0
        %1630 = vadd.xlane.f32.xlu0 %v1629
        %v1631 = vpop.xlane.xlu0 %1630
        %v1632 = vsel %vm957, %v1424, 0.0
        %1633 = vadd.xlane.f32.xlu0 %v1632
        %v1634 = vpop.xlane.xlu0 %1633
        %v1635 = vsel %vm957, %v1425, 0.0
        %1636 = vadd.xlane.f32.xlu0 %v1635
        %v1637 = vpop.xlane.xlu0 %1636
        %v1638 = vsel %vm957, %v1426, 0.0
        %1639 = vadd.xlane.f32.xlu0 %v1638
        %v1640 = vpop.xlane.xlu0 %1639
        %v1641 = vsel %vm957, %v1427, 0.0
        %1642 = vadd.xlane.f32.xlu0 %v1641
        %v1643 = vpop.xlane.xlu0 %1642
        %v1644 = vsel %vm957, %v1428, 0.0
        %1645 = vadd.xlane.f32.xlu0 %v1644
        %v1646 = vpop.xlane.xlu0 %1645
        %v1647 = vsel %vm957, %v1429, 0.0
        %1648 = vadd.xlane.f32.xlu0 %v1647
        %v1649 = vpop.xlane.xlu0 %1648
        %v1650 = vsel %vm957, %v1430, 0.0
        %1651 = vadd.xlane.f32.xlu0 %v1650
        %v1652 = vpop.xlane.xlu0 %1651
        %v1653 = vsel %vm957, %v1431, 0.0
        %1654 = vadd.xlane.f32.xlu0 %v1653
        %v1655 = vpop.xlane.xlu0 %1654
        %v1656 = vsel %vm957, %v1432, 0.0
        %1657 = vadd.xlane.f32.xlu0 %v1656
        %v1658 = vpop.xlane.xlu0 %1657
        %v1659 = vsel %vm957, %v1433, 0.0
        %1660 = vadd.xlane.f32.xlu0 %v1659
        %v1661 = vpop.xlane.xlu0 %1660
        %v1662 = vsel %vm957, %v1434, 0.0
        %1663 = vadd.xlane.f32.xlu0 %v1662
        %v1664 = vpop.xlane.xlu0 %1663
        %v1665 = vsel %vm957, %v1435, 0.0
        %1666 = vadd.xlane.f32.xlu0 %v1665
        %v1667 = vpop.xlane.xlu0 %1666
        %v1668 = vsel %vm957, %v1436, 0.0
        %1669 = vadd.xlane.f32.xlu0 %v1668
        %v1670 = vpop.xlane.xlu0 %1669
        %v1671 = vsel %vm957, %v1437, 0.0
        %1672 = vadd.xlane.f32.xlu0 %v1671
        %v1673 = vpop.xlane.xlu0 %1672
        %v1674 = vsel %vm957, %v1438, 0.0
        %1675 = vadd.xlane.f32.xlu0 %v1674
        %v1676 = vpop.xlane.xlu0 %1675
        %v1677 = vsel %vm957, %v1439, 0.0
        %1678 = vadd.xlane.f32.xlu0 %v1677
        %v1679 = vpop.xlane.xlu0 %1678
        %v1680 = vsel %vm957, %v1440, 0.0
        %1681 = vadd.xlane.f32.xlu0 %v1680
        %v1682 = vpop.xlane.xlu0 %1681
        %v1683 = vsel %vm957, %v1441, 0.0
        %1684 = vadd.xlane.f32.xlu0 %v1683
        %v1685 = vpop.xlane.xlu0 %1684
        %v1686 = vsel %vm957, %v1442, 0.0
        %1687 = vadd.xlane.f32.xlu0 %v1686
        %v1688 = vpop.xlane.xlu0 %1687
        %v1689 = vsel %vm957, %v1443, 0.0
        %1690 = vadd.xlane.f32.xlu0 %v1689
        %v1691 = vpop.xlane.xlu0 %1690
        %v1692 = vsel %vm957, %v1444, 0.0
        %1693 = vadd.xlane.f32.xlu0 %v1692
        %v1694 = vpop.xlane.xlu0 %1693
        %v1695 = vsel %vm957, %v1445, 0.0
        %1696 = vadd.xlane.f32.xlu0 %v1695
        %v1697 = vpop.xlane.xlu0 %1696
        %v1698 = vsel %vm957, %v1446, 0.0
        %1699 = vadd.xlane.f32.xlu0 %v1698
        %v1700 = vpop.xlane.xlu0 %1699
        %v1701 = vsel %vm957, %v1447, 0.0
        %1702 = vadd.xlane.f32.xlu0 %v1701
        %v1703 = vpop.xlane.xlu0 %1702
        %v1704 = vsel %vm957, %v1448, 0.0
        %1705 = vadd.xlane.f32.xlu0 %v1704
        %v1706 = vpop.xlane.xlu0 %1705
        %v1707 = vsel %vm957, %v1449, 0.0
        %1708 = vadd.xlane.f32.xlu0 %v1707
        %v1709 = vpop.xlane.xlu0 %1708
        %v1710 = vsel %vm957, %v1450, 0.0
        %1711 = vadd.xlane.f32.xlu0 %v1710
        %v1712 = vpop.xlane.xlu0 %1711
        %v1713 = vsel %vm957, %v1451, 0.0
        %1714 = vadd.xlane.f32.xlu0 %v1713
        %v1715 = vpop.xlane.xlu0 %1714
        %v1716 = vsel %vm957, %v1452, 0.0
        %1717 = vadd.xlane.f32.xlu0 %v1716
        %v1718 = vpop.xlane.xlu0 %1717
        %v1719 = vsel %vm957, %v1453, 0.0
        %1720 = vadd.xlane.f32.xlu0 %v1719
        %v1721 = vpop.xlane.xlu0 %1720
        %v1722 = vsel %vm957, %v1454, 0.0
        %1723 = vadd.xlane.f32.xlu0 %v1722
        %v1724 = vpop.xlane.xlu0 %1723
        %v1725 = vsel %vm957, %v1455, 0.0
        %1726 = vadd.xlane.f32.xlu0 %v1725
        %v1727 = vpop.xlane.xlu0 %1726
        %v1728 = vsel %vm957, %v1456, 0.0
        %1729 = vadd.xlane.f32.xlu0 %v1728
        %v1730 = vpop.xlane.xlu0 %1729
        %v1731 = vsel %vm957, %v1457, 0.0
        %1732 = vadd.xlane.f32.xlu0 %v1731
        %v1733 = vpop.xlane.xlu0 %1732
        %v1734 = vsel %vm957, %v1458, 0.0
        %1735 = vadd.xlane.f32.xlu0 %v1734
        %v1736 = vpop.xlane.xlu0 %1735
        %v1737 = vsel %vm957, %v1459, 0.0
        %1738 = vadd.xlane.f32.xlu0 %v1737
        %v1739 = vpop.xlane.xlu0 %1738
        %v1740 = vsel %vm957, %v1460, 0.0
        %1741 = vadd.xlane.f32.xlu0 %v1740
        %v1742 = vpop.xlane.xlu0 %1741
        %v1743 = vsel %vm957, %v1461, 0.0
        %1744 = vadd.xlane.f32.xlu0 %v1743
        %v1745 = vpop.xlane.xlu0 %1744
        %v1746 = vsel %vm957, %v1462, 0.0
        %1747 = vadd.xlane.f32.xlu0 %v1746
        %v1748 = vpop.xlane.xlu0 %1747
        %v1749 = vsel %vm957, %v1463, 0.0
        %1750 = vadd.xlane.f32.xlu0 %v1749
        %v1751 = vpop.xlane.xlu0 %1750
        %v1752 = vsel %vm957, %v1464, 0.0
        %1753 = vadd.xlane.f32.xlu0 %v1752
        %v1754 = vpop.xlane.xlu0 %1753
        %v1755 = vsel %vm957, %v1465, 0.0
        %1756 = vadd.xlane.f32.xlu0 %v1755
        %v1757 = vpop.xlane.xlu0 %1756
        %v1758 = vsel %vm957, %v1466, 0.0
        %1759 = vadd.xlane.f32.xlu0 %v1758
        %v1760 = vpop.xlane.xlu0 %1759
        %v1761 = vsel %vm957, %v1467, 0.0
        %1762 = vadd.xlane.f32.xlu0 %v1761
        %v1763 = vpop.xlane.xlu0 %1762
        %v1764 = vsel %vm957, %v1468, 0.0
        %1765 = vadd.xlane.f32.xlu0 %v1764
        %v1766 = vpop.xlane.xlu0 %1765
        %v1767 = vsel %vm957, %v1469, 0.0
        %1768 = vadd.xlane.f32.xlu0 %v1767
        %v1769 = vpop.xlane.xlu0 %1768
        %v1770 = vsel %vm957, %v1470, 0.0
        %1771 = vadd.xlane.f32.xlu0 %v1770
        %v1772 = vpop.xlane.xlu0 %1771
        %v1773 = vsel %vm957, %v1471, 0.0
        %1774 = vadd.xlane.f32.xlu0 %v1773
        %v1775 = vpop.xlane.xlu0 %1774
        %v1776 = vsel %vm957, %v1472, 0.0
        %1777 = vadd.xlane.f32.xlu0 %v1776
        %v1778 = vpop.xlane.xlu0 %1777
        %v1779 = vsel %vm957, %v1473, 0.0
        %1780 = vadd.xlane.f32.xlu0 %v1779
        %v1781 = vpop.xlane.xlu0 %1780
        %v1782 = vsel %vm957, %v1474, 0.0
        %1783 = vadd.xlane.f32.xlu0 %v1782
        %v1784 = vpop.xlane.xlu0 %1783
        %v1785 = vsel %vm957, %v1475, 0.0
        %1786 = vadd.xlane.f32.xlu0 %v1785
        %v1787 = vpop.xlane.xlu0 %1786
        %v1788 = vsel %vm957, %v1476, 0.0
        %1789 = vadd.xlane.f32.xlu0 %v1788
        %v1790 = vpop.xlane.xlu0 %1789
        %v1791 = vsel %vm957, %v1477, 0.0
        %1792 = vadd.xlane.f32.xlu0 %v1791
        %v1793 = vpop.xlane.xlu0 %1792
        %v1794 = vsel %vm957, %v1478, 0.0
        %1795 = vadd.xlane.f32.xlu0 %v1794
        %v1796 = vpop.xlane.xlu0 %1795
        %v1797 = vsel %vm957, %v1479, 0.0
        %1798 = vadd.xlane.f32.xlu0 %v1797
        %v1799 = vpop.xlane.xlu0 %1798
        %v1800 = vsel %vm957, %v1480, 0.0
        %1801 = vadd.xlane.f32.xlu0 %v1800
        %v1802 = vpop.xlane.xlu0 %1801
        %v1803 = vsel %vm957, %v1481, 0.0
        %1804 = vadd.xlane.f32.xlu0 %v1803
        %v1805 = vpop.xlane.xlu0 %1804
        %v1806 = vsel %vm957, %v1482, 0.0
        %1807 = vadd.xlane.f32.xlu0 %v1806
        %v1808 = vpop.xlane.xlu0 %1807
        %v1809 = vsel %vm957, %v1483, 0.0
        %1810 = vadd.xlane.f32.xlu0 %v1809
        %v1811 = vpop.xlane.xlu0 %1810
        %v1812 = vsel %vm957, %v1484, 0.0
        %1813 = vadd.xlane.f32.xlu0 %v1812
        %v1814 = vpop.xlane.xlu0 %1813
        %v1815 = vsel %vm957, %v1485, 0.0
        %1816 = vadd.xlane.f32.xlu0 %v1815
        %v1817 = vpop.xlane.xlu0 %1816
        %v1818 = vsel %vm957, %v1486, 0.0
        %1819 = vadd.xlane.f32.xlu0 %v1818
        %v1820 = vpop.xlane.xlu0 %1819
        %v1821 = vsel %vm957, %v1487, 0.0
        %1822 = vadd.xlane.f32.xlu0 %v1821
        %v1823 = vpop.xlane.xlu0 %1822
        %v1824 = vsel %vm957, %v1488, 0.0
        %1825 = vadd.xlane.f32.xlu0 %v1824
        %v1826 = vpop.xlane.xlu0 %1825
        %v1827 = vsel %vm957, %v1489, 0.0
        %1828 = vadd.xlane.f32.xlu0 %v1827
        %v1829 = vpop.xlane.xlu0 %1828
        %v1830 = vsel %vm957, %v1490, 0.0
        %1831 = vadd.xlane.f32.xlu0 %v1830
        %v1832 = vpop.xlane.xlu0 %1831
        %v1833 = vsel %vm957, %v1491, 0.0
        %1834 = vadd.xlane.f32.xlu0 %v1833
        %v1835 = vpop.xlane.xlu0 %1834
        %v1836 = vsel %vm957, %v1492, 0.0
        %1837 = vadd.xlane.f32.xlu0 %v1836
        %v1838 = vpop.xlane.xlu0 %1837
        %v1839 = vsel %vm957, %v1493, 0.0
        %1840 = vadd.xlane.f32.xlu0 %v1839
        %v1841 = vpop.xlane.xlu0 %1840
        %v1842 = vsel %vm957, %v1494, 0.0
        %1843 = vadd.xlane.f32.xlu0 %v1842
        %v1844 = vpop.xlane.xlu0 %1843
        %v1845 = vsel %vm957, %v1495, 0.0
        %1846 = vadd.xlane.f32.xlu0 %v1845
        %v1847 = vpop.xlane.xlu0 %1846
        %v1848 = vsel %vm957, %v1496, 0.0
        %1849 = vadd.xlane.f32.xlu0 %v1848
        %v1850 = vpop.xlane.xlu0 %1849
        %v1851 = vsel %vm957, %v1497, 0.0
        %1852 = vadd.xlane.f32.xlu0 %v1851
        %v1853 = vpop.xlane.xlu0 %1852
        %v1854 = vsel %vm957, %v1498, 0.0
        %1855 = vadd.xlane.f32.xlu0 %v1854
        %v1856 = vpop.xlane.xlu0 %1855
        %v1857 = vsel %vm957, %v1499, 0.0
        %1858 = vadd.xlane.f32.xlu0 %v1857
        %v1859 = vpop.xlane.xlu0 %1858
        %v1860 = vsel %vm957, %v1500, 0.0
        %1861 = vadd.xlane.f32.xlu0 %v1860
        %v1862 = vpop.xlane.xlu0 %1861
        %v1863 = vsel %vm957, %v1501, 0.0
        %1864 = vadd.xlane.f32.xlu0 %v1863
        %v1865 = vpop.xlane.xlu0 %1864
        %v1866 = vsel %vm957, %v1502, 0.0
        %1867 = vadd.xlane.f32.xlu0 %v1866
        %v1868 = vpop.xlane.xlu0 %1867
        %v1869 = vsel %vm957, %v1503, 0.0
        %1870 = vadd.xlane.f32.xlu0 %v1869
        %v1871 = vpop.xlane.xlu0 %1870
        %v1872 = vsel %vm957, %v1504, 0.0
        %1873 = vadd.xlane.f32.xlu0 %v1872
        %v1874 = vpop.xlane.xlu0 %1873
        %v1875 = vsel %vm957, %v1505, 0.0
        %1876 = vadd.xlane.f32.xlu0 %v1875
        %v1877 = vpop.xlane.xlu0 %1876
        %v1878 = vsel %vm957, %v1506, 0.0
        %1879 = vadd.xlane.f32.xlu0 %v1878
        %v1880 = vpop.xlane.xlu0 %1879
        %v1881 = vsel %vm957, %v1507, 0.0
        %1882 = vadd.xlane.f32.xlu0 %v1881
        %v1883 = vpop.xlane.xlu0 %1882
        %v1884 = vsel %vm957, %v1508, 0.0
        %1885 = vadd.xlane.f32.xlu0 %v1884
        %v1886 = vpop.xlane.xlu0 %1885
        %v1887 = vsel %vm957, %v1509, 0.0
        %1888 = vadd.xlane.f32.xlu0 %v1887
        %v1889 = vpop.xlane.xlu0 %1888
        %v1890 = vsel %vm957, %v1510, 0.0
        %1891 = vadd.xlane.f32.xlu0 %v1890
        %v1892 = vpop.xlane.xlu0 %1891
        %v1893 = vsel %vm957, %v1511, 0.0
        %1894 = vadd.xlane.f32.xlu0 %v1893
        %v1895 = vpop.xlane.xlu0 %1894
        %v1896 = vld [vmem:[#allocation4] sm:$0x1]
        %v1898 = vlaneseq
        %v1899 = vshrl.u32 %v1898, 7
        %v1900 = vsub.s32 0, %v1899
        %v1901 = vrot.slane %v1896, %v1900
        %1902 = vset.pattern.permute.xlu0 0
        %1903 = vperm.xlu0 %1902, %v1901
        %v1904 = vpop.permute.xlu0 %1903
        %v1906 = vadd.f32 %v1514, %v1904
        %v1907 = vadd.f32 %v1517, %v1904
        %v1908 = vadd.f32 %v1520, %v1904
        %v1909 = vadd.f32 %v1523, %v1904
        %v1910 = vadd.f32 %v1526, %v1904
        %v1911 = vadd.f32 %v1529, %v1904
        %v1912 = vadd.f32 %v1532, %v1904
        %v1913 = vadd.f32 %v1535, %v1904
        %v1914 = vadd.f32 %v1538, %v1904
        %v1915 = vadd.f32 %v1541, %v1904
        %v1916 = vadd.f32 %v1544, %v1904
        %v1917 = vadd.f32 %v1547, %v1904
        %v1918 = vadd.f32 %v1550, %v1904
        %v1919 = vadd.f32 %v1553, %v1904
        %v1920 = vadd.f32 %v1556, %v1904
        %v1921 = vadd.f32 %v1559, %v1904
        %v1922 = vadd.f32 %v1562, %v1904
        %v1923 = vadd.f32 %v1565, %v1904
        %v1924 = vadd.f32 %v1568, %v1904
        %v1925 = vadd.f32 %v1571, %v1904
        %v1926 = vadd.f32 %v1574, %v1904
        %v1927 = vadd.f32 %v1577, %v1904
        %v1928 = vadd.f32 %v1580, %v1904
        %v1929 = vadd.f32 %v1583, %v1904
        %v1930 = vadd.f32 %v1586, %v1904
        %v1931 = vadd.f32 %v1589, %v1904
        %v1932 = vadd.f32 %v1592, %v1904
        %v1933 = vadd.f32 %v1595, %v1904
        %v1934 = vadd.f32 %v1598, %v1904
        %v1935 = vadd.f32 %v1601, %v1904
        %v1936 = vadd.f32 %v1604, %v1904
        %v1937 = vadd.f32 %v1607, %v1904
        %v1938 = vadd.f32 %v1610, %v1904
        %v1939 = vadd.f32 %v1613, %v1904
        %v1940 = vadd.f32 %v1616, %v1904
        %v1941 = vadd.f32 %v1619, %v1904
        %v1942 = vadd.f32 %v1622, %v1904
        %v1943 = vadd.f32 %v1625, %v1904
        %v1944 = vadd.f32 %v1628, %v1904
        %v1945 = vadd.f32 %v1631, %v1904
        %v1946 = vadd.f32 %v1634, %v1904
        %v1947 = vadd.f32 %v1637, %v1904
        %v1948 = vadd.f32 %v1640, %v1904
        %v1949 = vadd.f32 %v1643, %v1904
        %v1950 = vadd.f32 %v1646, %v1904
        %v1951 = vadd.f32 %v1649, %v1904
        %v1952 = vadd.f32 %v1652, %v1904
        %v1953 = vadd.f32 %v1655, %v1904
        %v1954 = vadd.f32 %v1658, %v1904
        %v1955 = vadd.f32 %v1661, %v1904
        %v1956 = vadd.f32 %v1664, %v1904
        %v1957 = vadd.f32 %v1667, %v1904
        %v1958 = vadd.f32 %v1670, %v1904
        %v1959 = vadd.f32 %v1673, %v1904
        %v1960 = vadd.f32 %v1676, %v1904
        %v1961 = vadd.f32 %v1679, %v1904
        %v1962 = vadd.f32 %v1682, %v1904
        %v1963 = vadd.f32 %v1685, %v1904
        %v1964 = vadd.f32 %v1688, %v1904
        %v1965 = vadd.f32 %v1691, %v1904
        %v1966 = vadd.f32 %v1694, %v1904
        %v1967 = vadd.f32 %v1697, %v1904
        %v1968 = vadd.f32 %v1700, %v1904
        %v1969 = vadd.f32 %v1703, %v1904
        %v1970 = vadd.f32 %v1706, %v1904
        %v1971 = vadd.f32 %v1709, %v1904
        %v1972 = vadd.f32 %v1712, %v1904
        %v1973 = vadd.f32 %v1715, %v1904
        %v1974 = vadd.f32 %v1718, %v1904
        %v1975 = vadd.f32 %v1721, %v1904
        %v1976 = vadd.f32 %v1724, %v1904
        %v1977 = vadd.f32 %v1727, %v1904
        %v1978 = vadd.f32 %v1730, %v1904
        %v1979 = vadd.f32 %v1733, %v1904
        %v1980 = vadd.f32 %v1736, %v1904
        %v1981 = vadd.f32 %v1739, %v1904
        %v1982 = vadd.f32 %v1742, %v1904
        %v1983 = vadd.f32 %v1745, %v1904
        %v1984 = vadd.f32 %v1748, %v1904
        %v1985 = vadd.f32 %v1751, %v1904
        %v1986 = vadd.f32 %v1754, %v1904
        %v1987 = vadd.f32 %v1757, %v1904
        %v1988 = vadd.f32 %v1760, %v1904
        %v1989 = vadd.f32 %v1763, %v1904
        %v1990 = vadd.f32 %v1766, %v1904
        %v1991 = vadd.f32 %v1769, %v1904
        %v1992 = vadd.f32 %v1772, %v1904
        %v1993 = vadd.f32 %v1775, %v1904
        %v1994 = vadd.f32 %v1778, %v1904
        %v1995 = vadd.f32 %v1781, %v1904
        %v1996 = vadd.f32 %v1784, %v1904
        %v1997 = vadd.f32 %v1787, %v1904
        %v1998 = vadd.f32 %v1790, %v1904
        %v1999 = vadd.f32 %v1793, %v1904
        %v2000 = vadd.f32 %v1796, %v1904
        %v2001 = vadd.f32 %v1799, %v1904
        %v2002 = vadd.f32 %v1802, %v1904
        %v2003 = vadd.f32 %v1805, %v1904
        %v2004 = vadd.f32 %v1808, %v1904
        %v2005 = vadd.f32 %v1811, %v1904
        %v2006 = vadd.f32 %v1814, %v1904
        %v2007 = vadd.f32 %v1817, %v1904
        %v2008 = vadd.f32 %v1820, %v1904
        %v2009 = vadd.f32 %v1823, %v1904
        %v2010 = vadd.f32 %v1826, %v1904
        %v2011 = vadd.f32 %v1829, %v1904
        %v2012 = vadd.f32 %v1832, %v1904
        %v2013 = vadd.f32 %v1835, %v1904
        %v2014 = vadd.f32 %v1838, %v1904
        %v2015 = vadd.f32 %v1841, %v1904
        %v2016 = vadd.f32 %v1844, %v1904
        %v2017 = vadd.f32 %v1847, %v1904
        %v2018 = vadd.f32 %v1850, %v1904
        %v2019 = vadd.f32 %v1853, %v1904
        %v2020 = vadd.f32 %v1856, %v1904
        %v2021 = vadd.f32 %v1859, %v1904
        %v2022 = vadd.f32 %v1862, %v1904
        %v2023 = vadd.f32 %v1865, %v1904
        %v2024 = vadd.f32 %v1868, %v1904
        %v2025 = vadd.f32 %v1871, %v1904
        %v2026 = vadd.f32 %v1874, %v1904
        %v2027 = vadd.f32 %v1877, %v1904
        %v2028 = vadd.f32 %v1880, %v1904
        %v2029 = vadd.f32 %v1883, %v1904
        %v2030 = vadd.f32 %v1886, %v1904
        %v2031 = vadd.f32 %v1889, %v1904
        %v2032 = vadd.f32 %v1892, %v1904
        %v2033 = vadd.f32 %v1895, %v1904
        %v2034 = vlaneseq
        %v2035 = vand.u32 %v2034, 127
        %vm2036 = vcmp.lt.s32.totalorder %v2035, 16
        %v2165 = vlaneseq
        %v2166 = vshrl.u32 %v2165, 7
        %v2167 = vsub.s32 %v2035, %v2166
        %v2168 = vrot.slane %v1906, %v2167
        %v2169 = vadd.s32 %v2035, 4294967288
        %v2170 = vlaneseq
        %v2171 = vshrl.u32 %v2170, 7
        %v2172 = vsub.s32 %v2169, %v2171
        %v2173 = vrot.slane %v1907, %v2172
        %vm2174 = vcmask 130112
        %v2175 = vsel %vm2174, %v2173, %v2168
        %v2176 = vadd.s32 %v2035, 4294967280
        %v2177 = vlaneseq
        %v2178 = vshrl.u32 %v2177, 7
        %v2179 = vsub.s32 %v2176, %v2178
        %v2180 = vrot.slane %v1908, %v2179
        %vm2181 = vcmask 195712
        %v2182 = vsel %vm2181, %v2180, %v2175
        %v2183 = vadd.s32 %v2035, 4294967272
        %v2184 = vlaneseq
        %v2185 = vshrl.u32 %v2184, 7
        %v2186 = vsub.s32 %v2183, %v2185
        %v2187 = vrot.slane %v1909, %v2186
        %vm2188 = vcmask 261312
        %v2189 = vsel %vm2188, %v2187, %v2182
        %v2190 = vadd.s32 %v2035, 4294967264
        %v2191 = vlaneseq
        %v2192 = vshrl.u32 %v2191, 7
        %v2193 = vsub.s32 %v2190, %v2192
        %v2194 = vrot.slane %v1910, %v2193
        %vm2195 = vcmask 326912
        %v2196 = vsel %vm2195, %v2194, %v2189
        %v2197 = vadd.s32 %v2035, 4294967256
        %v2198 = vlaneseq
        %v2199 = vshrl.u32 %v2198, 7
        %v2200 = vsub.s32 %v2197, %v2199
        %v2201 = vrot.slane %v1911, %v2200
        %vm2202 = vcmask 392512
        %v2203 = vsel %vm2202, %v2201, %v2196
        %v2204 = vadd.s32 %v2035, 4294967248
        %v2205 = vlaneseq
        %v2206 = vshrl.u32 %v2205, 7
        %v2207 = vsub.s32 %v2204, %v2206
        %v2208 = vrot.slane %v1912, %v2207
        %vm2209 = vcmask 458112
        %v2210 = vsel %vm2209, %v2208, %v2203
        %v2211 = vadd.s32 %v2035, 4294967240
        %v2212 = vlaneseq
        %v2213 = vshrl.u32 %v2212, 7
        %v2214 = vsub.s32 %v2211, %v2213
        %v2215 = vrot.slane %v1913, %v2214
        %vm2216 = vcmask 523712
        %v2217 = vsel %vm2216, %v2215, %v2210
        %v2218 = vadd.s32 %v2035, 4294967232
        %v2219 = vlaneseq
        %v2220 = vshrl.u32 %v2219, 7
        %v2221 = vsub.s32 %v2218, %v2220
        %v2222 = vrot.slane %v1914, %v2221
        %vm2223 = vcmask 589312
        %v2224 = vsel %vm2223, %v2222, %v2217
        %v2225 = vadd.s32 %v2035, 4294967224
        %v2226 = vlaneseq
        %v2227 = vshrl.u32 %v2226, 7
        %v2228 = vsub.s32 %v2225, %v2227
        %v2229 = vrot.slane %v1915, %v2228
        %vm2230 = vcmask 654912
        %v2231 = vsel %vm2230, %v2229, %v2224
        %v2232 = vadd.s32 %v2035, 4294967216
        %v2233 = vlaneseq
        %v2234 = vshrl.u32 %v2233, 7
        %v2235 = vsub.s32 %v2232, %v2234
        %v2236 = vrot.slane %v1916, %v2235
        %vm2237 = vcmask 720512
        %v2238 = vsel %vm2237, %v2236, %v2231
        %v2239 = vadd.s32 %v2035, 4294967208
        %v2240 = vlaneseq
        %v2241 = vshrl.u32 %v2240, 7
        %v2242 = vsub.s32 %v2239, %v2241
        %v2243 = vrot.slane %v1917, %v2242
        %vm2244 = vcmask 786112
        %v2245 = vsel %vm2244, %v2243, %v2238
        %v2246 = vadd.s32 %v2035, 4294967200
        %v2247 = vlaneseq
        %v2248 = vshrl.u32 %v2247, 7
        %v2249 = vsub.s32 %v2246, %v2248
        %v2250 = vrot.slane %v1918, %v2249
        %vm2251 = vcmask 851712
        %v2252 = vsel %vm2251, %v2250, %v2245
        %v2253 = vadd.s32 %v2035, 4294967192
        %v2254 = vlaneseq
        %v2255 = vshrl.u32 %v2254, 7
        %v2256 = vsub.s32 %v2253, %v2255
        %v2257 = vrot.slane %v1919, %v2256
        %vm2258 = vcmask 917312
        %v2259 = vsel %vm2258, %v2257, %v2252
        %v2260 = vadd.s32 %v2035, 4294967184
        %v2261 = vlaneseq
        %v2262 = vshrl.u32 %v2261, 7
        %v2263 = vsub.s32 %v2260, %v2262
        %v2264 = vrot.slane %v1920, %v2263
        %vm2265 = vcmask 982912
        %v2266 = vsel %vm2265, %v2264, %v2259
        %v2267 = vadd.s32 %v2035, 4294967176
        %v2268 = vlaneseq
        %v2269 = vshrl.u32 %v2268, 7
        %v2270 = vsub.s32 %v2267, %v2269
        %v2271 = vrot.slane %v1921, %v2270
        %vm2272 = vcmask 1048512
        %v2273 = vsel %vm2272, %v2271, %v2266
        %v2274 = vlaneseq
        %v2275 = vshrl.u32 %v2274, 7
        %v2276 = vsub.s32 %v2035, %v2275
        %v2277 = vrot.slane %v1922, %v2276
        %v2278 = vlaneseq
        %v2279 = vshrl.u32 %v2278, 7
        %v2280 = vsub.s32 %v2169, %v2279
        %v2281 = vrot.slane %v1923, %v2280
        %v2282 = vsel %vm2174, %v2281, %v2277
        %v2283 = vlaneseq
        %v2284 = vshrl.u32 %v2283, 7
        %v2285 = vsub.s32 %v2176, %v2284
        %v2286 = vrot.slane %v1924, %v2285
        %v2287 = vsel %vm2181, %v2286, %v2282
        %v2288 = vlaneseq
        %v2289 = vshrl.u32 %v2288, 7
        %v2290 = vsub.s32 %v2183, %v2289
        %v2291 = vrot.slane %v1925, %v2290
        %v2292 = vsel %vm2188, %v2291, %v2287
        %v2293 = vlaneseq
        %v2294 = vshrl.u32 %v2293, 7
        %v2295 = vsub.s32 %v2190, %v2294
        %v2296 = vrot.slane %v1926, %v2295
        %v2297 = vsel %vm2195, %v2296, %v2292
        %v2298 = vlaneseq
        %v2299 = vshrl.u32 %v2298, 7
        %v2300 = vsub.s32 %v2197, %v2299
        %v2301 = vrot.slane %v1927, %v2300
        %v2302 = vsel %vm2202, %v2301, %v2297
        %v2303 = vlaneseq
        %v2304 = vshrl.u32 %v2303, 7
        %v2305 = vsub.s32 %v2204, %v2304
        %v2306 = vrot.slane %v1928, %v2305
        %v2307 = vsel %vm2209, %v2306, %v2302
        %v2308 = vlaneseq
        %v2309 = vshrl.u32 %v2308, 7
        %v2310 = vsub.s32 %v2211, %v2309
        %v2311 = vrot.slane %v1929, %v2310
        %v2312 = vsel %vm2216, %v2311, %v2307
        %v2313 = vlaneseq
        %v2314 = vshrl.u32 %v2313, 7
        %v2315 = vsub.s32 %v2218, %v2314
        %v2316 = vrot.slane %v1930, %v2315
        %v2317 = vsel %vm2223, %v2316, %v2312
        %v2318 = vlaneseq
        %v2319 = vshrl.u32 %v2318, 7
        %v2320 = vsub.s32 %v2225, %v2319
        %v2321 = vrot.slane %v1931, %v2320
        %v2322 = vsel %vm2230, %v2321, %v2317
        %v2323 = vlaneseq
        %v2324 = vshrl.u32 %v2323, 7
        %v2325 = vsub.s32 %v2232, %v2324
        %v2326 = vrot.slane %v1932, %v2325
        %v2327 = vsel %vm2237, %v2326, %v2322
        %v2328 = vlaneseq
        %v2329 = vshrl.u32 %v2328, 7
        %v2330 = vsub.s32 %v2239, %v2329
        %v2331 = vrot.slane %v1933, %v2330
        %v2332 = vsel %vm2244, %v2331, %v2327
        %v2333 = vlaneseq
        %v2334 = vshrl.u32 %v2333, 7
        %v2335 = vsub.s32 %v2246, %v2334
        %v2336 = vrot.slane %v1934, %v2335
        %v2337 = vsel %vm2251, %v2336, %v2332
        %v2338 = vlaneseq
        %v2339 = vshrl.u32 %v2338, 7
        %v2340 = vsub.s32 %v2253, %v2339
        %v2341 = vrot.slane %v1935, %v2340
        %v2342 = vsel %vm2258, %v2341, %v2337
        %v2343 = vlaneseq
        %v2344 = vshrl.u32 %v2343, 7
        %v2345 = vsub.s32 %v2260, %v2344
        %v2346 = vrot.slane %v1936, %v2345
        %v2347 = vsel %vm2265, %v2346, %v2342
        %v2348 = vlaneseq
        %v2349 = vshrl.u32 %v2348, 7
        %v2350 = vsub.s32 %v2267, %v2349
        %v2351 = vrot.slane %v1937, %v2350
        %v2352 = vsel %vm2272, %v2351, %v2347
        %v2353 = vlaneseq
        %v2354 = vshrl.u32 %v2353, 7
        %v2355 = vsub.s32 %v2035, %v2354
        %v2356 = vrot.slane %v1938, %v2355
        %v2357 = vlaneseq
        %v2358 = vshrl.u32 %v2357, 7
        %v2359 = vsub.s32 %v2169, %v2358
        %v2360 = vrot.slane %v1939, %v2359
        %v2361 = vsel %vm2174, %v2360, %v2356
        %v2362 = vlaneseq
        %v2363 = vshrl.u32 %v2362, 7
        %v2364 = vsub.s32 %v2176, %v2363
        %v2365 = vrot.slane %v1940, %v2364
        %v2366 = vsel %vm2181, %v2365, %v2361
        %v2367 = vlaneseq
        %v2368 = vshrl.u32 %v2367, 7
        %v2369 = vsub.s32 %v2183, %v2368
        %v2370 = vrot.slane %v1941, %v2369
        %v2371 = vsel %vm2188, %v2370, %v2366
        %v2372 = vlaneseq
        %v2373 = vshrl.u32 %v2372, 7
        %v2374 = vsub.s32 %v2190, %v2373
        %v2375 = vrot.slane %v1942, %v2374
        %v2376 = vsel %vm2195, %v2375, %v2371
        %v2377 = vlaneseq
        %v2378 = vshrl.u32 %v2377, 7
        %v2379 = vsub.s32 %v2197, %v2378
        %v2380 = vrot.slane %v1943, %v2379
        %v2381 = vsel %vm2202, %v2380, %v2376
        %v2382 = vlaneseq
        %v2383 = vshrl.u32 %v2382, 7
        %v2384 = vsub.s32 %v2204, %v2383
        %v2385 = vrot.slane %v1944, %v2384
        %v2386 = vsel %vm2209, %v2385, %v2381
        %v2387 = vlaneseq
        %v2388 = vshrl.u32 %v2387, 7
        %v2389 = vsub.s32 %v2211, %v2388
        %v2390 = vrot.slane %v1945, %v2389
        %v2391 = vsel %vm2216, %v2390, %v2386
        %v2392 = vlaneseq
        %v2393 = vshrl.u32 %v2392, 7
        %v2394 = vsub.s32 %v2218, %v2393
        %v2395 = vrot.slane %v1946, %v2394
        %v2396 = vsel %vm2223, %v2395, %v2391
        %v2397 = vlaneseq
        %v2398 = vshrl.u32 %v2397, 7
        %v2399 = vsub.s32 %v2225, %v2398
        %v2400 = vrot.slane %v1947, %v2399
        %v2401 = vsel %vm2230, %v2400, %v2396
        %v2402 = vlaneseq
        %v2403 = vshrl.u32 %v2402, 7
        %v2404 = vsub.s32 %v2232, %v2403
        %v2405 = vrot.slane %v1948, %v2404
        %v2406 = vsel %vm2237, %v2405, %v2401
        %v2407 = vlaneseq
        %v2408 = vshrl.u32 %v2407, 7
        %v2409 = vsub.s32 %v2239, %v2408
        %v2410 = vrot.slane %v1949, %v2409
        %v2411 = vsel %vm2244, %v2410, %v2406
        %v2412 = vlaneseq
        %v2413 = vshrl.u32 %v2412, 7
        %v2414 = vsub.s32 %v2246, %v2413
        %v2415 = vrot.slane %v1950, %v2414
        %v2416 = vsel %vm2251, %v2415, %v2411
        %v2417 = vlaneseq
        %v2418 = vshrl.u32 %v2417, 7
        %v2419 = vsub.s32 %v2253, %v2418
        %v2420 = vrot.slane %v1951, %v2419
        %v2421 = vsel %vm2258, %v2420, %v2416
        %v2422 = vlaneseq
        %v2423 = vshrl.u32 %v2422, 7
        %v2424 = vsub.s32 %v2260, %v2423
        %v2425 = vrot.slane %v1952, %v2424
        %v2426 = vsel %vm2265, %v2425, %v2421
        %v2427 = vlaneseq
        %v2428 = vshrl.u32 %v2427, 7
        %v2429 = vsub.s32 %v2267, %v2428
        %v2430 = vrot.slane %v1953, %v2429
        %v2431 = vsel %vm2272, %v2430, %v2426
        %v2432 = vlaneseq
        %v2433 = vshrl.u32 %v2432, 7
        %v2434 = vsub.s32 %v2035, %v2433
        %v2435 = vrot.slane %v1954, %v2434
        %v2436 = vlaneseq
        %v2437 = vshrl.u32 %v2436, 7
        %v2438 = vsub.s32 %v2169, %v2437
        %v2439 = vrot.slane %v1955, %v2438
        %v2440 = vsel %vm2174, %v2439, %v2435
        %v2441 = vlaneseq
        %v2442 = vshrl.u32 %v2441, 7
        %v2443 = vsub.s32 %v2176, %v2442
        %v2444 = vrot.slane %v1956, %v2443
        %v2445 = vsel %vm2181, %v2444, %v2440
        %v2446 = vlaneseq
        %v2447 = vshrl.u32 %v2446, 7
        %v2448 = vsub.s32 %v2183, %v2447
        %v2449 = vrot.slane %v1957, %v2448
        %v2450 = vsel %vm2188, %v2449, %v2445
        %v2451 = vlaneseq
        %v2452 = vshrl.u32 %v2451, 7
        %v2453 = vsub.s32 %v2190, %v2452
        %v2454 = vrot.slane %v1958, %v2453
        %v2455 = vsel %vm2195, %v2454, %v2450
        %v2456 = vlaneseq
        %v2457 = vshrl.u32 %v2456, 7
        %v2458 = vsub.s32 %v2197, %v2457
        %v2459 = vrot.slane %v1959, %v2458
        %v2460 = vsel %vm2202, %v2459, %v2455
        %v2461 = vlaneseq
        %v2462 = vshrl.u32 %v2461, 7
        %v2463 = vsub.s32 %v2204, %v2462
        %v2464 = vrot.slane %v1960, %v2463
        %v2465 = vsel %vm2209, %v2464, %v2460
        %v2466 = vlaneseq
        %v2467 = vshrl.u32 %v2466, 7
        %v2468 = vsub.s32 %v2211, %v2467
        %v2469 = vrot.slane %v1961, %v2468
        %v2470 = vsel %vm2216, %v2469, %v2465
        %v2471 = vlaneseq
        %v2472 = vshrl.u32 %v2471, 7
        %v2473 = vsub.s32 %v2218, %v2472
        %v2474 = vrot.slane %v1962, %v2473
        %v2475 = vsel %vm2223, %v2474, %v2470
        %v2476 = vlaneseq
        %v2477 = vshrl.u32 %v2476, 7
        %v2478 = vsub.s32 %v2225, %v2477
        %v2479 = vrot.slane %v1963, %v2478
        %v2480 = vsel %vm2230, %v2479, %v2475
        %v2481 = vlaneseq
        %v2482 = vshrl.u32 %v2481, 7
        %v2483 = vsub.s32 %v2232, %v2482
        %v2484 = vrot.slane %v1964, %v2483
        %v2485 = vsel %vm2237, %v2484, %v2480
        %v2486 = vlaneseq
        %v2487 = vshrl.u32 %v2486, 7
        %v2488 = vsub.s32 %v2239, %v2487
        %v2489 = vrot.slane %v1965, %v2488
        %v2490 = vsel %vm2244, %v2489, %v2485
        %v2491 = vlaneseq
        %v2492 = vshrl.u32 %v2491, 7
        %v2493 = vsub.s32 %v2246, %v2492
        %v2494 = vrot.slane %v1966, %v2493
        %v2495 = vsel %vm2251, %v2494, %v2490
        %v2496 = vlaneseq
        %v2497 = vshrl.u32 %v2496, 7
        %v2498 = vsub.s32 %v2253, %v2497
        %v2499 = vrot.slane %v1967, %v2498
        %v2500 = vsel %vm2258, %v2499, %v2495
        %v2501 = vlaneseq
        %v2502 = vshrl.u32 %v2501, 7
        %v2503 = vsub.s32 %v2260, %v2502
        %v2504 = vrot.slane %v1968, %v2503
        %v2505 = vsel %vm2265, %v2504, %v2500
        %v2506 = vlaneseq
        %v2507 = vshrl.u32 %v2506, 7
        %v2508 = vsub.s32 %v2267, %v2507
        %v2509 = vrot.slane %v1969, %v2508
        %v2510 = vsel %vm2272, %v2509, %v2505
        %v2511 = vlaneseq
        %v2512 = vshrl.u32 %v2511, 7
        %v2513 = vsub.s32 %v2035, %v2512
        %v2514 = vrot.slane %v1970, %v2513
        %v2515 = vlaneseq
        %v2516 = vshrl.u32 %v2515, 7
        %v2517 = vsub.s32 %v2169, %v2516
        %v2518 = vrot.slane %v1971, %v2517
        %v2519 = vsel %vm2174, %v2518, %v2514
        %v2520 = vlaneseq
        %v2521 = vshrl.u32 %v2520, 7
        %v2522 = vsub.s32 %v2176, %v2521
        %v2523 = vrot.slane %v1972, %v2522
        %v2524 = vsel %vm2181, %v2523, %v2519
        %v2525 = vlaneseq
        %v2526 = vshrl.u32 %v2525, 7
        %v2527 = vsub.s32 %v2183, %v2526
        %v2528 = vrot.slane %v1973, %v2527
        %v2529 = vsel %vm2188, %v2528, %v2524
        %v2530 = vlaneseq
        %v2531 = vshrl.u32 %v2530, 7
        %v2532 = vsub.s32 %v2190, %v2531
        %v2533 = vrot.slane %v1974, %v2532
        %v2534 = vsel %vm2195, %v2533, %v2529
        %v2535 = vlaneseq
        %v2536 = vshrl.u32 %v2535, 7
        %v2537 = vsub.s32 %v2197, %v2536
        %v2538 = vrot.slane %v1975, %v2537
        %v2539 = vsel %vm2202, %v2538, %v2534
        %v2540 = vlaneseq
        %v2541 = vshrl.u32 %v2540, 7
        %v2542 = vsub.s32 %v2204, %v2541
        %v2543 = vrot.slane %v1976, %v2542
        %v2544 = vsel %vm2209, %v2543, %v2539
        %v2545 = vlaneseq
        %v2546 = vshrl.u32 %v2545, 7
        %v2547 = vsub.s32 %v2211, %v2546
        %v2548 = vrot.slane %v1977, %v2547
        %v2549 = vsel %vm2216, %v2548, %v2544
        %v2550 = vlaneseq
        %v2551 = vshrl.u32 %v2550, 7
        %v2552 = vsub.s32 %v2218, %v2551
        %v2553 = vrot.slane %v1978, %v2552
        %v2554 = vsel %vm2223, %v2553, %v2549
        %v2555 = vlaneseq
        %v2556 = vshrl.u32 %v2555, 7
        %v2557 = vsub.s32 %v2225, %v2556
        %v2558 = vrot.slane %v1979, %v2557
        %v2559 = vsel %vm2230, %v2558, %v2554
        %v2560 = vlaneseq
        %v2561 = vshrl.u32 %v2560, 7
        %v2562 = vsub.s32 %v2232, %v2561
        %v2563 = vrot.slane %v1980, %v2562
        %v2564 = vsel %vm2237, %v2563, %v2559
        %v2565 = vlaneseq
        %v2566 = vshrl.u32 %v2565, 7
        %v2567 = vsub.s32 %v2239, %v2566
        %v2568 = vrot.slane %v1981, %v2567
        %v2569 = vsel %vm2244, %v2568, %v2564
        %v2570 = vlaneseq
        %v2571 = vshrl.u32 %v2570, 7
        %v2572 = vsub.s32 %v2246, %v2571
        %v2573 = vrot.slane %v1982, %v2572
        %v2574 = vsel %vm2251, %v2573, %v2569
        %v2575 = vlaneseq
        %v2576 = vshrl.u32 %v2575, 7
        %v2577 = vsub.s32 %v2253, %v2576
        %v2578 = vrot.slane %v1983, %v2577
        %v2579 = vsel %vm2258, %v2578, %v2574
        %v2580 = vlaneseq
        %v2581 = vshrl.u32 %v2580, 7
        %v2582 = vsub.s32 %v2260, %v2581
        %v2583 = vrot.slane %v1984, %v2582
        %v2584 = vsel %vm2265, %v2583, %v2579
        %v2585 = vlaneseq
        %v2586 = vshrl.u32 %v2585, 7
        %v2587 = vsub.s32 %v2267, %v2586
        %v2588 = vrot.slane %v1985, %v2587
        %v2589 = vsel %vm2272, %v2588, %v2584
        %v2590 = vlaneseq
        %v2591 = vshrl.u32 %v2590, 7
        %v2592 = vsub.s32 %v2035, %v2591
        %v2593 = vrot.slane %v1986, %v2592
        %v2594 = vlaneseq
        %v2595 = vshrl.u32 %v2594, 7
        %v2596 = vsub.s32 %v2169, %v2595
        %v2597 = vrot.slane %v1987, %v2596
        %v2598 = vsel %vm2174, %v2597, %v2593
        %v2599 = vlaneseq
        %v2600 = vshrl.u32 %v2599, 7
        %v2601 = vsub.s32 %v2176, %v2600
        %v2602 = vrot.slane %v1988, %v2601
        %v2603 = vsel %vm2181, %v2602, %v2598
        %v2604 = vlaneseq
        %v2605 = vshrl.u32 %v2604, 7
        %v2606 = vsub.s32 %v2183, %v2605
        %v2607 = vrot.slane %v1989, %v2606
        %v2608 = vsel %vm2188, %v2607, %v2603
        %v2609 = vlaneseq
        %v2610 = vshrl.u32 %v2609, 7
        %v2611 = vsub.s32 %v2190, %v2610
        %v2612 = vrot.slane %v1990, %v2611
        %v2613 = vsel %vm2195, %v2612, %v2608
        %v2614 = vlaneseq
        %v2615 = vshrl.u32 %v2614, 7
        %v2616 = vsub.s32 %v2197, %v2615
        %v2617 = vrot.slane %v1991, %v2616
        %v2618 = vsel %vm2202, %v2617, %v2613
        %v2619 = vlaneseq
        %v2620 = vshrl.u32 %v2619, 7
        %v2621 = vsub.s32 %v2204, %v2620
        %v2622 = vrot.slane %v1992, %v2621
        %v2623 = vsel %vm2209, %v2622, %v2618
        %v2624 = vlaneseq
        %v2625 = vshrl.u32 %v2624, 7
        %v2626 = vsub.s32 %v2211, %v2625
        %v2627 = vrot.slane %v1993, %v2626
        %v2628 = vsel %vm2216, %v2627, %v2623
        %v2629 = vlaneseq
        %v2630 = vshrl.u32 %v2629, 7
        %v2631 = vsub.s32 %v2218, %v2630
        %v2632 = vrot.slane %v1994, %v2631
        %v2633 = vsel %vm2223, %v2632, %v2628
        %v2634 = vlaneseq
        %v2635 = vshrl.u32 %v2634, 7
        %v2636 = vsub.s32 %v2225, %v2635
        %v2637 = vrot.slane %v1995, %v2636
        %v2638 = vsel %vm2230, %v2637, %v2633
        %v2639 = vlaneseq
        %v2640 = vshrl.u32 %v2639, 7
        %v2641 = vsub.s32 %v2232, %v2640
        %v2642 = vrot.slane %v1996, %v2641
        %v2643 = vsel %vm2237, %v2642, %v2638
        %v2644 = vlaneseq
        %v2645 = vshrl.u32 %v2644, 7
        %v2646 = vsub.s32 %v2239, %v2645
        %v2647 = vrot.slane %v1997, %v2646
        %v2648 = vsel %vm2244, %v2647, %v2643
        %v2649 = vlaneseq
        %v2650 = vshrl.u32 %v2649, 7
        %v2651 = vsub.s32 %v2246, %v2650
        %v2652 = vrot.slane %v1998, %v2651
        %v2653 = vsel %vm2251, %v2652, %v2648
        %v2654 = vlaneseq
        %v2655 = vshrl.u32 %v2654, 7
        %v2656 = vsub.s32 %v2253, %v2655
        %v2657 = vrot.slane %v1999, %v2656
        %v2658 = vsel %vm2258, %v2657, %v2653
        %v2659 = vlaneseq
        %v2660 = vshrl.u32 %v2659, 7
        %v2661 = vsub.s32 %v2260, %v2660
        %v2662 = vrot.slane %v2000, %v2661
        %v2663 = vsel %vm2265, %v2662, %v2658
        %v2664 = vlaneseq
        %v2665 = vshrl.u32 %v2664, 7
        %v2666 = vsub.s32 %v2267, %v2665
        %v2667 = vrot.slane %v2001, %v2666
        %v2668 = vsel %vm2272, %v2667, %v2663
        %v2669 = vlaneseq
        %v2670 = vshrl.u32 %v2669, 7
        %v2671 = vsub.s32 %v2035, %v2670
        %v2672 = vrot.slane %v2002, %v2671
        %v2673 = vlaneseq
        %v2674 = vshrl.u32 %v2673, 7
        %v2675 = vsub.s32 %v2169, %v2674
        %v2676 = vrot.slane %v2003, %v2675
        %v2677 = vsel %vm2174, %v2676, %v2672
        %v2678 = vlaneseq
        %v2679 = vshrl.u32 %v2678, 7
        %v2680 = vsub.s32 %v2176, %v2679
        %v2681 = vrot.slane %v2004, %v2680
        %v2682 = vsel %vm2181, %v2681, %v2677
        %v2683 = vlaneseq
        %v2684 = vshrl.u32 %v2683, 7
        %v2685 = vsub.s32 %v2183, %v2684
        %v2686 = vrot.slane %v2005, %v2685
        %v2687 = vsel %vm2188, %v2686, %v2682
        %v2688 = vlaneseq
        %v2689 = vshrl.u32 %v2688, 7
        %v2690 = vsub.s32 %v2190, %v2689
        %v2691 = vrot.slane %v2006, %v2690
        %v2692 = vsel %vm2195, %v2691, %v2687
        %v2693 = vlaneseq
        %v2694 = vshrl.u32 %v2693, 7
        %v2695 = vsub.s32 %v2197, %v2694
        %v2696 = vrot.slane %v2007, %v2695
        %v2697 = vsel %vm2202, %v2696, %v2692
        %v2698 = vlaneseq
        %v2699 = vshrl.u32 %v2698, 7
        %v2700 = vsub.s32 %v2204, %v2699
        %v2701 = vrot.slane %v2008, %v2700
        %v2702 = vsel %vm2209, %v2701, %v2697
        %v2703 = vlaneseq
        %v2704 = vshrl.u32 %v2703, 7
        %v2705 = vsub.s32 %v2211, %v2704
        %v2706 = vrot.slane %v2009, %v2705
        %v2707 = vsel %vm2216, %v2706, %v2702
        %v2708 = vlaneseq
        %v2709 = vshrl.u32 %v2708, 7
        %v2710 = vsub.s32 %v2218, %v2709
        %v2711 = vrot.slane %v2010, %v2710
        %v2712 = vsel %vm2223, %v2711, %v2707
        %v2713 = vlaneseq
        %v2714 = vshrl.u32 %v2713, 7
        %v2715 = vsub.s32 %v2225, %v2714
        %v2716 = vrot.slane %v2011, %v2715
        %v2717 = vsel %vm2230, %v2716, %v2712
        %v2718 = vlaneseq
        %v2719 = vshrl.u32 %v2718, 7
        %v2720 = vsub.s32 %v2232, %v2719
        %v2721 = vrot.slane %v2012, %v2720
        %v2722 = vsel %vm2237, %v2721, %v2717
        %v2723 = vlaneseq
        %v2724 = vshrl.u32 %v2723, 7
        %v2725 = vsub.s32 %v2239, %v2724
        %v2726 = vrot.slane %v2013, %v2725
        %v2727 = vsel %vm2244, %v2726, %v2722
        %v2728 = vlaneseq
        %v2729 = vshrl.u32 %v2728, 7
        %v2730 = vsub.s32 %v2246, %v2729
        %v2731 = vrot.slane %v2014, %v2730
        %v2732 = vsel %vm2251, %v2731, %v2727
        %v2733 = vlaneseq
        %v2734 = vshrl.u32 %v2733, 7
        %v2735 = vsub.s32 %v2253, %v2734
        %v2736 = vrot.slane %v2015, %v2735
        %v2737 = vsel %vm2258, %v2736, %v2732
        %v2738 = vlaneseq
        %v2739 = vshrl.u32 %v2738, 7
        %v2740 = vsub.s32 %v2260, %v2739
        %v2741 = vrot.slane %v2016, %v2740
        %v2742 = vsel %vm2265, %v2741, %v2737
        %v2743 = vlaneseq
        %v2744 = vshrl.u32 %v2743, 7
        %v2745 = vsub.s32 %v2267, %v2744
        %v2746 = vrot.slane %v2017, %v2745
        %v2747 = vsel %vm2272, %v2746, %v2742
        %v2748 = vlaneseq
        %v2749 = vshrl.u32 %v2748, 7
        %v2750 = vsub.s32 %v2035, %v2749
        %v2751 = vrot.slane %v2018, %v2750
        %v2752 = vlaneseq
        %v2753 = vshrl.u32 %v2752, 7
        %v2754 = vsub.s32 %v2169, %v2753
        %v2755 = vrot.slane %v2019, %v2754
        %v2756 = vsel %vm2174, %v2755, %v2751
        %v2757 = vlaneseq
        %v2758 = vshrl.u32 %v2757, 7
        %v2759 = vsub.s32 %v2176, %v2758
        %v2760 = vrot.slane %v2020, %v2759
        %v2761 = vsel %vm2181, %v2760, %v2756
        %v2762 = vlaneseq
        %v2763 = vshrl.u32 %v2762, 7
        %v2764 = vsub.s32 %v2183, %v2763
        %v2765 = vrot.slane %v2021, %v2764
        %v2766 = vsel %vm2188, %v2765, %v2761
        %v2767 = vlaneseq
        %v2768 = vshrl.u32 %v2767, 7
        %v2769 = vsub.s32 %v2190, %v2768
        %v2770 = vrot.slane %v2022, %v2769
        %v2771 = vsel %vm2195, %v2770, %v2766
        %v2772 = vlaneseq
        %v2773 = vshrl.u32 %v2772, 7
        %v2774 = vsub.s32 %v2197, %v2773
        %v2775 = vrot.slane %v2023, %v2774
        %v2776 = vsel %vm2202, %v2775, %v2771
        %v2777 = vlaneseq
        %v2778 = vshrl.u32 %v2777, 7
        %v2779 = vsub.s32 %v2204, %v2778
        %v2780 = vrot.slane %v2024, %v2779
        %v2781 = vsel %vm2209, %v2780, %v2776
        %v2782 = vlaneseq
        %v2783 = vshrl.u32 %v2782, 7
        %v2784 = vsub.s32 %v2211, %v2783
        %v2785 = vrot.slane %v2025, %v2784
        %v2786 = vsel %vm2216, %v2785, %v2781
        %v2787 = vlaneseq
        %v2788 = vshrl.u32 %v2787, 7
        %v2789 = vsub.s32 %v2218, %v2788
        %v2790 = vrot.slane %v2026, %v2789
        %v2791 = vsel %vm2223, %v2790, %v2786
        %v2792 = vlaneseq
        %v2793 = vshrl.u32 %v2792, 7
        %v2794 = vsub.s32 %v2225, %v2793
        %v2795 = vrot.slane %v2027, %v2794
        %v2796 = vsel %vm2230, %v2795, %v2791
        %v2797 = vlaneseq
        %v2798 = vshrl.u32 %v2797, 7
        %v2799 = vsub.s32 %v2232, %v2798
        %v2800 = vrot.slane %v2028, %v2799
        %v2801 = vsel %vm2237, %v2800, %v2796
        %v2802 = vlaneseq
        %v2803 = vshrl.u32 %v2802, 7
        %v2804 = vsub.s32 %v2239, %v2803
        %v2805 = vrot.slane %v2029, %v2804
        %v2806 = vsel %vm2244, %v2805, %v2801
        %v2807 = vlaneseq
        %v2808 = vshrl.u32 %v2807, 7
        %v2809 = vsub.s32 %v2246, %v2808
        %v2810 = vrot.slane %v2030, %v2809
        %v2811 = vsel %vm2251, %v2810, %v2806
        %v2812 = vlaneseq
        %v2813 = vshrl.u32 %v2812, 7
        %v2814 = vsub.s32 %v2253, %v2813
        %v2815 = vrot.slane %v2031, %v2814
        %v2816 = vsel %vm2258, %v2815, %v2811
        %v2817 = vlaneseq
        %v2818 = vshrl.u32 %v2817, 7
        %v2819 = vsub.s32 %v2260, %v2818
        %v2820 = vrot.slane %v2032, %v2819
        %v2821 = vsel %vm2265, %v2820, %v2816
        %v2822 = vlaneseq
        %v2823 = vshrl.u32 %v2822, 7
        %v2824 = vsub.s32 %v2267, %v2823
        %v2825 = vrot.slane %v2033, %v2824
        %v2826 = vsel %vm2272, %v2825, %v2821
        %vm2827 = vcmask 1041409
        %v2828 = vsel %vm2827, %v2352, %v2273
        %vm2829 = vcmask 1042434
        %v2830 = vsel %vm2829, %v2431, %v2828
        %vm2831 = vcmask 1043459
        %v2832 = vsel %vm2831, %v2510, %v2830
        %vm2833 = vcmask 1044484
        %v2834 = vsel %vm2833, %v2589, %v2832
        %vm2835 = vcmask 1045509
        %v2836 = vsel %vm2835, %v2668, %v2834
        %vm2837 = vcmask 1046534
        %v2838 = vsel %vm2837, %v2747, %v2836
        %vm2839 = vcmask 1047559
        %v2840 = vsel %vm2839, %v2826, %v2838
        %v2842 = vsel %vm2036, %v2840, -1e+30
        %2843 = vmax.xlane.f32.xlu0 %v2842
        %v2844 = vpop.xlane.xlu0 %2843
        %v2845 = vsub.f32 %v2842, %v2844
        %v2846 = vmul.f32 %v2845, 1.442695
        %v2847 = vpow.pop %v2846
        %2848 = vadd.xlane.f32.xlu0 %v2847
        %v2849 = vpop.xlane.xlu0 %2848
        %v2850 = vrcp.pop %v2849
        %v2851 = vmul.f32 %v2847, %v2850
        %v2852 = vlaneseq
        %v2853 = vshrl.u32 %v2852, 7
        %v2854 = vsub.s32 0, %v2853
        %v2855 = vrot.slane %v2851, %v2854
        %2857 = vbcast.lane.b32.xlu0 %v2855, 256
        %v2858 = vpop.permute.xlu0 %2857
        %s2860 = sor.u32 256, 8
        %2861 = vbcast.lane.b32.xlu0 %v2855, %s2860
        %v2862 = vpop.permute.xlu0 %2861
        %s2864 = sor.u32 256, 16
        %2865 = vbcast.lane.b32.xlu0 %v2855, %s2864
        %v2866 = vpop.permute.xlu0 %2865
        %s2868 = sor.u32 256, 24
        %2869 = vbcast.lane.b32.xlu0 %v2855, %s2868
        %v2870 = vpop.permute.xlu0 %2869
        %s2872 = sor.u32 256, 32
        %2873 = vbcast.lane.b32.xlu0 %v2855, %s2872
        %v2874 = vpop.permute.xlu0 %2873
        %s2876 = sor.u32 256, 40
        %2877 = vbcast.lane.b32.xlu0 %v2855, %s2876
        %v2878 = vpop.permute.xlu0 %2877
        %s2880 = sor.u32 256, 48
        %2881 = vbcast.lane.b32.xlu0 %v2855, %s2880
        %v2882 = vpop.permute.xlu0 %2881
        %s2884 = sor.u32 256, 56
        %2885 = vbcast.lane.b32.xlu0 %v2855, %s2884
        %v2886 = vpop.permute.xlu0 %2885
        %s2888 = sor.u32 256, 64
        %2889 = vbcast.lane.b32.xlu0 %v2855, %s2888
        %v2890 = vpop.permute.xlu0 %2889
        %s2892 = sor.u32 256, 72
        %2893 = vbcast.lane.b32.xlu0 %v2855, %s2892
        %v2894 = vpop.permute.xlu0 %2893
        %s2896 = sor.u32 256, 80
        %2897 = vbcast.lane.b32.xlu0 %v2855, %s2896
        %v2898 = vpop.permute.xlu0 %2897
        %s2900 = sor.u32 256, 88
        %2901 = vbcast.lane.b32.xlu0 %v2855, %s2900
        %v2902 = vpop.permute.xlu0 %2901
        %s2904 = sor.u32 256, 96
        %2905 = vbcast.lane.b32.xlu0 %v2855, %s2904
        %v2906 = vpop.permute.xlu0 %2905
        %s2908 = sor.u32 256, 104
        %2909 = vbcast.lane.b32.xlu0 %v2855, %s2908
        %v2910 = vpop.permute.xlu0 %2909
        %s2912 = sor.u32 256, 112
        %2913 = vbcast.lane.b32.xlu0 %v2855, %s2912
        %v2914 = vpop.permute.xlu0 %2913
        %s2916 = sor.u32 256, 120
        %2917 = vbcast.lane.b32.xlu0 %v2855, %s2916
        %v2918 = vpop.permute.xlu0 %2917
        %v2919 = vlaneseq
        %v2920 = vshrl.u32 %v2919, 7
        %v2921 = vsub.s32 1, %v2920
        %v2922 = vrot.slane %v2851, %v2921
        %2924 = vbcast.lane.b32.xlu0 %v2922, 256
        %v2925 = vpop.permute.xlu0 %2924
        %s2927 = sor.u32 256, 8
        %2928 = vbcast.lane.b32.xlu0 %v2922, %s2927
        %v2929 = vpop.permute.xlu0 %2928
        %s2931 = sor.u32 256, 16
        %2932 = vbcast.lane.b32.xlu0 %v2922, %s2931
        %v2933 = vpop.permute.xlu0 %2932
        %s2935 = sor.u32 256, 24
        %2936 = vbcast.lane.b32.xlu0 %v2922, %s2935
        %v2937 = vpop.permute.xlu0 %2936
        %s2939 = sor.u32 256, 32
        %2940 = vbcast.lane.b32.xlu0 %v2922, %s2939
        %v2941 = vpop.permute.xlu0 %2940
        %s2943 = sor.u32 256, 40
        %2944 = vbcast.lane.b32.xlu0 %v2922, %s2943
        %v2945 = vpop.permute.xlu0 %2944
        %s2947 = sor.u32 256, 48
        %2948 = vbcast.lane.b32.xlu0 %v2922, %s2947
        %v2949 = vpop.permute.xlu0 %2948
        %s2951 = sor.u32 256, 56
        %2952 = vbcast.lane.b32.xlu0 %v2922, %s2951
        %v2953 = vpop.permute.xlu0 %2952
        %s2955 = sor.u32 256, 64
        %2956 = vbcast.lane.b32.xlu0 %v2922, %s2955
        %v2957 = vpop.permute.xlu0 %2956
        %s2959 = sor.u32 256, 72
        %2960 = vbcast.lane.b32.xlu0 %v2922, %s2959
        %v2961 = vpop.permute.xlu0 %2960
        %s2963 = sor.u32 256, 80
        %2964 = vbcast.lane.b32.xlu0 %v2922, %s2963
        %v2965 = vpop.permute.xlu0 %2964
        %s2967 = sor.u32 256, 88
        %2968 = vbcast.lane.b32.xlu0 %v2922, %s2967
        %v2969 = vpop.permute.xlu0 %2968
        %s2971 = sor.u32 256, 96
        %2972 = vbcast.lane.b32.xlu0 %v2922, %s2971
        %v2973 = vpop.permute.xlu0 %2972
        %s2975 = sor.u32 256, 104
        %2976 = vbcast.lane.b32.xlu0 %v2922, %s2975
        %v2977 = vpop.permute.xlu0 %2976
        %s2979 = sor.u32 256, 112
        %2980 = vbcast.lane.b32.xlu0 %v2922, %s2979
        %v2981 = vpop.permute.xlu0 %2980
        %s2983 = sor.u32 256, 120
        %2984 = vbcast.lane.b32.xlu0 %v2922, %s2983
        %v2985 = vpop.permute.xlu0 %2984
        %v2986 = vlaneseq
        %v2987 = vshrl.u32 %v2986, 7
        %v2988 = vsub.s32 2, %v2987
        %v2989 = vrot.slane %v2851, %v2988
        %2991 = vbcast.lane.b32.xlu0 %v2989, 256
        %v2992 = vpop.permute.xlu0 %2991
        %s2994 = sor.u32 256, 8
        %2995 = vbcast.lane.b32.xlu0 %v2989, %s2994
        %v2996 = vpop.permute.xlu0 %2995
        %s2998 = sor.u32 256, 16
        %2999 = vbcast.lane.b32.xlu0 %v2989, %s2998
        %v3000 = vpop.permute.xlu0 %2999
        %s3002 = sor.u32 256, 24
        %3003 = vbcast.lane.b32.xlu0 %v2989, %s3002
        %v3004 = vpop.permute.xlu0 %3003
        %s3006 = sor.u32 256, 32
        %3007 = vbcast.lane.b32.xlu0 %v2989, %s3006
        %v3008 = vpop.permute.xlu0 %3007
        %s3010 = sor.u32 256, 40
        %3011 = vbcast.lane.b32.xlu0 %v2989, %s3010
        %v3012 = vpop.permute.xlu0 %3011
        %s3014 = sor.u32 256, 48
        %3015 = vbcast.lane.b32.xlu0 %v2989, %s3014
        %v3016 = vpop.permute.xlu0 %3015
        %s3018 = sor.u32 256, 56
        %3019 = vbcast.lane.b32.xlu0 %v2989, %s3018
        %v3020 = vpop.permute.xlu0 %3019
        %s3022 = sor.u32 256, 64
        %3023 = vbcast.lane.b32.xlu0 %v2989, %s3022
        %v3024 = vpop.permute.xlu0 %3023
        %s3026 = sor.u32 256, 72
        %3027 = vbcast.lane.b32.xlu0 %v2989, %s3026
        %v3028 = vpop.permute.xlu0 %3027
        %s3030 = sor.u32 256, 80
        %3031 = vbcast.lane.b32.xlu0 %v2989, %s3030
        %v3032 = vpop.permute.xlu0 %3031
        %s3034 = sor.u32 256, 88
        %3035 = vbcast.lane.b32.xlu0 %v2989, %s3034
        %v3036 = vpop.permute.xlu0 %3035
        %s3038 = sor.u32 256, 96
        %3039 = vbcast.lane.b32.xlu0 %v2989, %s3038
        %v3040 = vpop.permute.xlu0 %3039
        %s3042 = sor.u32 256, 104
        %3043 = vbcast.lane.b32.xlu0 %v2989, %s3042
        %v3044 = vpop.permute.xlu0 %3043
        %s3046 = sor.u32 256, 112
        %3047 = vbcast.lane.b32.xlu0 %v2989, %s3046
        %v3048 = vpop.permute.xlu0 %3047
        %s3050 = sor.u32 256, 120
        %3051 = vbcast.lane.b32.xlu0 %v2989, %s3050
        %v3052 = vpop.permute.xlu0 %3051
        %v3053 = vlaneseq
        %v3054 = vshrl.u32 %v3053, 7
        %v3055 = vsub.s32 3, %v3054
        %v3056 = vrot.slane %v2851, %v3055
        %3058 = vbcast.lane.b32.xlu0 %v3056, 256
        %v3059 = vpop.permute.xlu0 %3058
        %s3061 = sor.u32 256, 8
        %3062 = vbcast.lane.b32.xlu0 %v3056, %s3061
        %v3063 = vpop.permute.xlu0 %3062
        %s3065 = sor.u32 256, 16
        %3066 = vbcast.lane.b32.xlu0 %v3056, %s3065
        %v3067 = vpop.permute.xlu0 %3066
        %s3069 = sor.u32 256, 24
        %3070 = vbcast.lane.b32.xlu0 %v3056, %s3069
        %v3071 = vpop.permute.xlu0 %3070
        %s3073 = sor.u32 256, 32
        %3074 = vbcast.lane.b32.xlu0 %v3056, %s3073
        %v3075 = vpop.permute.xlu0 %3074
        %s3077 = sor.u32 256, 40
        %3078 = vbcast.lane.b32.xlu0 %v3056, %s3077
        %v3079 = vpop.permute.xlu0 %3078
        %s3081 = sor.u32 256, 48
        %3082 = vbcast.lane.b32.xlu0 %v3056, %s3081
        %v3083 = vpop.permute.xlu0 %3082
        %s3085 = sor.u32 256, 56
        %3086 = vbcast.lane.b32.xlu0 %v3056, %s3085
        %v3087 = vpop.permute.xlu0 %3086
        %s3089 = sor.u32 256, 64
        %3090 = vbcast.lane.b32.xlu0 %v3056, %s3089
        %v3091 = vpop.permute.xlu0 %3090
        %s3093 = sor.u32 256, 72
        %3094 = vbcast.lane.b32.xlu0 %v3056, %s3093
        %v3095 = vpop.permute.xlu0 %3094
        %s3097 = sor.u32 256, 80
        %3098 = vbcast.lane.b32.xlu0 %v3056, %s3097
        %v3099 = vpop.permute.xlu0 %3098
        %s3101 = sor.u32 256, 88
        %3102 = vbcast.lane.b32.xlu0 %v3056, %s3101
        %v3103 = vpop.permute.xlu0 %3102
        %s3105 = sor.u32 256, 96
        %3106 = vbcast.lane.b32.xlu0 %v3056, %s3105
        %v3107 = vpop.permute.xlu0 %3106
        %s3109 = sor.u32 256, 104
        %3110 = vbcast.lane.b32.xlu0 %v3056, %s3109
        %v3111 = vpop.permute.xlu0 %3110
        %s3113 = sor.u32 256, 112
        %3114 = vbcast.lane.b32.xlu0 %v3056, %s3113
        %v3115 = vpop.permute.xlu0 %3114
        %s3117 = sor.u32 256, 120
        %3118 = vbcast.lane.b32.xlu0 %v3056, %s3117
        %v3119 = vpop.permute.xlu0 %3118
        %v3120 = vlaneseq
        %v3121 = vshrl.u32 %v3120, 7
        %v3122 = vsub.s32 4, %v3121
        %v3123 = vrot.slane %v2851, %v3122
        %3125 = vbcast.lane.b32.xlu0 %v3123, 256
        %v3126 = vpop.permute.xlu0 %3125
        %s3128 = sor.u32 256, 8
        %3129 = vbcast.lane.b32.xlu0 %v3123, %s3128
        %v3130 = vpop.permute.xlu0 %3129
        %s3132 = sor.u32 256, 16
        %3133 = vbcast.lane.b32.xlu0 %v3123, %s3132
        %v3134 = vpop.permute.xlu0 %3133
        %s3136 = sor.u32 256, 24
        %3137 = vbcast.lane.b32.xlu0 %v3123, %s3136
        %v3138 = vpop.permute.xlu0 %3137
        %s3140 = sor.u32 256, 32
        %3141 = vbcast.lane.b32.xlu0 %v3123, %s3140
        %v3142 = vpop.permute.xlu0 %3141
        %s3144 = sor.u32 256, 40
        %3145 = vbcast.lane.b32.xlu0 %v3123, %s3144
        %v3146 = vpop.permute.xlu0 %3145
        %s3148 = sor.u32 256, 48
        %3149 = vbcast.lane.b32.xlu0 %v3123, %s3148
        %v3150 = vpop.permute.xlu0 %3149
        %s3152 = sor.u32 256, 56
        %3153 = vbcast.lane.b32.xlu0 %v3123, %s3152
        %v3154 = vpop.permute.xlu0 %3153
        %s3156 = sor.u32 256, 64
        %3157 = vbcast.lane.b32.xlu0 %v3123, %s3156
        %v3158 = vpop.permute.xlu0 %3157
        %s3160 = sor.u32 256, 72
        %3161 = vbcast.lane.b32.xlu0 %v3123, %s3160
        %v3162 = vpop.permute.xlu0 %3161
        %s3164 = sor.u32 256, 80
        %3165 = vbcast.lane.b32.xlu0 %v3123, %s3164
        %v3166 = vpop.permute.xlu0 %3165
        %s3168 = sor.u32 256, 88
        %3169 = vbcast.lane.b32.xlu0 %v3123, %s3168
        %v3170 = vpop.permute.xlu0 %3169
        %s3172 = sor.u32 256, 96
        %3173 = vbcast.lane.b32.xlu0 %v3123, %s3172
        %v3174 = vpop.permute.xlu0 %3173
        %s3176 = sor.u32 256, 104
        %3177 = vbcast.lane.b32.xlu0 %v3123, %s3176
        %v3178 = vpop.permute.xlu0 %3177
        %s3180 = sor.u32 256, 112
        %3181 = vbcast.lane.b32.xlu0 %v3123, %s3180
        %v3182 = vpop.permute.xlu0 %3181
        %s3184 = sor.u32 256, 120
        %3185 = vbcast.lane.b32.xlu0 %v3123, %s3184
        %v3186 = vpop.permute.xlu0 %3185
        %v3187 = vlaneseq
        %v3188 = vshrl.u32 %v3187, 7
        %v3189 = vsub.s32 5, %v3188
        %v3190 = vrot.slane %v2851, %v3189
        %3192 = vbcast.lane.b32.xlu0 %v3190, 256
        %v3193 = vpop.permute.xlu0 %3192
        %s3195 = sor.u32 256, 8
        %3196 = vbcast.lane.b32.xlu0 %v3190, %s3195
        %v3197 = vpop.permute.xlu0 %3196
        %s3199 = sor.u32 256, 16
        %3200 = vbcast.lane.b32.xlu0 %v3190, %s3199
        %v3201 = vpop.permute.xlu0 %3200
        %s3203 = sor.u32 256, 24
        %3204 = vbcast.lane.b32.xlu0 %v3190, %s3203
        %v3205 = vpop.permute.xlu0 %3204
        %s3207 = sor.u32 256, 32
        %3208 = vbcast.lane.b32.xlu0 %v3190, %s3207
        %v3209 = vpop.permute.xlu0 %3208
        %s3211 = sor.u32 256, 40
        %3212 = vbcast.lane.b32.xlu0 %v3190, %s3211
        %v3213 = vpop.permute.xlu0 %3212
        %s3215 = sor.u32 256, 48
        %3216 = vbcast.lane.b32.xlu0 %v3190, %s3215
        %v3217 = vpop.permute.xlu0 %3216
        %s3219 = sor.u32 256, 56
        %3220 = vbcast.lane.b32.xlu0 %v3190, %s3219
        %v3221 = vpop.permute.xlu0 %3220
        %s3223 = sor.u32 256, 64
        %3224 = vbcast.lane.b32.xlu0 %v3190, %s3223
        %v3225 = vpop.permute.xlu0 %3224
        %s3227 = sor.u32 256, 72
        %3228 = vbcast.lane.b32.xlu0 %v3190, %s3227
        %v3229 = vpop.permute.xlu0 %3228
        %s3231 = sor.u32 256, 80
        %3232 = vbcast.lane.b32.xlu0 %v3190, %s3231
        %v3233 = vpop.permute.xlu0 %3232
        %s3235 = sor.u32 256, 88
        %3236 = vbcast.lane.b32.xlu0 %v3190, %s3235
        %v3237 = vpop.permute.xlu0 %3236
        %s3239 = sor.u32 256, 96
        %3240 = vbcast.lane.b32.xlu0 %v3190, %s3239
        %v3241 = vpop.permute.xlu0 %3240
        %s3243 = sor.u32 256, 104
        %3244 = vbcast.lane.b32.xlu0 %v3190, %s3243
        %v3245 = vpop.permute.xlu0 %3244
        %s3247 = sor.u32 256, 112
        %3248 = vbcast.lane.b32.xlu0 %v3190, %s3247
        %v3249 = vpop.permute.xlu0 %3248
        %s3251 = sor.u32 256, 120
        %3252 = vbcast.lane.b32.xlu0 %v3190, %s3251
        %v3253 = vpop.permute.xlu0 %3252
        %v3254 = vlaneseq
        %v3255 = vshrl.u32 %v3254, 7
        %v3256 = vsub.s32 6, %v3255
        %v3257 = vrot.slane %v2851, %v3256
        %3259 = vbcast.lane.b32.xlu0 %v3257, 256
        %v3260 = vpop.permute.xlu0 %3259
        %s3262 = sor.u32 256, 8
        %3263 = vbcast.lane.b32.xlu0 %v3257, %s3262
        %v3264 = vpop.permute.xlu0 %3263
        %s3266 = sor.u32 256, 16
        %3267 = vbcast.lane.b32.xlu0 %v3257, %s3266
        %v3268 = vpop.permute.xlu0 %3267
        %s3270 = sor.u32 256, 24
        %3271 = vbcast.lane.b32.xlu0 %v3257, %s3270
        %v3272 = vpop.permute.xlu0 %3271
        %s3274 = sor.u32 256, 32
        %3275 = vbcast.lane.b32.xlu0 %v3257, %s3274
        %v3276 = vpop.permute.xlu0 %3275
        %s3278 = sor.u32 256, 40
        %3279 = vbcast.lane.b32.xlu0 %v3257, %s3278
        %v3280 = vpop.permute.xlu0 %3279
        %s3282 = sor.u32 256, 48
        %3283 = vbcast.lane.b32.xlu0 %v3257, %s3282
        %v3284 = vpop.permute.xlu0 %3283
        %s3286 = sor.u32 256, 56
        %3287 = vbcast.lane.b32.xlu0 %v3257, %s3286
        %v3288 = vpop.permute.xlu0 %3287
        %s3290 = sor.u32 256, 64
        %3291 = vbcast.lane.b32.xlu0 %v3257, %s3290
        %v3292 = vpop.permute.xlu0 %3291
        %s3294 = sor.u32 256, 72
        %3295 = vbcast.lane.b32.xlu0 %v3257, %s3294
        %v3296 = vpop.permute.xlu0 %3295
        %s3298 = sor.u32 256, 80
        %3299 = vbcast.lane.b32.xlu0 %v3257, %s3298
        %v3300 = vpop.permute.xlu0 %3299
        %s3302 = sor.u32 256, 88
        %3303 = vbcast.lane.b32.xlu0 %v3257, %s3302
        %v3304 = vpop.permute.xlu0 %3303
        %s3306 = sor.u32 256, 96
        %3307 = vbcast.lane.b32.xlu0 %v3257, %s3306
        %v3308 = vpop.permute.xlu0 %3307
        %s3310 = sor.u32 256, 104
        %3311 = vbcast.lane.b32.xlu0 %v3257, %s3310
        %v3312 = vpop.permute.xlu0 %3311
        %s3314 = sor.u32 256, 112
        %3315 = vbcast.lane.b32.xlu0 %v3257, %s3314
        %v3316 = vpop.permute.xlu0 %3315
        %s3318 = sor.u32 256, 120
        %3319 = vbcast.lane.b32.xlu0 %v3257, %s3318
        %v3320 = vpop.permute.xlu0 %3319
        %v3321 = vlaneseq
        %v3322 = vshrl.u32 %v3321, 7
        %v3323 = vsub.s32 7, %v3322
        %v3324 = vrot.slane %v2851, %v3323
        %3326 = vbcast.lane.b32.xlu0 %v3324, 256
        %v3327 = vpop.permute.xlu0 %3326
        %s3329 = sor.u32 256, 8
        %3330 = vbcast.lane.b32.xlu0 %v3324, %s3329
        %v3331 = vpop.permute.xlu0 %3330
        %s3333 = sor.u32 256, 16
        %3334 = vbcast.lane.b32.xlu0 %v3324, %s3333
        %v3335 = vpop.permute.xlu0 %3334
        %s3337 = sor.u32 256, 24
        %3338 = vbcast.lane.b32.xlu0 %v3324, %s3337
        %v3339 = vpop.permute.xlu0 %3338
        %s3341 = sor.u32 256, 32
        %3342 = vbcast.lane.b32.xlu0 %v3324, %s3341
        %v3343 = vpop.permute.xlu0 %3342
        %s3345 = sor.u32 256, 40
        %3346 = vbcast.lane.b32.xlu0 %v3324, %s3345
        %v3347 = vpop.permute.xlu0 %3346
        %s3349 = sor.u32 256, 48
        %3350 = vbcast.lane.b32.xlu0 %v3324, %s3349
        %v3351 = vpop.permute.xlu0 %3350
        %s3353 = sor.u32 256, 56
        %3354 = vbcast.lane.b32.xlu0 %v3324, %s3353
        %v3355 = vpop.permute.xlu0 %3354
        %s3357 = sor.u32 256, 64
        %3358 = vbcast.lane.b32.xlu0 %v3324, %s3357
        %v3359 = vpop.permute.xlu0 %3358
        %s3361 = sor.u32 256, 72
        %3362 = vbcast.lane.b32.xlu0 %v3324, %s3361
        %v3363 = vpop.permute.xlu0 %3362
        %s3365 = sor.u32 256, 80
        %3366 = vbcast.lane.b32.xlu0 %v3324, %s3365
        %v3367 = vpop.permute.xlu0 %3366
        %s3369 = sor.u32 256, 88
        %3370 = vbcast.lane.b32.xlu0 %v3324, %s3369
        %v3371 = vpop.permute.xlu0 %3370
        %s3373 = sor.u32 256, 96
        %3374 = vbcast.lane.b32.xlu0 %v3324, %s3373
        %v3375 = vpop.permute.xlu0 %3374
        %s3377 = sor.u32 256, 104
        %3378 = vbcast.lane.b32.xlu0 %v3324, %s3377
        %v3379 = vpop.permute.xlu0 %3378
        %s3381 = sor.u32 256, 112
        %3382 = vbcast.lane.b32.xlu0 %v3324, %s3381
        %v3383 = vpop.permute.xlu0 %3382
        %s3385 = sor.u32 256, 120
        %3386 = vbcast.lane.b32.xlu0 %v3324, %s3385
        %v3387 = vpop.permute.xlu0 %3386
        %v3388 = vmul.f32 %v817, %v2858
        %v3389 = vmul.f32 %v818, %v2862
        %v3390 = vmul.f32 %v819, %v2866
        %v3391 = vmul.f32 %v820, %v2870
        %v3392 = vmul.f32 %v821, %v2874
        %v3393 = vmul.f32 %v822, %v2878
        %v3394 = vmul.f32 %v823, %v2882
        %v3395 = vmul.f32 %v824, %v2886
        %v3396 = vmul.f32 %v825, %v2890
        %v3397 = vmul.f32 %v826, %v2894
        %v3398 = vmul.f32 %v827, %v2898
        %v3399 = vmul.f32 %v828, %v2902
        %v3400 = vmul.f32 %v829, %v2906
        %v3401 = vmul.f32 %v830, %v2910
        %v3402 = vmul.f32 %v831, %v2914
        %v3403 = vmul.f32 %v832, %v2918
        %v3404 = vmul.f32 %v833, %v2925
        %v3405 = vmul.f32 %v834, %v2929
        %v3406 = vmul.f32 %v835, %v2933
        %v3407 = vmul.f32 %v836, %v2937
        %v3408 = vmul.f32 %v837, %v2941
        %v3409 = vmul.f32 %v838, %v2945
        %v3410 = vmul.f32 %v839, %v2949
        %v3411 = vmul.f32 %v840, %v2953
        %v3412 = vmul.f32 %v841, %v2957
        %v3413 = vmul.f32 %v842, %v2961
        %v3414 = vmul.f32 %v843, %v2965
        %v3415 = vmul.f32 %v844, %v2969
        %v3416 = vmul.f32 %v845, %v2973
        %v3417 = vmul.f32 %v846, %v2977
        %v3418 = vmul.f32 %v847, %v2981
        %v3419 = vmul.f32 %v848, %v2985
        %v3420 = vmul.f32 %v849, %v2992
        %v3421 = vmul.f32 %v850, %v2996
        %v3422 = vmul.f32 %v851, %v3000
        %v3423 = vmul.f32 %v852, %v3004
        %v3424 = vmul.f32 %v853, %v3008
        %v3425 = vmul.f32 %v854, %v3012
        %v3426 = vmul.f32 %v855, %v3016
        %v3427 = vmul.f32 %v856, %v3020
        %v3428 = vmul.f32 %v857, %v3024
        %v3429 = vmul.f32 %v858, %v3028
        %v3430 = vmul.f32 %v859, %v3032
        %v3431 = vmul.f32 %v860, %v3036
        %v3432 = vmul.f32 %v861, %v3040
        %v3433 = vmul.f32 %v862, %v3044
        %v3434 = vmul.f32 %v863, %v3048
        %v3435 = vmul.f32 %v864, %v3052
        %v3436 = vmul.f32 %v865, %v3059
        %v3437 = vmul.f32 %v866, %v3063
        %v3438 = vmul.f32 %v867, %v3067
        %v3439 = vmul.f32 %v868, %v3071
        %v3440 = vmul.f32 %v869, %v3075
        %v3441 = vmul.f32 %v870, %v3079
        %v3442 = vmul.f32 %v871, %v3083
        %v3443 = vmul.f32 %v872, %v3087
        %v3444 = vmul.f32 %v873, %v3091
        %v3445 = vmul.f32 %v874, %v3095
        %v3446 = vmul.f32 %v875, %v3099
        %v3447 = vmul.f32 %v876, %v3103
        %v3448 = vmul.f32 %v877, %v3107
        %v3449 = vmul.f32 %v878, %v3111
        %v3450 = vmul.f32 %v879, %v3115
        %v3451 = vmul.f32 %v880, %v3119
        %v3452 = vmul.f32 %v881, %v3126
        %v3453 = vmul.f32 %v882, %v3130
        %v3454 = vmul.f32 %v883, %v3134
        %v3455 = vmul.f32 %v884, %v3138
        %v3456 = vmul.f32 %v885, %v3142
        %v3457 = vmul.f32 %v886, %v3146
        %v3458 = vmul.f32 %v887, %v3150
        %v3459 = vmul.f32 %v888, %v3154
        %v3460 = vmul.f32 %v889, %v3158
        %v3461 = vmul.f32 %v890, %v3162
        %v3462 = vmul.f32 %v891, %v3166
        %v3463 = vmul.f32 %v892, %v3170
        %v3464 = vmul.f32 %v893, %v3174
        %v3465 = vmul.f32 %v894, %v3178
        %v3466 = vmul.f32 %v895, %v3182
        %v3467 = vmul.f32 %v896, %v3186
        %v3468 = vmul.f32 %v897, %v3193
        %v3469 = vmul.f32 %v898, %v3197
        %v3470 = vmul.f32 %v899, %v3201
        %v3471 = vmul.f32 %v900, %v3205
        %v3472 = vmul.f32 %v901, %v3209
        %v3473 = vmul.f32 %v902, %v3213
        %v3474 = vmul.f32 %v903, %v3217
        %v3475 = vmul.f32 %v904, %v3221
        %v3476 = vmul.f32 %v905, %v3225
        %v3477 = vmul.f32 %v906, %v3229
        %v3478 = vmul.f32 %v907, %v3233
        %v3479 = vmul.f32 %v908, %v3237
        %v3480 = vmul.f32 %v909, %v3241
        %v3481 = vmul.f32 %v910, %v3245
        %v3482 = vmul.f32 %v911, %v3249
        %v3483 = vmul.f32 %v912, %v3253
        %v3484 = vmul.f32 %v913, %v3260
        %v3485 = vmul.f32 %v914, %v3264
        %v3486 = vmul.f32 %v915, %v3268
        %v3487 = vmul.f32 %v916, %v3272
        %v3488 = vmul.f32 %v917, %v3276
        %v3489 = vmul.f32 %v918, %v3280
        %v3490 = vmul.f32 %v919, %v3284
        %v3491 = vmul.f32 %v920, %v3288
        %v3492 = vmul.f32 %v921, %v3292
        %v3493 = vmul.f32 %v922, %v3296
        %v3494 = vmul.f32 %v923, %v3300
        %v3495 = vmul.f32 %v924, %v3304
        %v3496 = vmul.f32 %v925, %v3308
        %v3497 = vmul.f32 %v926, %v3312
        %v3498 = vmul.f32 %v927, %v3316
        %v3499 = vmul.f32 %v928, %v3320
        %v3500 = vmul.f32 %v929, %v3327
        %v3501 = vmul.f32 %v930, %v3331
        %v3502 = vmul.f32 %v931, %v3335
        %v3503 = vmul.f32 %v932, %v3339
        %v3504 = vmul.f32 %v933, %v3343
        %v3505 = vmul.f32 %v934, %v3347
        %v3506 = vmul.f32 %v935, %v3351
        %v3507 = vmul.f32 %v936, %v3355
        %v3508 = vmul.f32 %v937, %v3359
        %v3509 = vmul.f32 %v938, %v3363
        %v3510 = vmul.f32 %v939, %v3367
        %v3511 = vmul.f32 %v940, %v3371
        %v3512 = vmul.f32 %v941, %v3375
        %v3513 = vmul.f32 %v942, %v3379
        %v3514 = vmul.f32 %v943, %v3383
        %v3515 = vmul.f32 %v944, %v3387
        %v3516 = vadd.f32 %v3388, %v3389
        %v3517 = vadd.f32 %v3516, %v3390
        %v3518 = vadd.f32 %v3517, %v3391
        %v3519 = vadd.f32 %v3518, %v3392
        %v3520 = vadd.f32 %v3519, %v3393
        %v3521 = vadd.f32 %v3520, %v3394
        %v3522 = vadd.f32 %v3521, %v3395
        %v3523 = vadd.f32 %v3522, %v3396
        %v3524 = vadd.f32 %v3523, %v3397
        %v3525 = vadd.f32 %v3524, %v3398
        %v3526 = vadd.f32 %v3525, %v3399
        %v3527 = vadd.f32 %v3526, %v3400
        %v3528 = vadd.f32 %v3527, %v3401
        %v3529 = vadd.f32 %v3528, %v3402
        %v3530 = vadd.f32 %v3529, %v3403
        %v3531 = vrot.slane %v3530, 4
        %v3532 = vadd.f32 %v3530, %v3531
        %v3533 = vrot.slane %v3532, 2
        %v3534 = vadd.f32 %v3532, %v3533
        %v3535 = vrot.slane %v3534, 1
        %v3536 = vadd.f32 %v3534, %v3535
        %v3537 = vadd.f32 %v3404, %v3405
        %v3538 = vadd.f32 %v3537, %v3406
        %v3539 = vadd.f32 %v3538, %v3407
        %v3540 = vadd.f32 %v3539, %v3408
        %v3541 = vadd.f32 %v3540, %v3409
        %v3542 = vadd.f32 %v3541, %v3410
        %v3543 = vadd.f32 %v3542, %v3411
        %v3544 = vadd.f32 %v3543, %v3412
        %v3545 = vadd.f32 %v3544, %v3413
        %v3546 = vadd.f32 %v3545, %v3414
        %v3547 = vadd.f32 %v3546, %v3415
        %v3548 = vadd.f32 %v3547, %v3416
        %v3549 = vadd.f32 %v3548, %v3417
        %v3550 = vadd.f32 %v3549, %v3418
        %v3551 = vadd.f32 %v3550, %v3419
        %v3552 = vrot.slane %v3551, 4
        %v3553 = vadd.f32 %v3551, %v3552
        %v3554 = vrot.slane %v3553, 2
        %v3555 = vadd.f32 %v3553, %v3554
        %v3556 = vrot.slane %v3555, 1
        %v3557 = vadd.f32 %v3555, %v3556
        %v3558 = vadd.f32 %v3420, %v3421
        %v3559 = vadd.f32 %v3558, %v3422
        %v3560 = vadd.f32 %v3559, %v3423
        %v3561 = vadd.f32 %v3560, %v3424
        %v3562 = vadd.f32 %v3561, %v3425
        %v3563 = vadd.f32 %v3562, %v3426
        %v3564 = vadd.f32 %v3563, %v3427
        %v3565 = vadd.f32 %v3564, %v3428
        %v3566 = vadd.f32 %v3565, %v3429
        %v3567 = vadd.f32 %v3566, %v3430
        %v3568 = vadd.f32 %v3567, %v3431
        %v3569 = vadd.f32 %v3568, %v3432
        %v3570 = vadd.f32 %v3569, %v3433
        %v3571 = vadd.f32 %v3570, %v3434
        %v3572 = vadd.f32 %v3571, %v3435
        %v3573 = vrot.slane %v3572, 4
        %v3574 = vadd.f32 %v3572, %v3573
        %v3575 = vrot.slane %v3574, 2
        %v3576 = vadd.f32 %v3574, %v3575
        %v3577 = vrot.slane %v3576, 1
        %v3578 = vadd.f32 %v3576, %v3577
        %v3579 = vadd.f32 %v3436, %v3437
        %v3580 = vadd.f32 %v3579, %v3438
        %v3581 = vadd.f32 %v3580, %v3439
        %v3582 = vadd.f32 %v3581, %v3440
        %v3583 = vadd.f32 %v3582, %v3441
        %v3584 = vadd.f32 %v3583, %v3442
        %v3585 = vadd.f32 %v3584, %v3443
        %v3586 = vadd.f32 %v3585, %v3444
        %v3587 = vadd.f32 %v3586, %v3445
        %v3588 = vadd.f32 %v3587, %v3446
        %v3589 = vadd.f32 %v3588, %v3447
        %v3590 = vadd.f32 %v3589, %v3448
        %v3591 = vadd.f32 %v3590, %v3449
        %v3592 = vadd.f32 %v3591, %v3450
        %v3593 = vadd.f32 %v3592, %v3451
        %v3594 = vrot.slane %v3593, 4
        %v3595 = vadd.f32 %v3593, %v3594
        %v3596 = vrot.slane %v3595, 2
        %v3597 = vadd.f32 %v3595, %v3596
        %v3598 = vrot.slane %v3597, 1
        %v3599 = vadd.f32 %v3597, %v3598
        %v3600 = vadd.f32 %v3452, %v3453
        %v3601 = vadd.f32 %v3600, %v3454
        %v3602 = vadd.f32 %v3601, %v3455
        %v3603 = vadd.f32 %v3602, %v3456
        %v3604 = vadd.f32 %v3603, %v3457
        %v3605 = vadd.f32 %v3604, %v3458
        %v3606 = vadd.f32 %v3605, %v3459
        %v3607 = vadd.f32 %v3606, %v3460
        %v3608 = vadd.f32 %v3607, %v3461
        %v3609 = vadd.f32 %v3608, %v3462
        %v3610 = vadd.f32 %v3609, %v3463
        %v3611 = vadd.f32 %v3610, %v3464
        %v3612 = vadd.f32 %v3611, %v3465
        %v3613 = vadd.f32 %v3612, %v3466
        %v3614 = vadd.f32 %v3613, %v3467
        %v3615 = vrot.slane %v3614, 4
        %v3616 = vadd.f32 %v3614, %v3615
        %v3617 = vrot.slane %v3616, 2
        %v3618 = vadd.f32 %v3616, %v3617
        %v3619 = vrot.slane %v3618, 1
        %v3620 = vadd.f32 %v3618, %v3619
        %v3621 = vadd.f32 %v3468, %v3469
        %v3622 = vadd.f32 %v3621, %v3470
        %v3623 = vadd.f32 %v3622, %v3471
        %v3624 = vadd.f32 %v3623, %v3472
        %v3625 = vadd.f32 %v3624, %v3473
        %v3626 = vadd.f32 %v3625, %v3474
        %v3627 = vadd.f32 %v3626, %v3475
        %v3628 = vadd.f32 %v3627, %v3476
        %v3629 = vadd.f32 %v3628, %v3477
        %v3630 = vadd.f32 %v3629, %v3478
        %v3631 = vadd.f32 %v3630, %v3479
        %v3632 = vadd.f32 %v3631, %v3480
        %v3633 = vadd.f32 %v3632, %v3481
        %v3634 = vadd.f32 %v3633, %v3482
        %v3635 = vadd.f32 %v3634, %v3483
        %v3636 = vrot.slane %v3635, 4
        %v3637 = vadd.f32 %v3635, %v3636
        %v3638 = vrot.slane %v3637, 2
        %v3639 = vadd.f32 %v3637, %v3638
        %v3640 = vrot.slane %v3639, 1
        %v3641 = vadd.f32 %v3639, %v3640
        %v3642 = vadd.f32 %v3484, %v3485
        %v3643 = vadd.f32 %v3642, %v3486
        %v3644 = vadd.f32 %v3643, %v3487
        %v3645 = vadd.f32 %v3644, %v3488
        %v3646 = vadd.f32 %v3645, %v3489
        %v3647 = vadd.f32 %v3646, %v3490
        %v3648 = vadd.f32 %v3647, %v3491
        %v3649 = vadd.f32 %v3648, %v3492
        %v3650 = vadd.f32 %v3649, %v3493
        %v3651 = vadd.f32 %v3650, %v3494
        %v3652 = vadd.f32 %v3651, %v3495
        %v3653 = vadd.f32 %v3652, %v3496
        %v3654 = vadd.f32 %v3653, %v3497
        %v3655 = vadd.f32 %v3654, %v3498
        %v3656 = vadd.f32 %v3655, %v3499
        %v3657 = vrot.slane %v3656, 4
        %v3658 = vadd.f32 %v3656, %v3657
        %v3659 = vrot.slane %v3658, 2
        %v3660 = vadd.f32 %v3658, %v3659
        %v3661 = vrot.slane %v3660, 1
        %v3662 = vadd.f32 %v3660, %v3661
        %v3663 = vadd.f32 %v3500, %v3501
        %v3664 = vadd.f32 %v3663, %v3502
        %v3665 = vadd.f32 %v3664, %v3503
        %v3666 = vadd.f32 %v3665, %v3504
        %v3667 = vadd.f32 %v3666, %v3505
        %v3668 = vadd.f32 %v3667, %v3506
        %v3669 = vadd.f32 %v3668, %v3507
        %v3670 = vadd.f32 %v3669, %v3508
        %v3671 = vadd.f32 %v3670, %v3509
        %v3672 = vadd.f32 %v3671, %v3510
        %v3673 = vadd.f32 %v3672, %v3511
        %v3674 = vadd.f32 %v3673, %v3512
        %v3675 = vadd.f32 %v3674, %v3513
        %v3676 = vadd.f32 %v3675, %v3514
        %v3677 = vadd.f32 %v3676, %v3515
        %v3678 = vrot.slane %v3677, 4
        %v3679 = vadd.f32 %v3677, %v3678
        %v3680 = vrot.slane %v3679, 2
        %v3681 = vadd.f32 %v3679, %v3680
        %v3682 = vrot.slane %v3681, 1
        %v3683 = vadd.f32 %v3681, %v3682
        %v3684 = vld [vmem:[%s10] sm:$0xff]
        %v3685 = vld [vmem:[%s10 + $0x8] sm:$0xff]
        %v3686 = vld [vmem:[%s10 + $0x10] sm:$0xff]
        %v3687 = vld [vmem:[%s10 + $0x18] sm:$0xff]
        %v3688 = vld [vmem:[%s11] sm:$0x1]
        %v3690 = vlaneseq
        %v3691 = vshrl.u32 %v3690, 7
        %v3692 = vsub.s32 0, %v3691
        %v3693 = vrot.slane %v3688, %v3692
        %3695 = vmatprep.subr.mxu0 0.0
        %3696 = vmatpush1.msra.mxu0 %v3684
        %3697 = vmatprep.subr.mxu0 0.0
        %3698 = vmatpush1.msra.mxu0 %v3685
        %3699 = vmatprep.subr.mxu0 0.0
        %3700 = vmatpush1.msra.mxu0 %v3686
        %3701 = vmatprep.subr.mxu0 0.0
        %3702 = vmatpush1.msra.mxu0 %v3687
        %3703 = vmatprep.subr.mxu0 0.0
        %3704 = vmatpush1.msra.mxu0 0.0
        %3705 = vmatprep.subr.mxu0 0.0
        %3706 = vmatpush1.msra.mxu0 0.0
        %3707 = vmatprep.subr.mxu0 0.0
        %3708 = vmatpush1.msra.mxu0 0.0
        %3709 = vmatprep.subr.mxu0 0.0
        %3710 = vmatpush1.msra.mxu0 0.0
        %3711 = vmatprep.subr.mxu0 0.0
        %3712 = vmatpush1.msra.mxu0 0.0
        %3713 = vmatprep.subr.mxu0 0.0
        %3714 = vmatpush1.msra.mxu0 0.0
        %3715 = vmatprep.subr.mxu0 0.0
        %3716 = vmatpush1.msra.mxu0 0.0
        %3717 = vmatprep.subr.mxu0 0.0
        %3718 = vmatpush1.msra.mxu0 0.0
        %3719 = vmatprep.subr.mxu0 0.0
        %3720 = vmatpush1.msra.mxu0 0.0
        %3721 = vmatprep.subr.mxu0 0.0
        %3722 = vmatpush1.msra.mxu0 0.0
        %3723 = vmatprep.subr.mxu0 0.0
        %3724 = vmatpush1.msra.mxu0 0.0
        %3725 = vmatprep.subr.mxu0 0.0
        %3726 = vmatpush1.msra.mxu0 0.0
        %3727 = vmatprep.subr.mxu0 0.0
        %3728 = vmatpush1.msra.mxu0 0.0
        %3729 = vmatprep.subr.mxu0 0.0
        %3730 = vmatpush1.msra.mxu0 0.0
        %3731 = vmatprep.subr.mxu0 0.0
        %3732 = vmatpush1.msra.mxu0 0.0
        %3733 = vmatprep.subr.mxu0 0.0
        %3734 = vmatpush1.msra.mxu0 0.0
        %3735 = vmatprep.subr.mxu0 0.0
        %3736 = vmatpush1.msra.mxu0 0.0
        %3737 = vmatprep.subr.mxu0 0.0
        %3738 = vmatpush1.msra.mxu0 0.0
        %3739 = vmatprep.subr.mxu0 0.0
        %3740 = vmatpush1.msra.mxu0 0.0
        %3741 = vmatprep.subr.mxu0 0.0
        %3742 = vmatpush1.msra.mxu0 0.0
        %3743 = vmatprep.subr.mxu0 0.0
        %3744 = vmatpush1.msra.mxu0 0.0
        %3745 = vmatprep.subr.mxu0 0.0
        %3746 = vmatpush1.msra.mxu0 0.0
        %3747 = vmatprep.subr.mxu0 0.0
        %3748 = vmatpush1.msra.mxu0 0.0
        %3749 = vmatprep.subr.mxu0 0.0
        %3750 = vmatpush1.msra.mxu0 0.0
        %3751 = vmatprep.subr.mxu0 0.0
        %3752 = vmatpush1.msra.mxu0 0.0
        %3753 = vmatprep.subr.mxu0 0.0
        %3754 = vmatpush1.msra.mxu0 0.0
        %3755 = vmatprep.subr.mxu0 0.0
        %3756 = vmatpush1.msra.mxu0 0.0
        %3757 = vmatprep.subr.mxu0 0.0
        %3758 = vmatpush1.msra.mxu0 0.0
        %3759 = vmatprep.mubr.f32.mxu0 0.0
        %3760 = vmatmul.mubr.f32.gmra.mrb[0].mxu0 %v959
        %v3761 = vpop.f32.mrb[0].mxu0
        %v3762 = vadd.f32 %v3693, %v3761
        %v3763 = vpop.f32.mrb[0].mxu0
        %3764 = vdwg.mxu0
        %v3765 = vxor.u32 %v3762, 2147483648
        %v3766 = vmul.f32 %v3765, 1.442695
        %v3767 = vpow.pop %v3766
        %v3768 = vadd.f32 %v3767, 1.0
        %v3769 = vrcp.pop %v3768
        %v3770 = vmul.f32 1.0, %v3769
        %v3779 = vsel %vm2827, %v3557, %v3536
        %v3780 = vsel %vm2829, %v3578, %v3779
        %v3781 = vsel %vm2831, %v3599, %v3780
        %v3782 = vsel %vm2833, %v3620, %v3781
        %v3783 = vsel %vm2835, %v3641, %v3782
        %v3784 = vsel %vm2837, %v3662, %v3783
        %v3785 = vsel %vm2839, %v3683, %v3784
        %v3787 = vmul.f32 %v3770, %v3785
        %v3788 = vld [vmem:[%s12] sm:$0xff]
        %v3789 = vld [vmem:[%s12 + $0x8] sm:$0xff]
        %v3790 = vld [vmem:[%s12 + $0x10] sm:$0xff]
        %v3791 = vld [vmem:[%s12 + $0x18] sm:$0xff]
        %v3792 = vld [vmem:[%s13] sm:$0xff]
        %v3793 = vld [vmem:[%s13 + $0x8] sm:$0xff]
        %v3794 = vld [vmem:[%s13 + $0x10] sm:$0xff]
        %v3795 = vld [vmem:[%s13 + $0x18] sm:$0xff]
        %v3796 = vld [vmem:[%s13 + $0x20] sm:$0xff]
        %v3797 = vld [vmem:[%s13 + $0x28] sm:$0xff]
        %v3798 = vld [vmem:[%s13 + $0x30] sm:$0xff]
        %v3799 = vld [vmem:[%s13 + $0x38] sm:$0xff]
        %v3800 = vld [vmem:[%s13 + $0x40] sm:$0xff]
        %v3801 = vld [vmem:[%s13 + $0x48] sm:$0xff]
        %v3802 = vld [vmem:[%s13 + $0x50] sm:$0xff]
        %v3803 = vld [vmem:[%s13 + $0x58] sm:$0xff]
        %v3804 = vld [vmem:[%s13 + $0x60] sm:$0xff]
        %v3805 = vld [vmem:[%s13 + $0x68] sm:$0xff]
        %v3806 = vld [vmem:[%s13 + $0x70] sm:$0xff]
        %v3807 = vld [vmem:[%s13 + $0x78] sm:$0xff]
        %3808 = vmatprep.subr.mxu0 0.0
        %3809 = vmatpush1.msra.mxu0 %v3792
        %3810 = vmatprep.subr.mxu0 0.0
        %3811 = vmatpush1.msra.mxu0 %v3793
        %3812 = vmatprep.subr.mxu0 0.0
        %3813 = vmatpush1.msra.mxu0 %v3794
        %3814 = vmatprep.subr.mxu0 0.0
        %3815 = vmatpush1.msra.mxu0 %v3795
        %3816 = vmatprep.subr.mxu0 0.0
        %3817 = vmatpush1.msra.mxu0 %v3796
        %3818 = vmatprep.subr.mxu0 0.0
        %3819 = vmatpush1.msra.mxu0 %v3797
        %3820 = vmatprep.subr.mxu0 0.0
        %3821 = vmatpush1.msra.mxu0 %v3798
        %3822 = vmatprep.subr.mxu0 0.0
        %3823 = vmatpush1.msra.mxu0 %v3799
        %3824 = vmatprep.subr.mxu0 0.0
        %3825 = vmatpush1.msra.mxu0 %v3800
        %3826 = vmatprep.subr.mxu0 0.0
        %3827 = vmatpush1.msra.mxu0 %v3801
        %3828 = vmatprep.subr.mxu0 0.0
        %3829 = vmatpush1.msra.mxu0 %v3802
        %3830 = vmatprep.subr.mxu0 0.0
        %3831 = vmatpush1.msra.mxu0 %v3803
        %3832 = vmatprep.subr.mxu0 0.0
        %3833 = vmatpush1.msra.mxu0 %v3804
        %3834 = vmatprep.subr.mxu0 0.0
        %3835 = vmatpush1.msra.mxu0 %v3805
        %3836 = vmatprep.subr.mxu0 0.0
        %3837 = vmatpush1.msra.mxu0 %v3806
        %3838 = vmatprep.subr.mxu0 0.0
        %3839 = vmatpush1.msra.mxu0 %v3807
        %3840 = vmatprep.subr.mxu0 0.0
        %3841 = vmatpush1.msra.mxu0 0.0
        %3842 = vmatprep.subr.mxu0 0.0
        %3843 = vmatpush1.msra.mxu0 0.0
        %3844 = vmatprep.subr.mxu0 0.0
        %3845 = vmatpush1.msra.mxu0 0.0
        %3846 = vmatprep.subr.mxu0 0.0
        %3847 = vmatpush1.msra.mxu0 0.0
        %3848 = vmatprep.subr.mxu0 0.0
        %3849 = vmatpush1.msra.mxu0 0.0
        %3850 = vmatprep.subr.mxu0 0.0
        %3851 = vmatpush1.msra.mxu0 0.0
        %3852 = vmatprep.subr.mxu0 0.0
        %3853 = vmatpush1.msra.mxu0 0.0
        %3854 = vmatprep.subr.mxu0 0.0
        %3855 = vmatpush1.msra.mxu0 0.0
        %3856 = vmatprep.subr.mxu0 0.0
        %3857 = vmatpush1.msra.mxu0 0.0
        %3858 = vmatprep.subr.mxu0 0.0
        %3859 = vmatpush1.msra.mxu0 0.0
        %3860 = vmatprep.subr.mxu0 0.0
        %3861 = vmatpush1.msra.mxu0 0.0
        %3862 = vmatprep.subr.mxu0 0.0
        %3863 = vmatpush1.msra.mxu0 0.0
        %3864 = vmatprep.subr.mxu0 0.0
        %3865 = vmatpush1.msra.mxu0 0.0
        %3866 = vmatprep.subr.mxu0 0.0
        %3867 = vmatpush1.msra.mxu0 0.0
        %3868 = vmatprep.subr.mxu0 0.0
        %3869 = vmatpush1.msra.mxu0 0.0
        %3870 = vmatprep.subr.mxu0 0.0
        %3871 = vmatpush1.msra.mxu0 0.0
        %3872 = vmatprep.mubr.f32.mxu0 0.0
        %3873 = vmatmul.mubr.f32.gmra.mrb[0].mxu0 %v3787
        %v3874 = vpop.f32.mrb[0].mxu0
        %v3875 = vadd.f32 0.0, %v3874
        %v3876 = vpop.f32.mrb[0].mxu0
        %3877 = vdwg.mxu0
        %v3879 = vsel %vm957, %v945, 0
        %3881 = vmatprep.subr.mxu0 0.0
        %3882 = vmatpush1.msra.mxu0 %v3788
        %3883 = vmatprep.subr.mxu0 0.0
        %3884 = vmatpush1.msra.mxu0 %v3789
        %3885 = vmatprep.subr.mxu0 0.0
        %3886 = vmatpush1.msra.mxu0 %v3790
        %3887 = vmatprep.subr.mxu0 0.0
        %3888 = vmatpush1.msra.mxu0 %v3791
        %3889 = vmatprep.subr.mxu0 0.0
        %3890 = vmatpush1.msra.mxu0 0.0
        %3891 = vmatprep.subr.mxu0 0.0
        %3892 = vmatpush1.msra.mxu0 0.0
        %3893 = vmatprep.subr.mxu0 0.0
        %3894 = vmatpush1.msra.mxu0 0.0
        %3895 = vmatprep.subr.mxu0 0.0
        %3896 = vmatpush1.msra.mxu0 0.0
        %3897 = vmatprep.subr.mxu0 0.0
        %3898 = vmatpush1.msra.mxu0 0.0
        %3899 = vmatprep.subr.mxu0 0.0
        %3900 = vmatpush1.msra.mxu0 0.0
        %3901 = vmatprep.subr.mxu0 0.0
        %3902 = vmatpush1.msra.mxu0 0.0
        %3903 = vmatprep.subr.mxu0 0.0
        %3904 = vmatpush1.msra.mxu0 0.0
        %3905 = vmatprep.subr.mxu0 0.0
        %3906 = vmatpush1.msra.mxu0 0.0
        %3907 = vmatprep.subr.mxu0 0.0
        %3908 = vmatpush1.msra.mxu0 0.0
        %3909 = vmatprep.subr.mxu0 0.0
        %3910 = vmatpush1.msra.mxu0 0.0
        %3911 = vmatprep.subr.mxu0 0.0
        %3912 = vmatpush1.msra.mxu0 0.0
        %3913 = vmatprep.subr.mxu0 0.0
        %3914 = vmatpush1.msra.mxu0 0.0
        %3915 = vmatprep.subr.mxu0 0.0
        %3916 = vmatpush1.msra.mxu0 0.0
        %3917 = vmatprep.subr.mxu0 0.0
        %3918 = vmatpush1.msra.mxu0 0.0
        %3919 = vmatprep.subr.mxu0 0.0
        %3920 = vmatpush1.msra.mxu0 0.0
        %3921 = vmatprep.subr.mxu0 0.0
        %3922 = vmatpush1.msra.mxu0 0.0
        %3923 = vmatprep.subr.mxu0 0.0
        %3924 = vmatpush1.msra.mxu0 0.0
        %3925 = vmatprep.subr.mxu0 0.0
        %3926 = vmatpush1.msra.mxu0 0.0
        %3927 = vmatprep.subr.mxu0 0.0
        %3928 = vmatpush1.msra.mxu0 0.0
        %3929 = vmatprep.subr.mxu0 0.0
        %3930 = vmatpush1.msra.mxu0 0.0
        %3931 = vmatprep.subr.mxu0 0.0
        %3932 = vmatpush1.msra.mxu0 0.0
        %3933 = vmatprep.subr.mxu0 0.0
        %3934 = vmatpush1.msra.mxu0 0.0
        %3935 = vmatprep.subr.mxu0 0.0
        %3936 = vmatpush1.msra.mxu0 0.0
        %3937 = vmatprep.subr.mxu0 0.0
        %3938 = vmatpush1.msra.mxu0 0.0
        %3939 = vmatprep.subr.mxu0 0.0
        %3940 = vmatpush1.msra.mxu0 0.0
        %3941 = vmatprep.subr.mxu0 0.0
        %3942 = vmatpush1.msra.mxu0 0.0
        %3943 = vmatprep.subr.mxu0 0.0
        %3944 = vmatpush1.msra.mxu0 0.0
        %3945 = vmatprep.mubr.f32.mxu0 0.0
        %3946 = vmatmul.mubr.f32.gmra.mrb[0].mxu0 %v3879
        %v3947 = vpop.f32.mrb[0].mxu0
        %v3948 = vadd.f32 %v3875, %v3947
        %v3949 = vpop.f32.mrb[0].mxu0
        %3950 = vdwg.mxu0
        %v3951 = vld [vmem:[%s14] sm:$0x1]
        %v3953 = vlaneseq
        %v3954 = vshrl.u32 %v3953, 7
        %v3955 = vsub.s32 0, %v3954
        %v3956 = vrot.slane %v3951, %v3955
        %v3958 = vadd.f32 %v3948, %v3956
        %v3959 = vld [vmem:[%s15] sm:$0xff]
        %v3960 = vld [vmem:[%s15 + $0x8] sm:$0xff]
        %v3961 = vld [vmem:[%s15 + $0x10] sm:$0xff]
        %v3962 = vld [vmem:[%s15 + $0x18] sm:$0xff]
        %3963 = vmatprep.subr.mxu0 0.0
        %3964 = vmatpush1.msra.mxu0 %v3959
        %3965 = vmatprep.subr.mxu0 0.0
        %3966 = vmatpush1.msra.mxu0 %v3960
        %3967 = vmatprep.subr.mxu0 0.0
        %3968 = vmatpush1.msra.mxu0 %v3961
        %3969 = vmatprep.subr.mxu0 0.0
        %3970 = vmatpush1.msra.mxu0 %v3962
        %3971 = vmatprep.subr.mxu0 0.0
        %3972 = vmatpush1.msra.mxu0 0.0
        %3973 = vmatprep.subr.mxu0 0.0
        %3974 = vmatpush1.msra.mxu0 0.0
        %3975 = vmatprep.subr.mxu0 0.0
        %3976 = vmatpush1.msra.mxu0 0.0
        %3977 = vmatprep.subr.mxu0 0.0
        %3978 = vmatpush1.msra.mxu0 0.0
        %3979 = vmatprep.subr.mxu0 0.0
        %3980 = vmatpush1.msra.mxu0 0.0
        %3981 = vmatprep.subr.mxu0 0.0
        %3982 = vmatpush1.msra.mxu0 0.0
        %3983 = vmatprep.subr.mxu0 0.0
        %3984 = vmatpush1.msra.mxu0 0.0
        %3985 = vmatprep.subr.mxu0 0.0
        %3986 = vmatpush1.msra.mxu0 0.0
        %3987 = vmatprep.subr.mxu0 0.0
        %3988 = vmatpush1.msra.mxu0 0.0
        %3989 = vmatprep.subr.mxu0 0.0
        %3990 = vmatpush1.msra.mxu0 0.0
        %3991 = vmatprep.subr.mxu0 0.0
        %3992 = vmatpush1.msra.mxu0 0.0
        %3993 = vmatprep.subr.mxu0 0.0
        %3994 = vmatpush1.msra.mxu0 0.0
        %3995 = vmatprep.subr.mxu0 0.0
        %3996 = vmatpush1.msra.mxu0 0.0
        %3997 = vmatprep.subr.mxu0 0.0
        %3998 = vmatpush1.msra.mxu0 0.0
        %3999 = vmatprep.subr.mxu0 0.0
        %4000 = vmatpush1.msra.mxu0 0.0
        %4001 = vmatprep.subr.mxu0 0.0
        %4002 = vmatpush1.msra.mxu0 0.0
        %4003 = vmatprep.subr.mxu0 0.0
        %4004 = vmatpush1.msra.mxu0 0.0
        %4005 = vmatprep.subr.mxu0 0.0
        %4006 = vmatpush1.msra.mxu0 0.0
        %4007 = vmatprep.subr.mxu0 0.0
        %4008 = vmatpush1.msra.mxu0 0.0
        %4009 = vmatprep.subr.mxu0 0.0
        %4010 = vmatpush1.msra.mxu0 0.0
        %4011 = vmatprep.subr.mxu0 0.0
        %4012 = vmatpush1.msra.mxu0 0.0
        %4013 = vmatprep.subr.mxu0 0.0
        %4014 = vmatpush1.msra.mxu0 0.0
        %4015 = vmatprep.subr.mxu0 0.0
        %4016 = vmatpush1.msra.mxu0 0.0
        %4017 = vmatprep.subr.mxu0 0.0
        %4018 = vmatpush1.msra.mxu0 0.0
        %4019 = vmatprep.subr.mxu0 0.0
        %4020 = vmatpush1.msra.mxu0 0.0
        %4021 = vmatprep.subr.mxu0 0.0
        %4022 = vmatpush1.msra.mxu0 0.0
        %4023 = vmatprep.subr.mxu0 0.0
        %4024 = vmatpush1.msra.mxu0 0.0
        %4025 = vmatprep.subr.mxu0 0.0
        %4026 = vmatpush1.msra.mxu0 0.0
        %4027 = vmatprep.mubr.f32.mxu0 0.0
        %4028 = vmatmul.mubr.f32.gmra.mrb[0].mxu0 %v959
        %v4029 = vpop.f32.mrb[0].mxu0
        %v4030 = vadd.f32 0.0, %v4029
        %v4031 = vpop.f32.mrb[0].mxu0
        %4032 = vdwg.mxu0
        %v4033 = vadd.f32 %v3958, %v4030
        %v4034 = vld [vmem:[%s16] sm:$0x1]
        %v4036 = vlaneseq
        %v4037 = vshrl.u32 %v4036, 7
        %v4038 = vsub.s32 0, %v4037
        %v4039 = vrot.slane %v4034, %v4038
        %v4041 = vadd.f32 %v4033, %v4039
        %v4042 = vxor.u32 %v4041, 2147483648
        %v4043 = vmul.f32 %v4042, 1.442695
        %v4044 = vpow.pop %v4043
        %v4045 = vadd.f32 %v4044, 1.0
        %v4046 = vrcp.pop %v4045
        %v4047 = vmul.f32 1.0, %v4046
        %v4048 = vtanh.pop %v4041
        %4050 = vrot.lane.b32.xlu0 %v688, 32
        %v4051 = vpop.permute.xlu0 %4050
        %v4053 = vmul.f32 %v4047, %v4051
        %4055 = vrot.lane.b32.xlu0 %v4048, 64
        %v4056 = vpop.permute.xlu0 %4055
        %v4058 = vmul.f32 %v4047, %v4056
        %4060 = vrot.lane.b32.xlu0 %v4058, 32
        %v4061 = vpop.permute.xlu0 %4060
        %v4063 = vadd.f32 %v4053, %v4061
        %v4064 = vtanh.pop %v4063
        %4066 = vrot.lane.b32.xlu0 %v4064, 64
        %v4067 = vpop.permute.xlu0 %4066
        %v4069 = vmul.f32 %v4047, %v4067
        %4071 = vrot.lane.b32.xlu0 %v4069, 32
        %v4072 = vpop.permute.xlu0 %4071
        %4074 = vst.msk [vmem:[#allocation2] sm:$0xff] %vm957, %v4072
        %4076 = vrot.lane.b32.xlu0 %v4063, 96
        %v4077 = vpop.permute.xlu0 %4076
        %4079 = vst.msk [vmem:[#allocation3] sm:$0xff] %vm957, %v4077
        %v4080 = vld [vmem:[#allocation10] sm:$0xff]
        %v4081 = vld [vmem:[#allocation10 + $0x8] sm:$0xff]
        %v4082 = vld [vmem:[#allocation10 + $0x10] sm:$0xff]
        %v4083 = vld [vmem:[#allocation10 + $0x18] sm:$0xff]
        %v4084 = vld [vmem:[%s18] sm:$0x1]
        %v4086 = vlaneseq
        %v4087 = vshrl.u32 %v4086, 7
        %v4088 = vsub.s32 0, %v4087
        %v4089 = vrot.slane %v4084, %v4088
        %v4091 = vsel %vm957, %v4072, 0
        %4093 = vmatprep.subr.mxu0 0.0
        %4094 = vmatpush1.msra.mxu0 %v4080
        %4095 = vmatprep.subr.mxu0 0.0
        %4096 = vmatpush1.msra.mxu0 %v4081
        %4097 = vmatprep.subr.mxu0 0.0
        %4098 = vmatpush1.msra.mxu0 %v4082
        %4099 = vmatprep.subr.mxu0 0.0
        %4100 = vmatpush1.msra.mxu0 %v4083
        %4101 = vmatprep.subr.mxu0 0.0
        %4102 = vmatpush1.msra.mxu0 0.0
        %4103 = vmatprep.subr.mxu0 0.0
        %4104 = vmatpush1.msra.mxu0 0.0
        %4105 = vmatprep.subr.mxu0 0.0
        %4106 = vmatpush1.msra.mxu0 0.0
        %4107 = vmatprep.subr.mxu0 0.0
        %4108 = vmatpush1.msra.mxu0 0.0
        %4109 = vmatprep.subr.mxu0 0.0
        %4110 = vmatpush1.msra.mxu0 0.0
        %4111 = vmatprep.subr.mxu0 0.0
        %4112 = vmatpush1.msra.mxu0 0.0
        %4113 = vmatprep.subr.mxu0 0.0
        %4114 = vmatpush1.msra.mxu0 0.0
        %4115 = vmatprep.subr.mxu0 0.0
        %4116 = vmatpush1.msra.mxu0 0.0
        %4117 = vmatprep.subr.mxu0 0.0
        %4118 = vmatpush1.msra.mxu0 0.0
        %4119 = vmatprep.subr.mxu0 0.0
        %4120 = vmatpush1.msra.mxu0 0.0
        %4121 = vmatprep.subr.mxu0 0.0
        %4122 = vmatpush1.msra.mxu0 0.0
        %4123 = vmatprep.subr.mxu0 0.0
        %4124 = vmatpush1.msra.mxu0 0.0
        %4125 = vmatprep.subr.mxu0 0.0
        %4126 = vmatpush1.msra.mxu0 0.0
        %4127 = vmatprep.subr.mxu0 0.0
        %4128 = vmatpush1.msra.mxu0 0.0
        %4129 = vmatprep.subr.mxu0 0.0
        %4130 = vmatpush1.msra.mxu0 0.0
        %4131 = vmatprep.subr.mxu0 0.0
        %4132 = vmatpush1.msra.mxu0 0.0
        %4133 = vmatprep.subr.mxu0 0.0
        %4134 = vmatpush1.msra.mxu0 0.0
        %4135 = vmatprep.subr.mxu0 0.0
        %4136 = vmatpush1.msra.mxu0 0.0
        %4137 = vmatprep.subr.mxu0 0.0
        %4138 = vmatpush1.msra.mxu0 0.0
        %4139 = vmatprep.subr.mxu0 0.0
        %4140 = vmatpush1.msra.mxu0 0.0
        %4141 = vmatprep.subr.mxu0 0.0
        %4142 = vmatpush1.msra.mxu0 0.0
        %4143 = vmatprep.subr.mxu0 0.0
        %4144 = vmatpush1.msra.mxu0 0.0
        %4145 = vmatprep.subr.mxu0 0.0
        %4146 = vmatpush1.msra.mxu0 0.0
        %4147 = vmatprep.subr.mxu0 0.0
        %4148 = vmatpush1.msra.mxu0 0.0
        %4149 = vmatprep.subr.mxu0 0.0
        %4150 = vmatpush1.msra.mxu0 0.0
        %4151 = vmatprep.subr.mxu0 0.0
        %4152 = vmatpush1.msra.mxu0 0.0
        %4153 = vmatprep.subr.mxu0 0.0
        %4154 = vmatpush1.msra.mxu0 0.0
        %4155 = vmatprep.subr.mxu0 0.0
        %4156 = vmatpush1.msra.mxu0 0.0
        %4157 = vmatprep.mubr.f32.mxu0 0.0
        %4158 = vmatmul.mubr.f32.gmra.mrb[0].mxu0 %v4091
        %v4159 = vpop.f32.mrb[0].mxu0
        %v4160 = vadd.f32 %v4089, %v4159
        %v4161 = vpop.f32.mrb[0].mxu0
        %4162 = vdwg.mxu0
        %v4163 = vld [vmem:[%s0] sm:$0xff]
        %v4164 = vstv %s42
        %vm4165 = vcmp.gt.s32.totalorder %v4163, %v4164
        %v4166 = vsel %vm4165, 1, 0
        %4167 = vset.pattern.permute.xlu0 0
        %4168 = vperm.xlu0 %4167, %v4166
        %v4169 = vpop.permute.xlu0 %4168
        %vm4170 = vcmp.eq.s32.totalorder %v4169, 1
        %v4171 = vsel %vm4170, %v4160, 0.0
        %4172 = vst [vmem:[%s666] sm:$0xff] %v4171
        %v4173 = vsel %vm4170, %v2851, 0.0
        %4174 = vst [vmem:[%s673] sm:$0xff] %v4173
        %s4175 = sand.u32 %s454, 1
        %s4176 = scalar_lea.sflag [#allocation7], %s4175
        %s4177 = sand.u32 %s454, 1
        %s4178 = smul.addr %s4177, 8
        %s4179 = scalar_lea.vmem [#allocation11], %s4178
        %s4180 = sand.u32 %s480, 1
        %s4181 = scalar_lea.sflag [#allocation13], %s4180
        %s4182 = sand.u32 %s480, 1
        %s4183 = smul.addr %s4182, 8
        %s4184 = scalar_lea.vmem [#allocation12], %s4183
        // Predicated region
        $region113: #{tpu_custom_call.1} parent=95 // pred_check
          %p4185 = pneg %p464
        $region114: #{tpu_custom_call.1} parent=95 // pred_check_branch
          %4187 = sbr.rel (%p4185) target = $region116
        $region115: #{tpu_custom_call.1} parent=95 // pred_region
          %s4189 = ssub.s32 128, 128
          %4190 = vsyncadd %s4176, %s4189
          %s4191 = smul.addr %s42, 128
          %s4192 = scalar_lea.hbm %s19, %s4191
          %s4194 = sshll.u32 %s4179, 4
          %s4195 = int_to_ptr.vmem [resolvable:$true] %s4194
          %4197 = dma.vmem_to_hbm [thread:$0]  %s4195, 128, %s4192, %s4176
        $region116: #{tpu_custom_call.1} parent=95 // pred_fallthru
          _
        // Predicated region
        $region117: #{tpu_custom_call.1} parent=95 // pred_check
          %p4198 = pneg %p490
        $region118: #{tpu_custom_call.1} parent=95 // pred_check_branch
          %4200 = sbr.rel (%p4198) target = $region120
        $region119: #{tpu_custom_call.1} parent=95 // pred_region
          %s4202 = ssub.s32 128, 128
          %4203 = vsyncadd %s4181, %s4202
          %s4204 = smul.addr %s42, 128
          %s4205 = scalar_lea.hbm %s20, %s4204
          %s4207 = sshll.u32 %s4184, 4
          %s4208 = int_to_ptr.vmem [resolvable:$true] %s4207
          %4210 = dma.vmem_to_hbm [thread:$0]  %s4208, 128, %s4205, %s4181
        $region120: #{tpu_custom_call.1} parent=95 // pred_fallthru
          _
      $region96: #{tpu_custom_call.1} parent=5 // pred_fallthru
        _
      %p4211 = scmp.le.s32.totalorder 2, %s37
      // Predicated region
      $region121: #{tpu_custom_call.1} parent=5 // pred_check
        %p4212 = pneg %p4211
      $region122: #{tpu_custom_call.1} parent=5 // pred_check_branch
        %4214 = sbr.rel (%p4212) target = $region124
      $region123: #{tpu_custom_call.1} parent=5 // pred_region
        %s4215 = ssub.s32 %s37, 2
        // Predicated region
        $region125: #{tpu_custom_call.1} parent=123 // pred_check
          %p4216 = pneg %p470
        $region126: #{tpu_custom_call.1} parent=123 // pred_check_branch
          %4218 = sbr.rel (%p4216) target = $region128
        $region127: #{tpu_custom_call.1} parent=123 // pred_region
          %s4219 = sand.u32 %s455, 1
          %s4220 = scalar_lea.sflag [#allocation7], %s4219
          %s4221 = sand.u32 %s455, 1
          %s4222 = smul.addr %s4221, 8
          %s4223 = scalar_lea.vmem [#allocation11], %s4222
          %4224 = dma.done %s4220, 128
        $region128: #{tpu_custom_call.1} parent=123 // pred_fallthru
          _
        // Predicated region
        $region129: #{tpu_custom_call.1} parent=123 // pred_check
          %p4225 = pneg %p496
        $region130: #{tpu_custom_call.1} parent=123 // pred_check_branch
          %4227 = sbr.rel (%p4225) target = $region132
        $region131: #{tpu_custom_call.1} parent=123 // pred_region
          %s4228 = sand.u32 %s481, 1
          %s4229 = scalar_lea.sflag [#allocation13], %s4228
          %s4230 = sand.u32 %s481, 1
          %s4231 = smul.addr %s4230, 8
          %s4232 = scalar_lea.vmem [#allocation12], %s4231
          %4233 = dma.done %s4229, 128
        $region132: #{tpu_custom_call.1} parent=123 // pred_fallthru
          _
      $region124: #{tpu_custom_call.1} parent=5 // pred_fallthru
        _
    $region6: #{tpu_custom_call.1} parent=1 // loop_footer
      %s41 = sadd.s32 1, %s37
    $region7: #{tpu_custom_call.1} parent=1 // loop_footer_branch
      %36 = sbr.rel target = $region3
    $region8: #{tpu_custom_call.1} parent=1 // loop_exit
      _
    %4234 = vsyncpa [#allocation6], 1
    %s4235 = scalar_lea.sflag [#allocation6], 1
    %4236 = vsyncpa %s4235, 1
    %4237 = vsyncpa [#allocation9], 1
    %4238 = vsyncpa [#allocation7], 1
    %s4239 = scalar_lea.sflag [#allocation7], 1
    %4240 = vsyncpa %s4239, 1
    %4241 = vsyncpa [#allocation13], 1
    %s4242 = scalar_lea.sflag [#allocation13], 1
    %4243 = vsyncpa %s4242, 1

</llo_original>
